<compile_context>
chip_gen: v7x
topology: tpu7x:2x2x1
jax: 0.10.0
libtpu: 0.0.40
codegen_flags: <defaults>
</compile_context>

<pallas_src>
import math
import functools

import jax
import jax.numpy as jnp
from jax.experimental import pallas as pl
from jax.experimental.pallas import tpu as pltpu


def _couple_attn_kernel(q_ref, k_ref, v_ref,
                        wqT_ref, wkT_ref, winT_ref, woT_ref,
                        bq_ref, bk_ref, bin_ref, bo_ref,
                        o_ref,
                        *, num_heads: int, dim_heads: int):
    TB, N, E = q_ref.shape
    M = TB * N
    scale = 1.0 / math.sqrt(dim_heads)

    # Flatten the batch block into the matmul M dimension (layout-preserving
    # reshape: leading-dim merge, last (lane) dim unchanged).
    xq = q_ref[...].reshape(M, E)
    xk = k_ref[...].reshape(M, E)
    xv = v_ref[...].reshape(M, E)

    acc = jnp.zeros((M, E), jnp.float32)

    # num_heads is small & static -> unrolled Python loop over heads.
    for h in range(num_heads):
        # v = couple.in_proj(v) (head-h slice) -- also the residual added to q/k.
        vh = jnp.dot(xv, winT_ref[h], preferred_element_type=jnp.float32) + bin_ref[h]
        # q = q_proj(q) + v ; k = k_proj(k) + v  (1/sqrt(dh) folded into q once)
        qh = (jnp.dot(xq, wqT_ref[h], preferred_element_type=jnp.float32)
              + bq_ref[h] + vh) * scale
        kh = (jnp.dot(xk, wkT_ref[h], preferred_element_type=jnp.float32)
              + bk_ref[h] + vh)

        # Back to (TB, N, dh) for per-batch attention (layout-preserving split).
        qh3 = qh.reshape(TB, N, dim_heads)
        kh3 = kh.reshape(TB, N, dim_heads)
        vh3 = vh.reshape(TB, N, dim_heads)

        # Scores: contract last dims directly -- no in-kernel transpose.
        s = jnp.einsum('bnd,bmd->bnm', qh3, kh3,
                       preferred_element_type=jnp.float32)           # (TB, N, N)
        s = s - jnp.max(s, axis=-1, keepdims=True)
        p = jnp.exp(s)
        l = jnp.sum(p, axis=-1, keepdims=True)                       # (TB, N, 1)
        # NOTE: for large N this (N, N) tile should become a KV-block grid axis
        # with an online-softmax accumulator; at N = h*w = 64 it is a few KB.

        ho = jnp.einsum('bnm,bmd->bnd', p.astype(v_ref.dtype), vh3,
                        preferred_element_type=jnp.float32)          # (TB, N, dh)
        # Normalize after PV (linear in p): touches N*dh values, not N*N.
        ho = ho * pl.reciprocal(l, approx=True)

        # Accumulate the coupled out-projection per head (no concatenate).
        acc = acc + jnp.dot(ho.reshape(M, dim_heads), woT_ref[h],
                            preferred_element_type=jnp.float32)      # (M, E)

    out = acc + bo_ref[...]
    o_ref[...] = out.reshape(TB, N, E).astype(o_ref.dtype)


def _pick_block_batch(B, cap=8):
    """Largest divisor of B that is <= cap while (if possible) leaving >= 2
    grid steps, so both v7x TensorCores get work."""
    best = 1
    for d in range(1, min(B, cap) + 1):
        if B % d == 0 and (B // d >= 2 or B == 1):
            best = d
    return best


def couple_attention(q, k, v, params, *, patch_shape, num_heads, dim_heads,
                     block_batch=None):
    """q, k, v: (B, N, E) with N = h*w.  Returns (B, h, w, E)."""
    B, N, E = q.shape
    h, w = patch_shape
    assert N == h * w
    internal = num_heads * dim_heads
    assert internal == params["wq"].shape[0]

    wq, bq = params["wq"], params["bq"]            # (internal, E), (internal,)
    wk, bk = params["wk"], params["bk"]
    win, bin_ = params["win"], params["bin"]       # CoupleLinear.in_weight / in_bias
    wout, bout = params["wout"], params["bout"]    # (E, internal), (E,)
    alpha = params["alpha"]                        # scalar / (1,)

    # Coupled output weight (tiny elementwise glue, done once in plain JAX):
    #   out_proj(x) = x @ (alpha * win.T + wout).T + bout
    wo = alpha * win.T + wout                      # (E, internal)

    # Pre-transpose & pre-split all weights per head in the wrapper so the
    # kernel never transposes or lane-slices:  x @ W.T == x @ W_T.
    def split_T(wmat):                             # (internal, E) -> (H, E, dh)
        return wmat.reshape(num_heads, dim_heads, E).transpose(0, 2, 1)

    wqT = split_T(wq)
    wkT = split_T(wk)
    winT = split_T(win)
    woT = wo.T.reshape(num_heads, dim_heads, E)    # (H, dh, E)

    bq_h = bq.reshape(num_heads, 1, dim_heads)
    bk_h = bk.reshape(num_heads, 1, dim_heads)
    bin_h = bin_.reshape(num_heads, 1, dim_heads)
    bo2 = bout.reshape(1, E)

    if block_batch is None:
        block_batch = _pick_block_batch(B)
    assert B % block_batch == 0
    grid = (B // block_batch,)

    kernel = functools.partial(_couple_attn_kernel,
                               num_heads=num_heads, dim_heads=dim_heads)

    w3 = lambda i: (0, 0, 0)   # weights/biases stay resident across grid steps
    out = pl.pallas_call(
        kernel,
        out_shape=jax.ShapeDtypeStruct((B, N, E), q.dtype),
        grid_spec=pltpu.PrefetchScalarGridSpec(
            num_scalar_prefetch=0,
            grid=grid,
            in_specs=[
                pl.BlockSpec((block_batch, N, E), lambda i: (i, 0, 0)),   # q
                pl.BlockSpec((block_batch, N, E), lambda i: (i, 0, 0)),   # k
                pl.BlockSpec((block_batch, N, E), lambda i: (i, 0, 0)),   # v
                pl.BlockSpec((num_heads, E, dim_heads), w3),              # WqT per head
                pl.BlockSpec((num_heads, E, dim_heads), w3),              # WkT per head
                pl.BlockSpec((num_heads, E, dim_heads), w3),              # WinT per head
                pl.BlockSpec((num_heads, dim_heads, E), w3),              # WoT per head
                pl.BlockSpec((num_heads, 1, dim_heads), w3),              # bq per head
                pl.BlockSpec((num_heads, 1, dim_heads), w3),              # bk per head
                pl.BlockSpec((num_heads, 1, dim_heads), w3),              # bin per head
                pl.BlockSpec((1, E), lambda i: (0, 0)),                   # bout
            ],
            out_specs=pl.BlockSpec((block_batch, N, E), lambda i: (i, 0, 0)),
        ),
        compiler_params=pltpu.CompilerParams(
            dimension_semantics=("parallel",),
            # Working set is tiny at these shapes; explicit limit keeps v5e
            # (16 MiB default scoped VMEM) safe if block_batch / N grow.
            vmem_limit_bytes=32 * 1024 * 1024,
        ),
    )(q, k, v, wqT, wkT, winT, woT, bq_h, bk_h, bin_h, bo2)

    return out.reshape(B, h, w, E)


def _reference(q, k, v, params, *, patch_shape, num_heads, dim_heads):
    """Pure-JAX reference mirroring the PyTorch forward (use_rel_pos=False)."""
    B, N, E = q.shape
    h, w = patch_shape
    vv = v @ params["win"].T + params["bin"]
    qq = q @ params["wq"].T + params["bq"] + vv
    kk = k @ params["wk"].T + params["bk"] + vv

    def sep(x):  # (B, N, internal) -> (B, H, N, dh)
        return x.reshape(B, N, num_heads, dim_heads).transpose(0, 2, 1, 3)

    qh, kh, vh = sep(qq), sep(kk), sep(vv)
    attn = jnp.einsum("bhnd,bhmd->bhnm", qh, kh) / math.sqrt(dim_heads)
    attn = jax.nn.softmax(attn, axis=-1)
    out = jnp.einsum("bhnm,bhmd->bhnd", attn, vh)
    out = out.transpose(0, 2, 1, 3).reshape(B, h, w, num_heads * dim_heads)
    wo = params["alpha"] * params["win"].T + params["wout"]
    return out @ wo.T + params["bout"]


if __name__ == "__main__":
    # Small deterministic config (patch grid 8x8 -> N=64).
    patch_shape = (8, 8)
    ph, pw = patch_shape
    N = ph * pw
    embedding_dim = 32
    num_heads = 2
    dim_heads = 16
    internal = num_heads * dim_heads
    B = 8            # -> block_batch=4, grid=(2,): both v7x cores get work

    key = jax.random.PRNGKey(0)
    ks = jax.random.split(key, 12)

    params = {
        "wq": jax.random.normal(ks[0], (internal, embedding_dim), jnp.float32) * 0.1,
        "bq": jax.random.normal(ks[1], (internal,), jnp.float32) * 0.1,
        "wk": jax.random.normal(ks[2], (internal, embedding_dim), jnp.float32) * 0.1,
        "bk": jax.random.normal(ks[3], (internal,), jnp.float32) * 0.1,
        # CoupleLinear: in_weight (hidden, dim) / sqrt(hidden), out_weight (dim, hidden)
        "win": jax.random.normal(ks[4], (internal, embedding_dim), jnp.float32)
               / math.sqrt(internal),
        "bin": jax.random.normal(ks[5], (internal,), jnp.float32) * 0.1,
        "wout": jax.random.normal(ks[6], (embedding_dim, internal), jnp.float32)
                / math.sqrt(internal),
        "bout": jax.random.normal(ks[7], (embedding_dim,), jnp.float32) * 0.1,
        "alpha": jax.random.normal(ks[8], ()),
    }

    q = jax.random.normal(ks[9], (B, N, embedding_dim), jnp.float32)
    k = jax.random.normal(ks[10], (B, N, embedding_dim), jnp.float32)
    v = jax.random.normal(ks[11], (B, N, embedding_dim), jnp.float32)

    out = couple_attention(q, k, v, params, patch_shape=patch_shape,
                           num_heads=num_heads, dim_heads=dim_heads)
    out = jax.block_until_ready(out)

    ref = _reference(q, k, v, params, patch_shape=patch_shape,
                     num_heads=num_heads, dim_heads=dim_heads)
    assert out.shape == (B, ph, pw, embedding_dim)
    # Tolerance accounts for the EUP approx reciprocal in the softmax denom.
    assert jnp.allclose(out, ref, atol=2e-2, rtol=2e-2), "mismatch vs reference"

    # NOTE: use_rel_pos=False path (module default); dropout is a no-op in eval.
    # TODO(synk): use_rel_pos=True (rel_pos_h/rel_pos_w gather + score bias) not implemented.
    print("KERNEL_OK")
</pallas_src>

<mosaic_0001>
module attributes {stable_mosaic.version = 11 : i64} {
  func.func @_couple_attn_kernel(%arg0: i32, %arg1: memref<4x64x32xf32, #tpu.memory_space<vmem>>, %arg2: memref<4x64x32xf32, #tpu.memory_space<vmem>>, %arg3: memref<4x64x32xf32, #tpu.memory_space<vmem>>, %arg4: memref<2x32x16xf32, #tpu.memory_space<vmem>>, %arg5: memref<2x32x16xf32, #tpu.memory_space<vmem>>, %arg6: memref<2x32x16xf32, #tpu.memory_space<vmem>>, %arg7: memref<2x16x32xf32, #tpu.memory_space<vmem>>, %arg8: memref<2x1x16xf32, #tpu.memory_space<vmem>>, %arg9: memref<2x1x16xf32, #tpu.memory_space<vmem>>, %arg10: memref<2x1x16xf32, #tpu.memory_space<vmem>>, %arg11: memref<1x32xf32, #tpu.memory_space<vmem>>, %arg12: memref<4x64x32xf32, #tpu.memory_space<vmem>>) attributes {dimension_semantics = [#tpu.dimension_semantics<parallel>], iteration_bounds = array<i64: 2>, scalar_prefetch = 0 : i64, scratch_operands = 0 : i64, tpu.core_type = #tpu.core_type<tc>, window_params = [{transform_indices = @transform_0, window_bounds = array<i64: 4, 64, 32>}, {transform_indices = @transform_1, window_bounds = array<i64: 4, 64, 32>}, {transform_indices = @transform_2, window_bounds = array<i64: 4, 64, 32>}, {pipeline_mode = #tpu.pipeline_mode<synchronous>, transform_indices = @transform_3, window_bounds = array<i64: 2, 32, 16>}, {pipeline_mode = #tpu.pipeline_mode<synchronous>, transform_indices = @transform_4, window_bounds = array<i64: 2, 32, 16>}, {pipeline_mode = #tpu.pipeline_mode<synchronous>, transform_indices = @transform_5, window_bounds = array<i64: 2, 32, 16>}, {pipeline_mode = #tpu.pipeline_mode<synchronous>, transform_indices = @transform_6, window_bounds = array<i64: 2, 16, 32>}, {pipeline_mode = #tpu.pipeline_mode<synchronous>, transform_indices = @transform_7, window_bounds = array<i64: 2, 1, 16>}, {pipeline_mode = #tpu.pipeline_mode<synchronous>, transform_indices = @transform_8, window_bounds = array<i64: 2, 1, 16>}, {pipeline_mode = #tpu.pipeline_mode<synchronous>, transform_indices = @transform_9, window_bounds = array<i64: 2, 1, 16>}, {pipeline_mode = #tpu.pipeline_mode<synchronous>, transform_indices = @transform_10, window_bounds = array<i64: 1, 32>}, {transform_indices = @transform_11, window_bounds = array<i64: 4, 64, 32>}]} {
    %c0 = arith.constant 0 : index
    %c0_0 = arith.constant 0 : index
    %c0_1 = arith.constant 0 : index
    %0 = vector.load %arg1[%c0, %c0_0, %c0_1] : memref<4x64x32xf32, #tpu.memory_space<vmem>>, vector<4x64x32xf32>
    %1 = vector.shape_cast %0 : vector<4x64x32xf32> to vector<256x32xf32>
    %c0_2 = arith.constant 0 : index
    %c0_3 = arith.constant 0 : index
    %c0_4 = arith.constant 0 : index
    %2 = vector.load %arg2[%c0_2, %c0_3, %c0_4] : memref<4x64x32xf32, #tpu.memory_space<vmem>>, vector<4x64x32xf32>
    %3 = vector.shape_cast %2 : vector<4x64x32xf32> to vector<256x32xf32>
    %c0_5 = arith.constant 0 : index
    %c0_6 = arith.constant 0 : index
    %c0_7 = arith.constant 0 : index
    %4 = vector.load %arg3[%c0_5, %c0_6, %c0_7] : memref<4x64x32xf32, #tpu.memory_space<vmem>>, vector<4x64x32xf32>
    %5 = vector.shape_cast %4 : vector<4x64x32xf32> to vector<256x32xf32>
    %cst = arith.constant 0.000000e+00 : f32
    %6 = vector.broadcast %cst : f32 to vector<256x32xf32>
    %c0_8 = arith.constant 0 : index
    %c0_9 = arith.constant 0 : index
    %c0_10 = arith.constant 0 : index
    %7 = vector.load %arg6[%c0_8, %c0_9, %c0_10] : memref<2x32x16xf32, #tpu.memory_space<vmem>>, vector<1x32x16xf32>
    %8 = vector.shape_cast %7 : vector<1x32x16xf32> to vector<32x16xf32>
    %cst_11 = arith.constant dense<0.000000e+00> : vector<256x16xf32>
    %9 = tpu.matmul %5, %8, %cst_11 {dimension_numbers = #tpu.dot_dimension_numbers<[1], [0], [0], [1], [0, 0, 1, 1], [], []>} : vector<256x32xf32>, vector<32x16xf32>, vector<256x16xf32> -> vector<256x16xf32>
    %c0_12 = arith.constant 0 : index
    %c0_13 = arith.constant 0 : index
    %c0_14 = arith.constant 0 : index
    %10 = vector.load %arg10[%c0_12, %c0_13, %c0_14] : memref<2x1x16xf32, #tpu.memory_space<vmem>>, vector<1x1x16xf32>
    %11 = vector.shape_cast %10 : vector<1x1x16xf32> to vector<1x16xf32>
    %12 = vector.broadcast %11 : vector<1x16xf32> to vector<256x16xf32>
    %13 = arith.addf %9, %12 : vector<256x16xf32>
    %c0_15 = arith.constant 0 : index
    %c0_16 = arith.constant 0 : index
    %c0_17 = arith.constant 0 : index
    %14 = vector.load %arg4[%c0_15, %c0_16, %c0_17] : memref<2x32x16xf32, #tpu.memory_space<vmem>>, vector<1x32x16xf32>
    %15 = vector.shape_cast %14 : vector<1x32x16xf32> to vector<32x16xf32>
    %cst_18 = arith.constant dense<0.000000e+00> : vector<256x16xf32>
    %16 = tpu.matmul %1, %15, %cst_18 {dimension_numbers = #tpu.dot_dimension_numbers<[1], [0], [0], [1], [0, 0, 1, 1], [], []>} : vector<256x32xf32>, vector<32x16xf32>, vector<256x16xf32> -> vector<256x16xf32>
    %c0_19 = arith.constant 0 : index
    %c0_20 = arith.constant 0 : index
    %c0_21 = arith.constant 0 : index
    %17 = vector.load %arg8[%c0_19, %c0_20, %c0_21] : memref<2x1x16xf32, #tpu.memory_space<vmem>>, vector<1x1x16xf32>
    %18 = vector.shape_cast %17 : vector<1x1x16xf32> to vector<1x16xf32>
    %19 = vector.broadcast %18 : vector<1x16xf32> to vector<256x16xf32>
    %20 = arith.addf %16, %19 : vector<256x16xf32>
    %21 = arith.addf %20, %13 : vector<256x16xf32>
    %cst_22 = arith.constant 2.500000e-01 : f32
    %22 = vector.broadcast %cst_22 : f32 to vector<256x16xf32>
    %23 = arith.mulf %21, %22 : vector<256x16xf32>
    %c0_23 = arith.constant 0 : index
    %c0_24 = arith.constant 0 : index
    %c0_25 = arith.constant 0 : index
    %24 = vector.load %arg5[%c0_23, %c0_24, %c0_25] : memref<2x32x16xf32, #tpu.memory_space<vmem>>, vector<1x32x16xf32>
    %25 = vector.shape_cast %24 : vector<1x32x16xf32> to vector<32x16xf32>
    %cst_26 = arith.constant dense<0.000000e+00> : vector<256x16xf32>
    %26 = tpu.matmul %3, %25, %cst_26 {dimension_numbers = #tpu.dot_dimension_numbers<[1], [0], [0], [1], [0, 0, 1, 1], [], []>} : vector<256x32xf32>, vector<32x16xf32>, vector<256x16xf32> -> vector<256x16xf32>
    %c0_27 = arith.constant 0 : index
    %c0_28 = arith.constant 0 : index
    %c0_29 = arith.constant 0 : index
    %27 = vector.load %arg9[%c0_27, %c0_28, %c0_29] : memref<2x1x16xf32, #tpu.memory_space<vmem>>, vector<1x1x16xf32>
    %28 = vector.shape_cast %27 : vector<1x1x16xf32> to vector<1x16xf32>
    %29 = vector.broadcast %28 : vector<1x16xf32> to vector<256x16xf32>
    %30 = arith.addf %26, %29 : vector<256x16xf32>
    %31 = arith.addf %30, %13 : vector<256x16xf32>
    %32 = vector.shape_cast %23 : vector<256x16xf32> to vector<4x64x16xf32>
    %33 = vector.shape_cast %31 : vector<256x16xf32> to vector<4x64x16xf32>
    %34 = vector.shape_cast %13 : vector<256x16xf32> to vector<4x64x16xf32>
    "tpu.trace_start"() <{level = 10 : i32, message = "bnd,bmd->bnm"}> : () -> ()
    %cst_30 = arith.constant dense<0.000000e+00> : vector<4x64x64xf32>
    %35 = tpu.matmul %32, %33, %cst_30 {dimension_numbers = #tpu.dot_dimension_numbers<[2], [2], [1], [1], [0, 0, 0, 1, 1, 1], [0], [0]>} : vector<4x64x16xf32>, vector<4x64x16xf32>, vector<4x64x64xf32> -> vector<4x64x64xf32>
    "tpu.trace_stop"() : () -> ()
    %cst_31 = arith.constant dense<0xFF800000> : vector<4x64xf32>
    %36 = vector.multi_reduction <maximumf>, %35, %cst_31 [2] : vector<4x64x64xf32> to vector<4x64xf32>
    %37 = vector.shape_cast %36 : vector<4x64xf32> to vector<4x64x1xf32>
    %38 = vector.broadcast %37 : vector<4x64x1xf32> to vector<4x64x64xf32>
    %39 = arith.subf %35, %38 : vector<4x64x64xf32>
    %40 = math.exp %39 : vector<4x64x64xf32>
    %cst_32 = arith.constant dense<0.000000e+00> : vector<4x64xf32>
    %41 = vector.multi_reduction <add>, %40, %cst_32 [2] : vector<4x64x64xf32> to vector<4x64xf32>
    %42 = vector.shape_cast %41 : vector<4x64xf32> to vector<4x64x1xf32>
    "tpu.trace_start"() <{level = 10 : i32, message = "bnm,bmd->bnd"}> : () -> ()
    %cst_33 = arith.constant dense<0.000000e+00> : vector<4x64x16xf32>
    %43 = tpu.matmul %40, %34, %cst_33 {dimension_numbers = #tpu.dot_dimension_numbers<[2], [1], [1], [2], [0, 0, 0, 1, 1, 2], [0], [0]>} : vector<4x64x64xf32>, vector<4x64x16xf32>, vector<4x64x16xf32> -> vector<4x64x16xf32>
    "tpu.trace_stop"() : () -> ()
    %44 = tpu.reciprocal %42 {approx = true} : vector<4x64x1xf32> -> vector<4x64x1xf32>
    %45 = vector.broadcast %44 : vector<4x64x1xf32> to vector<4x64x16xf32>
    %46 = arith.mulf %43, %45 : vector<4x64x16xf32>
    %47 = vector.shape_cast %46 : vector<4x64x16xf32> to vector<256x16xf32>
    %c0_34 = arith.constant 0 : index
    %c0_35 = arith.constant 0 : index
    %c0_36 = arith.constant 0 : index
    %48 = vector.load %arg7[%c0_34, %c0_35, %c0_36] : memref<2x16x32xf32, #tpu.memory_space<vmem>>, vector<1x16x32xf32>
    %49 = vector.shape_cast %48 : vector<1x16x32xf32> to vector<16x32xf32>
    %cst_37 = arith.constant dense<0.000000e+00> : vector<256x32xf32>
    %50 = tpu.matmul %47, %49, %cst_37 {dimension_numbers = #tpu.dot_dimension_numbers<[1], [0], [0], [1], [0, 0, 1, 1], [], []>} : vector<256x16xf32>, vector<16x32xf32>, vector<256x32xf32> -> vector<256x32xf32>
    %51 = arith.addf %6, %50 : vector<256x32xf32>
    %c1 = arith.constant 1 : index
    %c0_38 = arith.constant 0 : index
    %c0_39 = arith.constant 0 : index
    %52 = vector.load %arg6[%c1, %c0_38, %c0_39] : memref<2x32x16xf32, #tpu.memory_space<vmem>>, vector<1x32x16xf32>
    %53 = vector.shape_cast %52 : vector<1x32x16xf32> to vector<32x16xf32>
    %cst_40 = arith.constant dense<0.000000e+00> : vector<256x16xf32>
    %54 = tpu.matmul %5, %53, %cst_40 {dimension_numbers = #tpu.dot_dimension_numbers<[1], [0], [0], [1], [0, 0, 1, 1], [], []>} : vector<256x32xf32>, vector<32x16xf32>, vector<256x16xf32> -> vector<256x16xf32>
    %c1_41 = arith.constant 1 : index
    %c0_42 = arith.constant 0 : index
    %c0_43 = arith.constant 0 : index
    %55 = vector.load %arg10[%c1_41, %c0_42, %c0_43] : memref<2x1x16xf32, #tpu.memory_space<vmem>>, vector<1x1x16xf32>
    %56 = vector.shape_cast %55 : vector<1x1x16xf32> to vector<1x16xf32>
    %57 = vector.broadcast %56 : vector<1x16xf32> to vector<256x16xf32>
    %58 = arith.addf %54, %57 : vector<256x16xf32>
    %c1_44 = arith.constant 1 : index
    %c0_45 = arith.constant 0 : index
    %c0_46 = arith.constant 0 : index
    %59 = vector.load %arg4[%c1_44, %c0_45, %c0_46] : memref<2x32x16xf32, #tpu.memory_space<vmem>>, vector<1x32x16xf32>
    %60 = vector.shape_cast %59 : vector<1x32x16xf32> to vector<32x16xf32>
    %cst_47 = arith.constant dense<0.000000e+00> : vector<256x16xf32>
    %61 = tpu.matmul %1, %60, %cst_47 {dimension_numbers = #tpu.dot_dimension_numbers<[1], [0], [0], [1], [0, 0, 1, 1], [], []>} : vector<256x32xf32>, vector<32x16xf32>, vector<256x16xf32> -> vector<256x16xf32>
    %c1_48 = arith.constant 1 : index
    %c0_49 = arith.constant 0 : index
    %c0_50 = arith.constant 0 : index
    %62 = vector.load %arg8[%c1_48, %c0_49, %c0_50] : memref<2x1x16xf32, #tpu.memory_space<vmem>>, vector<1x1x16xf32>
    %63 = vector.shape_cast %62 : vector<1x1x16xf32> to vector<1x16xf32>
    %64 = vector.broadcast %63 : vector<1x16xf32> to vector<256x16xf32>
    %65 = arith.addf %61, %64 : vector<256x16xf32>
    %66 = arith.addf %65, %58 : vector<256x16xf32>
    %cst_51 = arith.constant 2.500000e-01 : f32
    %67 = vector.broadcast %cst_51 : f32 to vector<256x16xf32>
    %68 = arith.mulf %66, %67 : vector<256x16xf32>
    %c1_52 = arith.constant 1 : index
    %c0_53 = arith.constant 0 : index
    %c0_54 = arith.constant 0 : index
    %69 = vector.load %arg5[%c1_52, %c0_53, %c0_54] : memref<2x32x16xf32, #tpu.memory_space<vmem>>, vector<1x32x16xf32>
    %70 = vector.shape_cast %69 : vector<1x32x16xf32> to vector<32x16xf32>
    %cst_55 = arith.constant dense<0.000000e+00> : vector<256x16xf32>
    %71 = tpu.matmul %3, %70, %cst_55 {dimension_numbers = #tpu.dot_dimension_numbers<[1], [0], [0], [1], [0, 0, 1, 1], [], []>} : vector<256x32xf32>, vector<32x16xf32>, vector<256x16xf32> -> vector<256x16xf32>
    %c1_56 = arith.constant 1 : index
    %c0_57 = arith.constant 0 : index
    %c0_58 = arith.constant 0 : index
    %72 = vector.load %arg9[%c1_56, %c0_57, %c0_58] : memref<2x1x16xf32, #tpu.memory_space<vmem>>, vector<1x1x16xf32>
    %73 = vector.shape_cast %72 : vector<1x1x16xf32> to vector<1x16xf32>
    %74 = vector.broadcast %73 : vector<1x16xf32> to vector<256x16xf32>
    %75 = arith.addf %71, %74 : vector<256x16xf32>
    %76 = arith.addf %75, %58 : vector<256x16xf32>
    %77 = vector.shape_cast %68 : vector<256x16xf32> to vector<4x64x16xf32>
    %78 = vector.shape_cast %76 : vector<256x16xf32> to vector<4x64x16xf32>
    %79 = vector.shape_cast %58 : vector<256x16xf32> to vector<4x64x16xf32>
    "tpu.trace_start"() <{level = 10 : i32, message = "bnd,bmd->bnm"}> : () -> ()
    %cst_59 = arith.constant dense<0.000000e+00> : vector<4x64x64xf32>
    %80 = tpu.matmul %77, %78, %cst_59 {dimension_numbers = #tpu.dot_dimension_numbers<[2], [2], [1], [1], [0, 0, 0, 1, 1, 1], [0], [0]>} : vector<4x64x16xf32>, vector<4x64x16xf32>, vector<4x64x64xf32> -> vector<4x64x64xf32>
    "tpu.trace_stop"() : () -> ()
    %cst_60 = arith.constant dense<0xFF800000> : vector<4x64xf32>
    %81 = vector.multi_reduction <maximumf>, %80, %cst_60 [2] : vector<4x64x64xf32> to vector<4x64xf32>
    %82 = vector.shape_cast %81 : vector<4x64xf32> to vector<4x64x1xf32>
    %83 = vector.broadcast %82 : vector<4x64x1xf32> to vector<4x64x64xf32>
    %84 = arith.subf %80, %83 : vector<4x64x64xf32>
    %85 = math.exp %84 : vector<4x64x64xf32>
    %cst_61 = arith.constant dense<0.000000e+00> : vector<4x64xf32>
    %86 = vector.multi_reduction <add>, %85, %cst_61 [2] : vector<4x64x64xf32> to vector<4x64xf32>
    %87 = vector.shape_cast %86 : vector<4x64xf32> to vector<4x64x1xf32>
    "tpu.trace_start"() <{level = 10 : i32, message = "bnm,bmd->bnd"}> : () -> ()
    %cst_62 = arith.constant dense<0.000000e+00> : vector<4x64x16xf32>
    %88 = tpu.matmul %85, %79, %cst_62 {dimension_numbers = #tpu.dot_dimension_numbers<[2], [1], [1], [2], [0, 0, 0, 1, 1, 2], [0], [0]>} : vector<4x64x64xf32>, vector<4x64x16xf32>, vector<4x64x16xf32> -> vector<4x64x16xf32>
    "tpu.trace_stop"() : () -> ()
    %89 = tpu.reciprocal %87 {approx = true} : vector<4x64x1xf32> -> vector<4x64x1xf32>
    %90 = vector.broadcast %89 : vector<4x64x1xf32> to vector<4x64x16xf32>
    %91 = arith.mulf %88, %90 : vector<4x64x16xf32>
    %92 = vector.shape_cast %91 : vector<4x64x16xf32> to vector<256x16xf32>
    %c1_63 = arith.constant 1 : index
    %c0_64 = arith.constant 0 : index
    %c0_65 = arith.constant 0 : index
    %93 = vector.load %arg7[%c1_63, %c0_64, %c0_65] : memref<2x16x32xf32, #tpu.memory_space<vmem>>, vector<1x16x32xf32>
    %94 = vector.shape_cast %93 : vector<1x16x32xf32> to vector<16x32xf32>
    %cst_66 = arith.constant dense<0.000000e+00> : vector<256x32xf32>
    %95 = tpu.matmul %92, %94, %cst_66 {dimension_numbers = #tpu.dot_dimension_numbers<[1], [0], [0], [1], [0, 0, 1, 1], [], []>} : vector<256x16xf32>, vector<16x32xf32>, vector<256x32xf32> -> vector<256x32xf32>
    %96 = arith.addf %51, %95 : vector<256x32xf32>
    %c0_67 = arith.constant 0 : index
    %c0_68 = arith.constant 0 : index
    %97 = vector.load %arg11[%c0_67, %c0_68] : memref<1x32xf32, #tpu.memory_space<vmem>>, vector<1x32xf32>
    %98 = vector.broadcast %97 : vector<1x32xf32> to vector<256x32xf32>
    %99 = arith.addf %96, %98 : vector<256x32xf32>
    %100 = vector.shape_cast %99 : vector<256x32xf32> to vector<4x64x32xf32>
    %c0_69 = arith.constant 0 : index
    %c0_70 = arith.constant 0 : index
    %c0_71 = arith.constant 0 : index
    %101 = vector.load %arg12[%c0_69, %c0_70, %c0_71] : memref<4x64x32xf32, #tpu.memory_space<vmem>>, vector<4x64x32xf32>
    tpu.vector_store %arg12[%c0_69, %c0_70, %c0_71], %100 {strides = array<i32>} : memref<4x64x32xf32, #tpu.memory_space<vmem>>, vector<4x64x32xf32>,
    return
  }
  func.func @transform_0(%arg0: i32) -> (i32, i32, i32) {
    %c0_i32 = arith.constant 0 : i32
    %c0_i32_0 = arith.constant 0 : i32
    %c0_i32_1 = arith.constant 0 : i32
    return %arg0, %c0_i32, %c0_i32_0 : i32, i32, i32
  }
  func.func @transform_1(%arg0: i32) -> (i32, i32, i32) {
    %c0_i32 = arith.constant 0 : i32
    %c0_i32_0 = arith.constant 0 : i32
    %c0_i32_1 = arith.constant 0 : i32
    return %arg0, %c0_i32, %c0_i32_0 : i32, i32, i32
  }
  func.func @transform_2(%arg0: i32) -> (i32, i32, i32) {
    %c0_i32 = arith.constant 0 : i32
    %c0_i32_0 = arith.constant 0 : i32
    %c0_i32_1 = arith.constant 0 : i32
    return %arg0, %c0_i32, %c0_i32_0 : i32, i32, i32
  }
  func.func @transform_3(%arg0: i32) -> (i32, i32, i32) {
    %c0_i32 = arith.constant 0 : i32
    %c0_i32_0 = arith.constant 0 : i32
    %c0_i32_1 = arith.constant 0 : i32
    %c0_i32_2 = arith.constant 0 : i32
    return %c0_i32, %c0_i32_0, %c0_i32_1 : i32, i32, i32
  }
  func.func @transform_4(%arg0: i32) -> (i32, i32, i32) {
    %c0_i32 = arith.constant 0 : i32
    %c0_i32_0 = arith.constant 0 : i32
    %c0_i32_1 = arith.constant 0 : i32
    %c0_i32_2 = arith.constant 0 : i32
    return %c0_i32, %c0_i32_0, %c0_i32_1 : i32, i32, i32
  }
  func.func @transform_5(%arg0: i32) -> (i32, i32, i32) {
    %c0_i32 = arith.constant 0 : i32
    %c0_i32_0 = arith.constant 0 : i32
    %c0_i32_1 = arith.constant 0 : i32
    %c0_i32_2 = arith.constant 0 : i32
    return %c0_i32, %c0_i32_0, %c0_i32_1 : i32, i32, i32
  }
  func.func @transform_6(%arg0: i32) -> (i32, i32, i32) {
    %c0_i32 = arith.constant 0 : i32
    %c0_i32_0 = arith.constant 0 : i32
    %c0_i32_1 = arith.constant 0 : i32
    %c0_i32_2 = arith.constant 0 : i32
    return %c0_i32, %c0_i32_0, %c0_i32_1 : i32, i32, i32
  }
  func.func @transform_7(%arg0: i32) -> (i32, i32, i32) {
    %c0_i32 = arith.constant 0 : i32
    %c0_i32_0 = arith.constant 0 : i32
    %c0_i32_1 = arith.constant 0 : i32
    %c0_i32_2 = arith.constant 0 : i32
    return %c0_i32, %c0_i32_0, %c0_i32_1 : i32, i32, i32
  }
  func.func @transform_8(%arg0: i32) -> (i32, i32, i32) {
    %c0_i32 = arith.constant 0 : i32
    %c0_i32_0 = arith.constant 0 : i32
    %c0_i32_1 = arith.constant 0 : i32
    %c0_i32_2 = arith.constant 0 : i32
    return %c0_i32, %c0_i32_0, %c0_i32_1 : i32, i32, i32
  }
  func.func @transform_9(%arg0: i32) -> (i32, i32, i32) {
    %c0_i32 = arith.constant 0 : i32
    %c0_i32_0 = arith.constant 0 : i32
    %c0_i32_1 = arith.constant 0 : i32
    %c0_i32_2 = arith.constant 0 : i32
    return %c0_i32, %c0_i32_0, %c0_i32_1 : i32, i32, i32
  }
  func.func @transform_10(%arg0: i32) -> (i32, i32) {
    %c0_i32 = arith.constant 0 : i32
    %c0_i32_0 = arith.constant 0 : i32
    %c0_i32_1 = arith.constant 0 : i32
    return %c0_i32, %c0_i32_0 : i32, i32
  }
  func.func @transform_11(%arg0: i32) -> (i32, i32, i32) {
    %c0_i32 = arith.constant 0 : i32
    %c0_i32_0 = arith.constant 0 : i32
    %c0_i32_1 = arith.constant 0 : i32
    return %arg0, %c0_i32, %c0_i32_0 : i32, i32, i32
  }
}

</mosaic_0001>

<llo_original>
// kernel: tpu_custom_call.1
$region0: #{tpu_custom_call.1}
  #allocation0 [shape = 'u32[]', space=smem, size = 0x4, offset = 0x4, fixed_abs, tag = 'smem constant byte address 0x4 - core index']
  #allocation1 [shape = 'u32[144,128]{1,0:T(1,128)}', space=vmem, size = 0x12000, scoped, tag = 'internal scratch']
  %s0 = inlined_call_operand.vmem [shape: f32[8,64,32], index: 0, kind: input, shape index: {}]
  %s1 = inlined_call_operand.vmem [shape: f32[8,64,32], index: 1, kind: input, shape index: {}]
  %s2 = inlined_call_operand.vmem [shape: f32[8,64,32], index: 2, kind: input, shape index: {}]
  %s3 = inlined_call_operand.vmem [shape: f32[2,32,16], index: 3, kind: input, shape index: {}]
  %s4 = inlined_call_operand.vmem [shape: f32[2,32,16], index: 4, kind: input, shape index: {}]
  %s5 = inlined_call_operand.vmem [shape: f32[2,32,16], index: 5, kind: input, shape index: {}]
  %s6 = inlined_call_operand.vmem [shape: f32[2,16,32], index: 6, kind: input, shape index: {}]
  %s7 = inlined_call_operand.vmem [shape: f32[2,1,16], index: 7, kind: input, shape index: {}]
  %s8 = inlined_call_operand.vmem [shape: f32[2,1,16], index: 8, kind: input, shape index: {}]
  %s9 = inlined_call_operand.vmem [shape: f32[2,1,16], index: 9, kind: input, shape index: {}]
  %s10 = inlined_call_operand.vmem [shape: f32[1,32], index: 10, kind: input, shape index: {}]
  %s11 = inlined_call_operand.vmem [shape: f32[8,64,32], index: 11, kind: output, shape index: {}]
  %s12 = sld [smem:[#allocation0]]
  $region77: #{tpu_custom_call.1} parent=0
    _
  %s14 = ssub.s32 1, %s12
  %s15 = scalar_select 0, %s14, %s12
  loop: start=0, step=1, limit=4
  $region2: #{tpu_custom_call.1} parent=0 // loop_pre_header
    _
  $region3: #{tpu_custom_call.1} parent=0 // loop_header
    %s17 = sphi 0, %s21
    %p18 = scmp.ge.s32.totalorder %s17, 4
    %s27 = sphi 0, %s29
    %s30 = sphi 0, %s27
    %s31 = sphi 0, %s30
    %s47 = sphi 0, %s31
    %s53 = sphi 0, %s55
    %s56 = sphi 0, %s53
    %s57 = sphi 0, %s56
    %s73 = sphi 0, %s57
    %s79 = sphi 0, %s81
    %s82 = sphi 0, %s79
    %s83 = sphi 0, %s82
    %s99 = sphi 0, %s83
    %s103 = sphi 0, %s103
    %s105 = sphi 0, %s103
    %s106 = sphi 0, %s105
    %s120 = sphi 0, %s106
    %s124 = sphi 0, %s124
    %s126 = sphi 0, %s124
    %s127 = sphi 0, %s126
    %s141 = sphi 0, %s127
    %s145 = sphi 0, %s145
    %s147 = sphi 0, %s145
    %s148 = sphi 0, %s147
    %s162 = sphi 0, %s148
    %s166 = sphi 0, %s166
    %s168 = sphi 0, %s166
    %s169 = sphi 0, %s168
    %s183 = sphi 0, %s169
    %s187 = sphi 0, %s187
    %s189 = sphi 0, %s187
    %s190 = sphi 0, %s189
    %s204 = sphi 0, %s190
    %s208 = sphi 0, %s208
    %s210 = sphi 0, %s208
    %s211 = sphi 0, %s210
    %s225 = sphi 0, %s211
    %s229 = sphi 0, %s229
    %s231 = sphi 0, %s229
    %s232 = sphi 0, %s231
    %s246 = sphi 0, %s232
    %s250 = sphi 0, %s250
    %s252 = sphi 0, %s250
    %s253 = sphi 0, %s252
    %s267 = sphi 0, %s253
    %s273 = sphi 0, %s275
    %s276 = sphi 0, %s273
    %s277 = sphi 0, %s276
    %s293 = sphi 0, %s277
  $region4: #{tpu_custom_call.1} parent=0 // loop_header_branch
    %20 = sbr.rel (%p18) target = $region8
  $region5: #{tpu_custom_call.1} parent=0 // loop_body
    %s22 = ssub.s32 %s17, 1
    %s23 = ssub.s32 %s17, 2
    %s24 = sadd.s32 %s17, 1
    %s25 = ssub.s32 %s17, %s24
    %p26 = scmp.eq.s32.totalorder %s25, 0
    %s28 = sadd.s32 %s27, 1
    %s29 = scalar_select %p26, %s27, %s28
    %p32 = pneg %p26
    %p33 = scmp.eq.s32.totalorder %s17, 1
    %p34 = por %p32, %p33
    %p35 = scmp.ne.s32.totalorder %s27, %s30
    %p36 = scmp.eq.s32.totalorder %s17, 0
    %p37 = por %p35, %p36
    %p38 = scmp.ne.s32.totalorder %s27, %s30
    %p39 = scmp.eq.s32.totalorder %s22, 1
    %p40 = por %p38, %p39
    %p41 = scmp.ne.s32.totalorder %s30, %s31
    %p42 = scmp.eq.s32.totalorder %s22, 0
    %p43 = por %p41, %p42
    %p44 = scmp.ne.s32.totalorder %s30, %s31
    %p45 = scmp.eq.s32.totalorder %s23, 1
    %p46 = por %p44, %p45
    %p48 = scmp.ne.s32.totalorder %s31, %s47
    %p49 = scmp.eq.s32.totalorder %s23, 0
    %p50 = por %p48, %p49
    %s51 = ssub.s32 %s17, %s24
    %p52 = scmp.eq.s32.totalorder %s51, 0
    %s54 = sadd.s32 %s53, 1
    %s55 = scalar_select %p52, %s53, %s54
    %p58 = pneg %p52
    %p59 = scmp.eq.s32.totalorder %s17, 1
    %p60 = por %p58, %p59
    %p61 = scmp.ne.s32.totalorder %s53, %s56
    %p62 = scmp.eq.s32.totalorder %s17, 0
    %p63 = por %p61, %p62
    %p64 = scmp.ne.s32.totalorder %s53, %s56
    %p65 = scmp.eq.s32.totalorder %s22, 1
    %p66 = por %p64, %p65
    %p67 = scmp.ne.s32.totalorder %s56, %s57
    %p68 = scmp.eq.s32.totalorder %s22, 0
    %p69 = por %p67, %p68
    %p70 = scmp.ne.s32.totalorder %s56, %s57
    %p71 = scmp.eq.s32.totalorder %s23, 1
    %p72 = por %p70, %p71
    %p74 = scmp.ne.s32.totalorder %s57, %s73
    %p75 = scmp.eq.s32.totalorder %s23, 0
    %p76 = por %p74, %p75
    %s77 = ssub.s32 %s17, %s24
    %p78 = scmp.eq.s32.totalorder %s77, 0
    %s80 = sadd.s32 %s79, 1
    %s81 = scalar_select %p78, %s79, %s80
    %p84 = pneg %p78
    %p85 = scmp.eq.s32.totalorder %s17, 1
    %p86 = por %p84, %p85
    %p87 = scmp.ne.s32.totalorder %s79, %s82
    %p88 = scmp.eq.s32.totalorder %s17, 0
    %p89 = por %p87, %p88
    %p90 = scmp.ne.s32.totalorder %s79, %s82
    %p91 = scmp.eq.s32.totalorder %s22, 1
    %p92 = por %p90, %p91
    %p93 = scmp.ne.s32.totalorder %s82, %s83
    %p94 = scmp.eq.s32.totalorder %s22, 0
    %p95 = por %p93, %p94
    %p96 = scmp.ne.s32.totalorder %s82, %s83
    %p97 = scmp.eq.s32.totalorder %s23, 1
    %p98 = por %p96, %p97
    %p100 = scmp.ne.s32.totalorder %s83, %s99
    %p101 = scmp.eq.s32.totalorder %s23, 0
    %p102 = por %p100, %p101
    %s104 = sadd.s32 %s103, 1
    %p107 = scmp.eq.s32.totalorder %s17, 1
    %p108 = scmp.ne.s32.totalorder %s103, %s105
    %p109 = scmp.eq.s32.totalorder %s17, 0
    %p110 = por %p108, %p109
    %p111 = scmp.ne.s32.totalorder %s103, %s105
    %p112 = scmp.eq.s32.totalorder %s22, 1
    %p113 = por %p111, %p112
    %p114 = scmp.ne.s32.totalorder %s105, %s106
    %p115 = scmp.eq.s32.totalorder %s22, 0
    %p116 = por %p114, %p115
    %p117 = scmp.ne.s32.totalorder %s105, %s106
    %p118 = scmp.eq.s32.totalorder %s23, 1
    %p119 = por %p117, %p118
    %p121 = scmp.ne.s32.totalorder %s106, %s120
    %p122 = scmp.eq.s32.totalorder %s23, 0
    %p123 = por %p121, %p122
    %s125 = sadd.s32 %s124, 1
    %p128 = scmp.eq.s32.totalorder %s17, 1
    %p129 = scmp.ne.s32.totalorder %s124, %s126
    %p130 = scmp.eq.s32.totalorder %s17, 0
    %p131 = por %p129, %p130
    %p132 = scmp.ne.s32.totalorder %s124, %s126
    %p133 = scmp.eq.s32.totalorder %s22, 1
    %p134 = por %p132, %p133
    %p135 = scmp.ne.s32.totalorder %s126, %s127
    %p136 = scmp.eq.s32.totalorder %s22, 0
    %p137 = por %p135, %p136
    %p138 = scmp.ne.s32.totalorder %s126, %s127
    %p139 = scmp.eq.s32.totalorder %s23, 1
    %p140 = por %p138, %p139
    %p142 = scmp.ne.s32.totalorder %s127, %s141
    %p143 = scmp.eq.s32.totalorder %s23, 0
    %p144 = por %p142, %p143
    %s146 = sadd.s32 %s145, 1
    %p149 = scmp.eq.s32.totalorder %s17, 1
    %p150 = scmp.ne.s32.totalorder %s145, %s147
    %p151 = scmp.eq.s32.totalorder %s17, 0
    %p152 = por %p150, %p151
    %p153 = scmp.ne.s32.totalorder %s145, %s147
    %p154 = scmp.eq.s32.totalorder %s22, 1
    %p155 = por %p153, %p154
    %p156 = scmp.ne.s32.totalorder %s147, %s148
    %p157 = scmp.eq.s32.totalorder %s22, 0
    %p158 = por %p156, %p157
    %p159 = scmp.ne.s32.totalorder %s147, %s148
    %p160 = scmp.eq.s32.totalorder %s23, 1
    %p161 = por %p159, %p160
    %p163 = scmp.ne.s32.totalorder %s148, %s162
    %p164 = scmp.eq.s32.totalorder %s23, 0
    %p165 = por %p163, %p164
    %s167 = sadd.s32 %s166, 1
    %p170 = scmp.eq.s32.totalorder %s17, 1
    %p171 = scmp.ne.s32.totalorder %s166, %s168
    %p172 = scmp.eq.s32.totalorder %s17, 0
    %p173 = por %p171, %p172
    %p174 = scmp.ne.s32.totalorder %s166, %s168
    %p175 = scmp.eq.s32.totalorder %s22, 1
    %p176 = por %p174, %p175
    %p177 = scmp.ne.s32.totalorder %s168, %s169
    %p178 = scmp.eq.s32.totalorder %s22, 0
    %p179 = por %p177, %p178
    %p180 = scmp.ne.s32.totalorder %s168, %s169
    %p181 = scmp.eq.s32.totalorder %s23, 1
    %p182 = por %p180, %p181
    %p184 = scmp.ne.s32.totalorder %s169, %s183
    %p185 = scmp.eq.s32.totalorder %s23, 0
    %p186 = por %p184, %p185
    %s188 = sadd.s32 %s187, 1
    %p191 = scmp.eq.s32.totalorder %s17, 1
    %p192 = scmp.ne.s32.totalorder %s187, %s189
    %p193 = scmp.eq.s32.totalorder %s17, 0
    %p194 = por %p192, %p193
    %p195 = scmp.ne.s32.totalorder %s187, %s189
    %p196 = scmp.eq.s32.totalorder %s22, 1
    %p197 = por %p195, %p196
    %p198 = scmp.ne.s32.totalorder %s189, %s190
    %p199 = scmp.eq.s32.totalorder %s22, 0
    %p200 = por %p198, %p199
    %p201 = scmp.ne.s32.totalorder %s189, %s190
    %p202 = scmp.eq.s32.totalorder %s23, 1
    %p203 = por %p201, %p202
    %p205 = scmp.ne.s32.totalorder %s190, %s204
    %p206 = scmp.eq.s32.totalorder %s23, 0
    %p207 = por %p205, %p206
    %s209 = sadd.s32 %s208, 1
    %p212 = scmp.eq.s32.totalorder %s17, 1
    %p213 = scmp.ne.s32.totalorder %s208, %s210
    %p214 = scmp.eq.s32.totalorder %s17, 0
    %p215 = por %p213, %p214
    %p216 = scmp.ne.s32.totalorder %s208, %s210
    %p217 = scmp.eq.s32.totalorder %s22, 1
    %p218 = por %p216, %p217
    %p219 = scmp.ne.s32.totalorder %s210, %s211
    %p220 = scmp.eq.s32.totalorder %s22, 0
    %p221 = por %p219, %p220
    %p222 = scmp.ne.s32.totalorder %s210, %s211
    %p223 = scmp.eq.s32.totalorder %s23, 1
    %p224 = por %p222, %p223
    %p226 = scmp.ne.s32.totalorder %s211, %s225
    %p227 = scmp.eq.s32.totalorder %s23, 0
    %p228 = por %p226, %p227
    %s230 = sadd.s32 %s229, 1
    %p233 = scmp.eq.s32.totalorder %s17, 1
    %p234 = scmp.ne.s32.totalorder %s229, %s231
    %p235 = scmp.eq.s32.totalorder %s17, 0
    %p236 = por %p234, %p235
    %p237 = scmp.ne.s32.totalorder %s229, %s231
    %p238 = scmp.eq.s32.totalorder %s22, 1
    %p239 = por %p237, %p238
    %p240 = scmp.ne.s32.totalorder %s231, %s232
    %p241 = scmp.eq.s32.totalorder %s22, 0
    %p242 = por %p240, %p241
    %p243 = scmp.ne.s32.totalorder %s231, %s232
    %p244 = scmp.eq.s32.totalorder %s23, 1
    %p245 = por %p243, %p244
    %p247 = scmp.ne.s32.totalorder %s232, %s246
    %p248 = scmp.eq.s32.totalorder %s23, 0
    %p249 = por %p247, %p248
    %s251 = sadd.s32 %s250, 1
    %p254 = scmp.eq.s32.totalorder %s17, 1
    %p255 = scmp.ne.s32.totalorder %s250, %s252
    %p256 = scmp.eq.s32.totalorder %s17, 0
    %p257 = por %p255, %p256
    %p258 = scmp.ne.s32.totalorder %s250, %s252
    %p259 = scmp.eq.s32.totalorder %s22, 1
    %p260 = por %p258, %p259
    %p261 = scmp.ne.s32.totalorder %s252, %s253
    %p262 = scmp.eq.s32.totalorder %s22, 0
    %p263 = por %p261, %p262
    %p264 = scmp.ne.s32.totalorder %s252, %s253
    %p265 = scmp.eq.s32.totalorder %s23, 1
    %p266 = por %p264, %p265
    %p268 = scmp.ne.s32.totalorder %s253, %s267
    %p269 = scmp.eq.s32.totalorder %s23, 0
    %p270 = por %p268, %p269
    %s271 = ssub.s32 %s17, %s24
    %p272 = scmp.eq.s32.totalorder %s271, 0
    %s274 = sadd.s32 %s273, 1
    %s275 = scalar_select %p272, %s273, %s274
    %p278 = pneg %p272
    %p279 = scmp.eq.s32.totalorder %s17, 1
    %p280 = por %p278, %p279
    %p281 = scmp.ne.s32.totalorder %s273, %s276
    %p282 = scmp.eq.s32.totalorder %s17, 0
    %p283 = por %p281, %p282
    %p284 = scmp.ne.s32.totalorder %s273, %s276
    %p285 = scmp.eq.s32.totalorder %s22, 1
    %p286 = por %p284, %p285
    %p287 = scmp.ne.s32.totalorder %s276, %s277
    %p288 = scmp.eq.s32.totalorder %s22, 0
    %p289 = por %p287, %p288
    %p290 = scmp.ne.s32.totalorder %s276, %s277
    %p291 = scmp.eq.s32.totalorder %s23, 1
    %p292 = por %p290, %p291
    %p294 = scmp.ne.s32.totalorder %s277, %s293
    %p295 = scmp.eq.s32.totalorder %s23, 0
    %p296 = por %p294, %p295
    %p297 = scmp.le.s32.totalorder 1, %s17
    %p298 = scmp.lt.s32.totalorder %s17, 3
    %p299 = pnand %p297, %p298
    %p300 = pneg %p299
    // Predicated region
    $region9: #{tpu_custom_call.1} parent=5 // pred_check
      _
    $region10: #{tpu_custom_call.1} parent=5 // pred_check_branch
      %302 = sbr.rel (%p299) target = $region12
    $region11: #{tpu_custom_call.1} parent=5 // pred_region
      %s303 = ssub.s32 %s17, 1
      // Predicated region
      $region13: #{tpu_custom_call.1} parent=11 // pred_check
        %p304 = pneg %p116
      $region14: #{tpu_custom_call.1} parent=11 // pred_check_branch
        %306 = sbr.rel (%p304) target = $region16
      $region15: #{tpu_custom_call.1} parent=11 // pred_region
        _
      $region16: #{tpu_custom_call.1} parent=11 // pred_fallthru
        _
      // Predicated region
      $region17: #{tpu_custom_call.1} parent=11 // pred_check
        %p307 = pneg %p137
      $region18: #{tpu_custom_call.1} parent=11 // pred_check_branch
        %309 = sbr.rel (%p307) target = $region20
      $region19: #{tpu_custom_call.1} parent=11 // pred_region
        _
      $region20: #{tpu_custom_call.1} parent=11 // pred_fallthru
        _
      // Predicated region
      $region21: #{tpu_custom_call.1} parent=11 // pred_check
        %p310 = pneg %p158
      $region22: #{tpu_custom_call.1} parent=11 // pred_check_branch
        %312 = sbr.rel (%p310) target = $region24
      $region23: #{tpu_custom_call.1} parent=11 // pred_region
        _
      $region24: #{tpu_custom_call.1} parent=11 // pred_fallthru
        _
      // Predicated region
      $region25: #{tpu_custom_call.1} parent=11 // pred_check
        %p313 = pneg %p179
      $region26: #{tpu_custom_call.1} parent=11 // pred_check_branch
        %315 = sbr.rel (%p313) target = $region28
      $region27: #{tpu_custom_call.1} parent=11 // pred_region
        _
      $region28: #{tpu_custom_call.1} parent=11 // pred_fallthru
        _
      // Predicated region
      $region29: #{tpu_custom_call.1} parent=11 // pred_check
        %p316 = pneg %p200
      $region30: #{tpu_custom_call.1} parent=11 // pred_check_branch
        %318 = sbr.rel (%p316) target = $region32
      $region31: #{tpu_custom_call.1} parent=11 // pred_region
        _
      $region32: #{tpu_custom_call.1} parent=11 // pred_fallthru
        _
      // Predicated region
      $region33: #{tpu_custom_call.1} parent=11 // pred_check
        %p319 = pneg %p221
      $region34: #{tpu_custom_call.1} parent=11 // pred_check_branch
        %321 = sbr.rel (%p319) target = $region36
      $region35: #{tpu_custom_call.1} parent=11 // pred_region
        _
      $region36: #{tpu_custom_call.1} parent=11 // pred_fallthru
        _
      // Predicated region
      $region37: #{tpu_custom_call.1} parent=11 // pred_check
        %p322 = pneg %p242
      $region38: #{tpu_custom_call.1} parent=11 // pred_check_branch
        %324 = sbr.rel (%p322) target = $region40
      $region39: #{tpu_custom_call.1} parent=11 // pred_region
        _
      $region40: #{tpu_custom_call.1} parent=11 // pred_fallthru
        _
      // Predicated region
      $region41: #{tpu_custom_call.1} parent=11 // pred_check
        %p325 = pneg %p263
      $region42: #{tpu_custom_call.1} parent=11 // pred_check_branch
        %327 = sbr.rel (%p325) target = $region44
      $region43: #{tpu_custom_call.1} parent=11 // pred_region
        _
      $region44: #{tpu_custom_call.1} parent=11 // pred_fallthru
        _
    $region12: #{tpu_custom_call.1} parent=5 // pred_fallthru
      _
    %p328 = scmp.lt.s32.totalorder %s17, 2
    // Predicated region
    $region45: #{tpu_custom_call.1} parent=5 // pred_check
      %p329 = pneg %p328
    $region46: #{tpu_custom_call.1} parent=5 // pred_check_branch
      %331 = sbr.rel (%p329) target = $region48
    $region47: #{tpu_custom_call.1} parent=5 // pred_region
      // Predicated region
      $region49: #{tpu_custom_call.1} parent=47 // pred_check
        %p332 = pneg %p37
      $region50: #{tpu_custom_call.1} parent=47 // pred_check_branch
        %334 = sbr.rel (%p332) target = $region52
      $region51: #{tpu_custom_call.1} parent=47 // pred_region
        %s335 = smul.u32 4, %s17
        %p336 = scmp.lt.s32.totalorder %s335, 7
        %s337 = scalar_select %p336, %s335, 7
        %s338 = smul.addr %s337, 8
        %s339 = smul.addr %s338, 8
        %s340 = scalar_lea.vmem %s0, %s339
        %s341 = smul.u32 4, %s17
      $region52: #{tpu_custom_call.1} parent=47 // pred_fallthru
        _
      // Predicated region
      $region53: #{tpu_custom_call.1} parent=47 // pred_check
        %p342 = pneg %p63
      $region54: #{tpu_custom_call.1} parent=47 // pred_check_branch
        %344 = sbr.rel (%p342) target = $region56
      $region55: #{tpu_custom_call.1} parent=47 // pred_region
        %s345 = smul.u32 4, %s17
        %p346 = scmp.lt.s32.totalorder %s345, 7
        %s347 = scalar_select %p346, %s345, 7
        %s348 = smul.addr %s347, 8
        %s349 = smul.addr %s348, 8
        %s350 = scalar_lea.vmem %s1, %s349
        %s351 = smul.u32 4, %s17
      $region56: #{tpu_custom_call.1} parent=47 // pred_fallthru
        _
      // Predicated region
      $region57: #{tpu_custom_call.1} parent=47 // pred_check
        %p352 = pneg %p89
      $region58: #{tpu_custom_call.1} parent=47 // pred_check_branch
        %354 = sbr.rel (%p352) target = $region60
      $region59: #{tpu_custom_call.1} parent=47 // pred_region
        %s355 = smul.u32 4, %s17
        %p356 = scmp.lt.s32.totalorder %s355, 7
        %s357 = scalar_select %p356, %s355, 7
        %s358 = smul.addr %s357, 8
        %s359 = smul.addr %s358, 8
        %s360 = scalar_lea.vmem %s2, %s359
        %s361 = smul.u32 4, %s17
      $region60: #{tpu_custom_call.1} parent=47 // pred_fallthru
        _
    $region48: #{tpu_custom_call.1} parent=5 // pred_fallthru
      _
    %p362 = scmp.le.s32.totalorder 1, %s17
    %p363 = scmp.lt.s32.totalorder %s17, 3
    %p364 = pnand %p362, %p363
    %p365 = pneg %p364
    // Predicated region
    $region61: #{tpu_custom_call.1} parent=5 // pred_check
      _
    $region62: #{tpu_custom_call.1} parent=5 // pred_check_branch
      %367 = sbr.rel (%p364) target = $region64
    $region63: #{tpu_custom_call.1} parent=5 // pred_region
      %s368 = ssub.s32 %s17, 1
      %s369 = smul.u32 4, %s22
      %p370 = scmp.lt.s32.totalorder %s369, 7
      %s371 = scalar_select %p370, %s369, 7
      %s372 = smul.addr %s371, 8
      %s373 = smul.addr %s372, 8
      %s374 = scalar_lea.vmem %s0, %s373
      %p375 = pneg %p43
      %p376 = pneg %p40
      %s377 = smul.u32 4, %s22
      %p378 = scmp.lt.s32.totalorder %s377, 7
      %s379 = scalar_select %p378, %s377, 7
      %s380 = smul.addr %s379, 8
      %s381 = smul.addr %s380, 8
      %s382 = scalar_lea.vmem %s1, %s381
      %p383 = pneg %p69
      %p384 = pneg %p66
      %s385 = smul.u32 4, %s22
      %p386 = scmp.lt.s32.totalorder %s385, 7
      %s387 = scalar_select %p386, %s385, 7
      %s388 = smul.addr %s387, 8
      %s389 = smul.addr %s388, 8
      %s390 = scalar_lea.vmem %s2, %s389
      %p391 = pneg %p95
      %p392 = pneg %p92
      %p393 = pneg %p116
      %p394 = pneg %p113
      %p395 = pneg %p137
      %p396 = pneg %p134
      %p397 = pneg %p158
      %p398 = pneg %p155
      %p399 = pneg %p179
      %p400 = pneg %p176
      %p401 = pneg %p200
      %p402 = pneg %p197
      %p403 = pneg %p221
      %p404 = pneg %p218
      %p405 = pneg %p242
      %p406 = pneg %p239
      %p407 = pneg %p263
      %p408 = pneg %p260
      %p409 = pneg %p289
      %p410 = pneg %p286
      %s411 = smul.u32 4, %s22
      %p412 = scmp.lt.s32.totalorder %s411, 7
      %s413 = scalar_select %p412, %s411, 7
      %s414 = smul.addr %s413, 8
      %s415 = smul.addr %s414, 8
      %s416 = scalar_lea.vmem %s11, %s415
      %s417 = smul.u32 4, %s22
      %p418 = scmp.lt.s32.totalorder %s417, 7
      %s419 = scalar_select %p418, %s417, 7
      %s420 = smul.addr %s419, 8
      %s421 = smul.addr %s420, 8
      %s422 = scalar_lea.vmem %s0, %s421
      %s423 = smul.u32 4, %s22
      %s424 = smul.u32 4, %s22
      %p425 = scmp.lt.s32.totalorder %s424, 7
      %s426 = scalar_select %p425, %s424, 7
      %s427 = smul.addr %s426, 8
      %s428 = smul.addr %s427, 8
      %s429 = scalar_lea.vmem %s1, %s428
      %s430 = smul.u32 4, %s22
      %s431 = smul.u32 4, %s22
      %p432 = scmp.lt.s32.totalorder %s431, 7
      %s433 = scalar_select %p432, %s431, 7
      %s434 = smul.addr %s433, 8
      %s435 = smul.addr %s434, 8
      %s436 = scalar_lea.vmem %s2, %s435
      %s437 = smul.u32 4, %s22
      %s438 = smul.u32 4, %s22
      %p439 = scmp.lt.s32.totalorder %s438, 7
      %s440 = scalar_select %p439, %s438, 7
      %s441 = smul.addr %s440, 8
      %s442 = smul.addr %s441, 8
      %s443 = scalar_lea.vmem %s11, %s442
      %s444 = smul.u32 4, %s22
      %v445 = vld [vmem:[%s422] sm:$0xff]
      %v446 = vld [vmem:[%s422 + $0x8] sm:$0xff]
      %v447 = vld [vmem:[%s422 + $0x10] sm:$0xff]
      %v448 = vld [vmem:[%s422 + $0x18] sm:$0xff]
      %v449 = vld [vmem:[%s422 + $0x20] sm:$0xff]
      %v450 = vld [vmem:[%s422 + $0x28] sm:$0xff]
      %v451 = vld [vmem:[%s422 + $0x30] sm:$0xff]
      %v452 = vld [vmem:[%s422 + $0x38] sm:$0xff]
      %v453 = vld [vmem:[%s422 + $0x40] sm:$0xff]
      %v454 = vld [vmem:[%s422 + $0x48] sm:$0xff]
      %v455 = vld [vmem:[%s422 + $0x50] sm:$0xff]
      %v456 = vld [vmem:[%s422 + $0x58] sm:$0xff]
      %v457 = vld [vmem:[%s422 + $0x60] sm:$0xff]
      %v458 = vld [vmem:[%s422 + $0x68] sm:$0xff]
      %v459 = vld [vmem:[%s422 + $0x70] sm:$0xff]
      %v460 = vld [vmem:[%s422 + $0x78] sm:$0xff]
      %v461 = vld [vmem:[%s422 + $0x80] sm:$0xff]
      %v462 = vld [vmem:[%s422 + $0x88] sm:$0xff]
      %v463 = vld [vmem:[%s422 + $0x90] sm:$0xff]
      %v464 = vld [vmem:[%s422 + $0x98] sm:$0xff]
      %v465 = vld [vmem:[%s422 + $0xa0] sm:$0xff]
      %v466 = vld [vmem:[%s422 + $0xa8] sm:$0xff]
      %v467 = vld [vmem:[%s422 + $0xb0] sm:$0xff]
      %v468 = vld [vmem:[%s422 + $0xb8] sm:$0xff]
      %v469 = vld [vmem:[%s422 + $0xc0] sm:$0xff]
      %v470 = vld [vmem:[%s422 + $0xc8] sm:$0xff]
      %v471 = vld [vmem:[%s422 + $0xd0] sm:$0xff]
      %v472 = vld [vmem:[%s422 + $0xd8] sm:$0xff]
      %v473 = vld [vmem:[%s422 + $0xe0] sm:$0xff]
      %v474 = vld [vmem:[%s422 + $0xe8] sm:$0xff]
      %v475 = vld [vmem:[%s422 + $0xf0] sm:$0xff]
      %v476 = vld [vmem:[%s422 + $0xf8] sm:$0xff]
      %v477 = vld [vmem:[%s429] sm:$0xff]
      %v478 = vld [vmem:[%s429 + $0x8] sm:$0xff]
      %v479 = vld [vmem:[%s429 + $0x10] sm:$0xff]
      %v480 = vld [vmem:[%s429 + $0x18] sm:$0xff]
      %v481 = vld [vmem:[%s429 + $0x20] sm:$0xff]
      %v482 = vld [vmem:[%s429 + $0x28] sm:$0xff]
      %v483 = vld [vmem:[%s429 + $0x30] sm:$0xff]
      %v484 = vld [vmem:[%s429 + $0x38] sm:$0xff]
      %v485 = vld [vmem:[%s429 + $0x40] sm:$0xff]
      %v486 = vld [vmem:[%s429 + $0x48] sm:$0xff]
      %v487 = vld [vmem:[%s429 + $0x50] sm:$0xff]
      %v488 = vld [vmem:[%s429 + $0x58] sm:$0xff]
      %v489 = vld [vmem:[%s429 + $0x60] sm:$0xff]
      %v490 = vld [vmem:[%s429 + $0x68] sm:$0xff]
      %v491 = vld [vmem:[%s429 + $0x70] sm:$0xff]
      %v492 = vld [vmem:[%s429 + $0x78] sm:$0xff]
      %v493 = vld [vmem:[%s429 + $0x80] sm:$0xff]
      %v494 = vld [vmem:[%s429 + $0x88] sm:$0xff]
      %v495 = vld [vmem:[%s429 + $0x90] sm:$0xff]
      %v496 = vld [vmem:[%s429 + $0x98] sm:$0xff]
      %v497 = vld [vmem:[%s429 + $0xa0] sm:$0xff]
      %v498 = vld [vmem:[%s429 + $0xa8] sm:$0xff]
      %v499 = vld [vmem:[%s429 + $0xb0] sm:$0xff]
      %v500 = vld [vmem:[%s429 + $0xb8] sm:$0xff]
      %v501 = vld [vmem:[%s429 + $0xc0] sm:$0xff]
      %v502 = vld [vmem:[%s429 + $0xc8] sm:$0xff]
      %v503 = vld [vmem:[%s429 + $0xd0] sm:$0xff]
      %v504 = vld [vmem:[%s429 + $0xd8] sm:$0xff]
      %v505 = vld [vmem:[%s429 + $0xe0] sm:$0xff]
      %v506 = vld [vmem:[%s429 + $0xe8] sm:$0xff]
      %v507 = vld [vmem:[%s429 + $0xf0] sm:$0xff]
      %v508 = vld [vmem:[%s429 + $0xf8] sm:$0xff]
      %v509 = vld [vmem:[%s436] sm:$0xff]
      %v510 = vld [vmem:[%s436 + $0x8] sm:$0xff]
      %v511 = vld [vmem:[%s436 + $0x10] sm:$0xff]
      %v512 = vld [vmem:[%s436 + $0x18] sm:$0xff]
      %v513 = vld [vmem:[%s436 + $0x20] sm:$0xff]
      %v514 = vld [vmem:[%s436 + $0x28] sm:$0xff]
      %v515 = vld [vmem:[%s436 + $0x30] sm:$0xff]
      %v516 = vld [vmem:[%s436 + $0x38] sm:$0xff]
      %v517 = vld [vmem:[%s436 + $0x40] sm:$0xff]
      %v518 = vld [vmem:[%s436 + $0x48] sm:$0xff]
      %v519 = vld [vmem:[%s436 + $0x50] sm:$0xff]
      %v520 = vld [vmem:[%s436 + $0x58] sm:$0xff]
      %v521 = vld [vmem:[%s436 + $0x60] sm:$0xff]
      %v522 = vld [vmem:[%s436 + $0x68] sm:$0xff]
      %v523 = vld [vmem:[%s436 + $0x70] sm:$0xff]
      %v524 = vld [vmem:[%s436 + $0x78] sm:$0xff]
      %v525 = vld [vmem:[%s436 + $0x80] sm:$0xff]
      %v526 = vld [vmem:[%s436 + $0x88] sm:$0xff]
      %v527 = vld [vmem:[%s436 + $0x90] sm:$0xff]
      %v528 = vld [vmem:[%s436 + $0x98] sm:$0xff]
      %v529 = vld [vmem:[%s436 + $0xa0] sm:$0xff]
      %v530 = vld [vmem:[%s436 + $0xa8] sm:$0xff]
      %v531 = vld [vmem:[%s436 + $0xb0] sm:$0xff]
      %v532 = vld [vmem:[%s436 + $0xb8] sm:$0xff]
      %v533 = vld [vmem:[%s436 + $0xc0] sm:$0xff]
      %v534 = vld [vmem:[%s436 + $0xc8] sm:$0xff]
      %v535 = vld [vmem:[%s436 + $0xd0] sm:$0xff]
      %v536 = vld [vmem:[%s436 + $0xd8] sm:$0xff]
      %v537 = vld [vmem:[%s436 + $0xe0] sm:$0xff]
      %v538 = vld [vmem:[%s436 + $0xe8] sm:$0xff]
      %v539 = vld [vmem:[%s436 + $0xf0] sm:$0xff]
      %v540 = vld [vmem:[%s436 + $0xf8] sm:$0xff]
      %v541 = vld [vmem:[%s5] sm:$0xff]
      %v542 = vld [vmem:[%s5 + $0x8] sm:$0xff]
      %v543 = vld [vmem:[%s5 + $0x10] sm:$0xff]
      %v544 = vld [vmem:[%s5 + $0x18] sm:$0xff]
      %v545 = vld [vmem:[%s9] sm:$0x1]
      %v547 = vlaneseq
      %v548 = vshrl.u32 %v547, 7
      %v549 = vsub.s32 0, %v548
      %v550 = vrot.slane %v545, %v549
      %vm552 = vcmask 261120
      %v554 = vsel %vm552, %v509, 0
      %v557 = vsel %vm552, %v510, 0
      %v560 = vsel %vm552, %v511, 0
      %v563 = vsel %vm552, %v512, 0
      %v566 = vsel %vm552, %v513, 0
      %v569 = vsel %vm552, %v514, 0
      %v572 = vsel %vm552, %v515, 0
      %v575 = vsel %vm552, %v516, 0
      %v578 = vsel %vm552, %v517, 0
      %v581 = vsel %vm552, %v518, 0
      %v584 = vsel %vm552, %v519, 0
      %v587 = vsel %vm552, %v520, 0
      %v590 = vsel %vm552, %v521, 0
      %v593 = vsel %vm552, %v522, 0
      %v596 = vsel %vm552, %v523, 0
      %v599 = vsel %vm552, %v524, 0
      %v602 = vsel %vm552, %v525, 0
      %v605 = vsel %vm552, %v526, 0
      %v608 = vsel %vm552, %v527, 0
      %v611 = vsel %vm552, %v528, 0
      %v614 = vsel %vm552, %v529, 0
      %v617 = vsel %vm552, %v530, 0
      %v620 = vsel %vm552, %v531, 0
      %v623 = vsel %vm552, %v532, 0
      %v626 = vsel %vm552, %v533, 0
      %v629 = vsel %vm552, %v534, 0
      %v632 = vsel %vm552, %v535, 0
      %v635 = vsel %vm552, %v536, 0
      %v638 = vsel %vm552, %v537, 0
      %v641 = vsel %vm552, %v538, 0
      %v644 = vsel %vm552, %v539, 0
      %v647 = vsel %vm552, %v540, 0
      %649 = vmatprep.subr.mxu0 0.0
      %650 = vmatpush1.msra.mxu0 %v541
      %651 = vmatprep.subr.mxu0 0.0
      %652 = vmatpush1.msra.mxu0 %v542
      %653 = vmatprep.subr.mxu0 0.0
      %654 = vmatpush1.msra.mxu0 %v543
      %655 = vmatprep.subr.mxu0 0.0
      %656 = vmatpush1.msra.mxu0 %v544
      %657 = vmatprep.subr.mxu0 0.0
      %658 = vmatpush1.msra.mxu0 0.0
      %659 = vmatprep.subr.mxu0 0.0
      %660 = vmatpush1.msra.mxu0 0.0
      %661 = vmatprep.subr.mxu0 0.0
      %662 = vmatpush1.msra.mxu0 0.0
      %663 = vmatprep.subr.mxu0 0.0
      %664 = vmatpush1.msra.mxu0 0.0
      %665 = vmatprep.subr.mxu0 0.0
      %666 = vmatpush1.msra.mxu0 0.0
      %667 = vmatprep.subr.mxu0 0.0
      %668 = vmatpush1.msra.mxu0 0.0
      %669 = vmatprep.subr.mxu0 0.0
      %670 = vmatpush1.msra.mxu0 0.0
      %671 = vmatprep.subr.mxu0 0.0
      %672 = vmatpush1.msra.mxu0 0.0
      %673 = vmatprep.subr.mxu0 0.0
      %674 = vmatpush1.msra.mxu0 0.0
      %675 = vmatprep.subr.mxu0 0.0
      %676 = vmatpush1.msra.mxu0 0.0
      %677 = vmatprep.subr.mxu0 0.0
      %678 = vmatpush1.msra.mxu0 0.0
      %679 = vmatprep.subr.mxu0 0.0
      %680 = vmatpush1.msra.mxu0 0.0
      %681 = vmatprep.subr.mxu0 0.0
      %682 = vmatpush1.msra.mxu0 0.0
      %683 = vmatprep.subr.mxu0 0.0
      %684 = vmatpush1.msra.mxu0 0.0
      %685 = vmatprep.subr.mxu0 0.0
      %686 = vmatpush1.msra.mxu0 0.0
      %687 = vmatprep.subr.mxu0 0.0
      %688 = vmatpush1.msra.mxu0 0.0
      %689 = vmatprep.subr.mxu0 0.0
      %690 = vmatpush1.msra.mxu0 0.0
      %691 = vmatprep.subr.mxu0 0.0
      %692 = vmatpush1.msra.mxu0 0.0
      %693 = vmatprep.subr.mxu0 0.0
      %694 = vmatpush1.msra.mxu0 0.0
      %695 = vmatprep.subr.mxu0 0.0
      %696 = vmatpush1.msra.mxu0 0.0
      %697 = vmatprep.subr.mxu0 0.0
      %698 = vmatpush1.msra.mxu0 0.0
      %699 = vmatprep.subr.mxu0 0.0
      %700 = vmatpush1.msra.mxu0 0.0
      %701 = vmatprep.subr.mxu0 0.0
      %702 = vmatpush1.msra.mxu0 0.0
      %703 = vmatprep.subr.mxu0 0.0
      %704 = vmatpush1.msra.mxu0 0.0
      %705 = vmatprep.subr.mxu0 0.0
      %706 = vmatpush1.msra.mxu0 0.0
      %707 = vmatprep.subr.mxu0 0.0
      %708 = vmatpush1.msra.mxu0 0.0
      %709 = vmatprep.subr.mxu0 0.0
      %710 = vmatpush1.msra.mxu0 0.0
      %711 = vmatprep.subr.mxu0 0.0
      %712 = vmatpush1.msra.mxu0 0.0
      %713 = vmatprep.mubr.f32.mxu0 0.0
      %714 = vmatmul.mubr.f32.gmra.mrb[0].mxu0 %v554
      %v715 = vpop.f32.mrb[0].mxu0
      %v716 = vadd.f32 %v550, %v715
      %v717 = vpop.f32.mrb[0].mxu0
      %718 = vmatprep.mubr.f32.mxu0 0.0
      %719 = vmatmul.mubr.f32.gmra.mrb[0].mxu0 %v557
      %v720 = vpop.f32.mrb[0].mxu0
      %v721 = vadd.f32 %v550, %v720
      %v722 = vpop.f32.mrb[0].mxu0
      %723 = vmatprep.mubr.f32.mxu0 0.0
      %724 = vmatmul.mubr.f32.gmra.mrb[0].mxu0 %v560
      %v725 = vpop.f32.mrb[0].mxu0
      %v726 = vadd.f32 %v550, %v725
      %v727 = vpop.f32.mrb[0].mxu0
      %728 = vmatprep.mubr.f32.mxu0 0.0
      %729 = vmatmul.mubr.f32.gmra.mrb[0].mxu0 %v563
      %v730 = vpop.f32.mrb[0].mxu0
      %v731 = vadd.f32 %v550, %v730
      %v732 = vpop.f32.mrb[0].mxu0
      %733 = vmatprep.mubr.f32.mxu0 0.0
      %734 = vmatmul.mubr.f32.gmra.mrb[0].mxu0 %v566
      %v735 = vpop.f32.mrb[0].mxu0
      %v736 = vadd.f32 %v550, %v735
      %v737 = vpop.f32.mrb[0].mxu0
      %738 = vmatprep.mubr.f32.mxu0 0.0
      %739 = vmatmul.mubr.f32.gmra.mrb[0].mxu0 %v569
      %v740 = vpop.f32.mrb[0].mxu0
      %v741 = vadd.f32 %v550, %v740
      %v742 = vpop.f32.mrb[0].mxu0
      %743 = vmatprep.mubr.f32.mxu0 0.0
      %744 = vmatmul.mubr.f32.gmra.mrb[0].mxu0 %v572
      %v745 = vpop.f32.mrb[0].mxu0
      %v746 = vadd.f32 %v550, %v745
      %v747 = vpop.f32.mrb[0].mxu0
      %748 = vmatprep.mubr.f32.mxu0 0.0
      %749 = vmatmul.mubr.f32.gmra.mrb[0].mxu0 %v575
      %v750 = vpop.f32.mrb[0].mxu0
      %v751 = vadd.f32 %v550, %v750
      %v752 = vpop.f32.mrb[0].mxu0
      %753 = vmatprep.mubr.f32.mxu0 0.0
      %754 = vmatmul.mubr.f32.gmra.mrb[0].mxu0 %v578
      %v755 = vpop.f32.mrb[0].mxu0
      %v756 = vadd.f32 %v550, %v755
      %v757 = vpop.f32.mrb[0].mxu0
      %758 = vmatprep.mubr.f32.mxu0 0.0
      %759 = vmatmul.mubr.f32.gmra.mrb[0].mxu0 %v581
      %v760 = vpop.f32.mrb[0].mxu0
      %v761 = vadd.f32 %v550, %v760
      %v762 = vpop.f32.mrb[0].mxu0
      %763 = vmatprep.mubr.f32.mxu0 0.0
      %764 = vmatmul.mubr.f32.gmra.mrb[0].mxu0 %v584
      %v765 = vpop.f32.mrb[0].mxu0
      %v766 = vadd.f32 %v550, %v765
      %v767 = vpop.f32.mrb[0].mxu0
      %768 = vmatprep.mubr.f32.mxu0 0.0
      %769 = vmatmul.mubr.f32.gmra.mrb[0].mxu0 %v587
      %v770 = vpop.f32.mrb[0].mxu0
      %v771 = vadd.f32 %v550, %v770
      %v772 = vpop.f32.mrb[0].mxu0
      %773 = vmatprep.mubr.f32.mxu0 0.0
      %774 = vmatmul.mubr.f32.gmra.mrb[0].mxu0 %v590
      %v775 = vpop.f32.mrb[0].mxu0
      %v776 = vadd.f32 %v550, %v775
      %v777 = vpop.f32.mrb[0].mxu0
      %778 = vmatprep.mubr.f32.mxu0 0.0
      %779 = vmatmul.mubr.f32.gmra.mrb[0].mxu0 %v593
      %v780 = vpop.f32.mrb[0].mxu0
      %v781 = vadd.f32 %v550, %v780
      %v782 = vpop.f32.mrb[0].mxu0
      %783 = vmatprep.mubr.f32.mxu0 0.0
      %784 = vmatmul.mubr.f32.gmra.mrb[0].mxu0 %v596
      %v785 = vpop.f32.mrb[0].mxu0
      %v786 = vadd.f32 %v550, %v785
      %v787 = vpop.f32.mrb[0].mxu0
      %788 = vmatprep.mubr.f32.mxu0 0.0
      %789 = vmatmul.mubr.f32.gmra.mrb[0].mxu0 %v599
      %v790 = vpop.f32.mrb[0].mxu0
      %v791 = vadd.f32 %v550, %v790
      %v792 = vpop.f32.mrb[0].mxu0
      %793 = vmatprep.mubr.f32.mxu0 0.0
      %794 = vmatmul.mubr.f32.gmra.mrb[0].mxu0 %v602
      %v795 = vpop.f32.mrb[0].mxu0
      %v796 = vadd.f32 %v550, %v795
      %v797 = vpop.f32.mrb[0].mxu0
      %798 = vmatprep.mubr.f32.mxu0 0.0
      %799 = vmatmul.mubr.f32.gmra.mrb[0].mxu0 %v605
      %v800 = vpop.f32.mrb[0].mxu0
      %v801 = vadd.f32 %v550, %v800
      %v802 = vpop.f32.mrb[0].mxu0
      %803 = vmatprep.mubr.f32.mxu0 0.0
      %804 = vmatmul.mubr.f32.gmra.mrb[0].mxu0 %v608
      %v805 = vpop.f32.mrb[0].mxu0
      %v806 = vadd.f32 %v550, %v805
      %v807 = vpop.f32.mrb[0].mxu0
      %808 = vmatprep.mubr.f32.mxu0 0.0
      %809 = vmatmul.mubr.f32.gmra.mrb[0].mxu0 %v611
      %v810 = vpop.f32.mrb[0].mxu0
      %v811 = vadd.f32 %v550, %v810
      %v812 = vpop.f32.mrb[0].mxu0
      %813 = vmatprep.mubr.f32.mxu0 0.0
      %814 = vmatmul.mubr.f32.gmra.mrb[0].mxu0 %v614
      %v815 = vpop.f32.mrb[0].mxu0
      %v816 = vadd.f32 %v550, %v815
      %v817 = vpop.f32.mrb[0].mxu0
      %818 = vmatprep.mubr.f32.mxu0 0.0
      %819 = vmatmul.mubr.f32.gmra.mrb[0].mxu0 %v617
      %v820 = vpop.f32.mrb[0].mxu0
      %v821 = vadd.f32 %v550, %v820
      %v822 = vpop.f32.mrb[0].mxu0
      %823 = vmatprep.mubr.f32.mxu0 0.0
      %824 = vmatmul.mubr.f32.gmra.mrb[0].mxu0 %v620
      %v825 = vpop.f32.mrb[0].mxu0
      %v826 = vadd.f32 %v550, %v825
      %v827 = vpop.f32.mrb[0].mxu0
      %828 = vmatprep.mubr.f32.mxu0 0.0
      %829 = vmatmul.mubr.f32.gmra.mrb[0].mxu0 %v623
      %v830 = vpop.f32.mrb[0].mxu0
      %v831 = vadd.f32 %v550, %v830
      %v832 = vpop.f32.mrb[0].mxu0
      %833 = vmatprep.mubr.f32.mxu0 0.0
      %834 = vmatmul.mubr.f32.gmra.mrb[0].mxu0 %v626
      %v835 = vpop.f32.mrb[0].mxu0
      %v836 = vadd.f32 %v550, %v835
      %v837 = vpop.f32.mrb[0].mxu0
      %838 = vmatprep.mubr.f32.mxu0 0.0
      %839 = vmatmul.mubr.f32.gmra.mrb[0].mxu0 %v629
      %v840 = vpop.f32.mrb[0].mxu0
      %v841 = vadd.f32 %v550, %v840
      %v842 = vpop.f32.mrb[0].mxu0
      %843 = vmatprep.mubr.f32.mxu0 0.0
      %844 = vmatmul.mubr.f32.gmra.mrb[0].mxu0 %v632
      %v845 = vpop.f32.mrb[0].mxu0
      %v846 = vadd.f32 %v550, %v845
      %v847 = vpop.f32.mrb[0].mxu0
      %848 = vmatprep.mubr.f32.mxu0 0.0
      %849 = vmatmul.mubr.f32.gmra.mrb[0].mxu0 %v635
      %v850 = vpop.f32.mrb[0].mxu0
      %v851 = vadd.f32 %v550, %v850
      %v852 = vpop.f32.mrb[0].mxu0
      %853 = vmatprep.mubr.f32.mxu0 0.0
      %854 = vmatmul.mubr.f32.gmra.mrb[0].mxu0 %v638
      %v855 = vpop.f32.mrb[0].mxu0
      %v856 = vadd.f32 %v550, %v855
      %v857 = vpop.f32.mrb[0].mxu0
      %858 = vmatprep.mubr.f32.mxu0 0.0
      %859 = vmatmul.mubr.f32.gmra.mrb[0].mxu0 %v641
      %v860 = vpop.f32.mrb[0].mxu0
      %v861 = vadd.f32 %v550, %v860
      %v862 = vpop.f32.mrb[0].mxu0
      %863 = vmatprep.mubr.f32.mxu0 0.0
      %864 = vmatmul.mubr.f32.gmra.mrb[0].mxu0 %v644
      %v865 = vpop.f32.mrb[0].mxu0
      %v866 = vadd.f32 %v550, %v865
      %v867 = vpop.f32.mrb[0].mxu0
      %868 = vmatprep.mubr.f32.mxu0 0.0
      %869 = vmatmul.mubr.f32.gmra.mrb[0].mxu0 %v647
      %v870 = vpop.f32.mrb[0].mxu0
      %v871 = vadd.f32 %v550, %v870
      %v872 = vpop.f32.mrb[0].mxu0
      %873 = vdwg.mxu0
      %v874 = vld [vmem:[%s3] sm:$0xff]
      %v875 = vld [vmem:[%s3 + $0x8] sm:$0xff]
      %v876 = vld [vmem:[%s3 + $0x10] sm:$0xff]
      %v877 = vld [vmem:[%s3 + $0x18] sm:$0xff]
      %v878 = vld [vmem:[%s7] sm:$0x1]
      %v880 = vlaneseq
      %v881 = vshrl.u32 %v880, 7
      %v882 = vsub.s32 0, %v881
      %v883 = vrot.slane %v878, %v882
      %v886 = vsel %vm552, %v445, 0
      %v889 = vsel %vm552, %v446, 0
      %v892 = vsel %vm552, %v447, 0
      %v895 = vsel %vm552, %v448, 0
      %v898 = vsel %vm552, %v449, 0
      %v901 = vsel %vm552, %v450, 0
      %v904 = vsel %vm552, %v451, 0
      %v907 = vsel %vm552, %v452, 0
      %v910 = vsel %vm552, %v453, 0
      %v913 = vsel %vm552, %v454, 0
      %v916 = vsel %vm552, %v455, 0
      %v919 = vsel %vm552, %v456, 0
      %v922 = vsel %vm552, %v457, 0
      %v925 = vsel %vm552, %v458, 0
      %v928 = vsel %vm552, %v459, 0
      %v931 = vsel %vm552, %v460, 0
      %v934 = vsel %vm552, %v461, 0
      %v937 = vsel %vm552, %v462, 0
      %v940 = vsel %vm552, %v463, 0
      %v943 = vsel %vm552, %v464, 0
      %v946 = vsel %vm552, %v465, 0
      %v949 = vsel %vm552, %v466, 0
      %v952 = vsel %vm552, %v467, 0
      %v955 = vsel %vm552, %v468, 0
      %v958 = vsel %vm552, %v469, 0
      %v961 = vsel %vm552, %v470, 0
      %v964 = vsel %vm552, %v471, 0
      %v967 = vsel %vm552, %v472, 0
      %v970 = vsel %vm552, %v473, 0
      %v973 = vsel %vm552, %v474, 0
      %v976 = vsel %vm552, %v475, 0
      %v979 = vsel %vm552, %v476, 0
      %981 = vmatprep.subr.mxu0 0.0
      %982 = vmatpush1.msra.mxu0 %v874
      %983 = vmatprep.subr.mxu0 0.0
      %984 = vmatpush1.msra.mxu0 %v875
      %985 = vmatprep.subr.mxu0 0.0
      %986 = vmatpush1.msra.mxu0 %v876
      %987 = vmatprep.subr.mxu0 0.0
      %988 = vmatpush1.msra.mxu0 %v877
      %989 = vmatprep.subr.mxu0 0.0
      %990 = vmatpush1.msra.mxu0 0.0
      %991 = vmatprep.subr.mxu0 0.0
      %992 = vmatpush1.msra.mxu0 0.0
      %993 = vmatprep.subr.mxu0 0.0
      %994 = vmatpush1.msra.mxu0 0.0
      %995 = vmatprep.subr.mxu0 0.0
      %996 = vmatpush1.msra.mxu0 0.0
      %997 = vmatprep.subr.mxu0 0.0
      %998 = vmatpush1.msra.mxu0 0.0
      %999 = vmatprep.subr.mxu0 0.0
      %1000 = vmatpush1.msra.mxu0 0.0
      %1001 = vmatprep.subr.mxu0 0.0
      %1002 = vmatpush1.msra.mxu0 0.0
      %1003 = vmatprep.subr.mxu0 0.0
      %1004 = vmatpush1.msra.mxu0 0.0
      %1005 = vmatprep.subr.mxu0 0.0
      %1006 = vmatpush1.msra.mxu0 0.0
      %1007 = vmatprep.subr.mxu0 0.0
      %1008 = vmatpush1.msra.mxu0 0.0
      %1009 = vmatprep.subr.mxu0 0.0
      %1010 = vmatpush1.msra.mxu0 0.0
      %1011 = vmatprep.subr.mxu0 0.0
      %1012 = vmatpush1.msra.mxu0 0.0
      %1013 = vmatprep.subr.mxu0 0.0
      %1014 = vmatpush1.msra.mxu0 0.0
      %1015 = vmatprep.subr.mxu0 0.0
      %1016 = vmatpush1.msra.mxu0 0.0
      %1017 = vmatprep.subr.mxu0 0.0
      %1018 = vmatpush1.msra.mxu0 0.0
      %1019 = vmatprep.subr.mxu0 0.0
      %1020 = vmatpush1.msra.mxu0 0.0
      %1021 = vmatprep.subr.mxu0 0.0
      %1022 = vmatpush1.msra.mxu0 0.0
      %1023 = vmatprep.subr.mxu0 0.0
      %1024 = vmatpush1.msra.mxu0 0.0
      %1025 = vmatprep.subr.mxu0 0.0
      %1026 = vmatpush1.msra.mxu0 0.0
      %1027 = vmatprep.subr.mxu0 0.0
      %1028 = vmatpush1.msra.mxu0 0.0
      %1029 = vmatprep.subr.mxu0 0.0
      %1030 = vmatpush1.msra.mxu0 0.0
      %1031 = vmatprep.subr.mxu0 0.0
      %1032 = vmatpush1.msra.mxu0 0.0
      %1033 = vmatprep.subr.mxu0 0.0
      %1034 = vmatpush1.msra.mxu0 0.0
      %1035 = vmatprep.subr.mxu0 0.0
      %1036 = vmatpush1.msra.mxu0 0.0
      %1037 = vmatprep.subr.mxu0 0.0
      %1038 = vmatpush1.msra.mxu0 0.0
      %1039 = vmatprep.subr.mxu0 0.0
      %1040 = vmatpush1.msra.mxu0 0.0
      %1041 = vmatprep.subr.mxu0 0.0
      %1042 = vmatpush1.msra.mxu0 0.0
      %1043 = vmatprep.subr.mxu0 0.0
      %1044 = vmatpush1.msra.mxu0 0.0
      %1045 = vmatprep.mubr.f32.mxu0 0.0
      %1046 = vmatmul.mubr.f32.gmra.mrb[0].mxu0 %v886
      %v1047 = vpop.f32.mrb[0].mxu0
      %v1048 = vadd.f32 %v883, %v1047
      %v1049 = vpop.f32.mrb[0].mxu0
      %1050 = vmatprep.mubr.f32.mxu0 0.0
      %1051 = vmatmul.mubr.f32.gmra.mrb[0].mxu0 %v889
      %v1052 = vpop.f32.mrb[0].mxu0
      %v1053 = vadd.f32 %v883, %v1052
      %v1054 = vpop.f32.mrb[0].mxu0
      %1055 = vmatprep.mubr.f32.mxu0 0.0
      %1056 = vmatmul.mubr.f32.gmra.mrb[0].mxu0 %v892
      %v1057 = vpop.f32.mrb[0].mxu0
      %v1058 = vadd.f32 %v883, %v1057
      %v1059 = vpop.f32.mrb[0].mxu0
      %1060 = vmatprep.mubr.f32.mxu0 0.0
      %1061 = vmatmul.mubr.f32.gmra.mrb[0].mxu0 %v895
      %v1062 = vpop.f32.mrb[0].mxu0
      %v1063 = vadd.f32 %v883, %v1062
      %v1064 = vpop.f32.mrb[0].mxu0
      %1065 = vmatprep.mubr.f32.mxu0 0.0
      %1066 = vmatmul.mubr.f32.gmra.mrb[0].mxu0 %v898
      %v1067 = vpop.f32.mrb[0].mxu0
      %v1068 = vadd.f32 %v883, %v1067
      %v1069 = vpop.f32.mrb[0].mxu0
      %1070 = vmatprep.mubr.f32.mxu0 0.0
      %1071 = vmatmul.mubr.f32.gmra.mrb[0].mxu0 %v901
      %v1072 = vpop.f32.mrb[0].mxu0
      %v1073 = vadd.f32 %v883, %v1072
      %v1074 = vpop.f32.mrb[0].mxu0
      %1075 = vmatprep.mubr.f32.mxu0 0.0
      %1076 = vmatmul.mubr.f32.gmra.mrb[0].mxu0 %v904
      %v1077 = vpop.f32.mrb[0].mxu0
      %v1078 = vadd.f32 %v883, %v1077
      %v1079 = vpop.f32.mrb[0].mxu0
      %1080 = vmatprep.mubr.f32.mxu0 0.0
      %1081 = vmatmul.mubr.f32.gmra.mrb[0].mxu0 %v907
      %v1082 = vpop.f32.mrb[0].mxu0
      %v1083 = vadd.f32 %v883, %v1082
      %v1084 = vpop.f32.mrb[0].mxu0
      %1085 = vmatprep.mubr.f32.mxu0 0.0
      %1086 = vmatmul.mubr.f32.gmra.mrb[0].mxu0 %v910
      %v1087 = vpop.f32.mrb[0].mxu0
      %v1088 = vadd.f32 %v883, %v1087
      %v1089 = vpop.f32.mrb[0].mxu0
      %1090 = vmatprep.mubr.f32.mxu0 0.0
      %1091 = vmatmul.mubr.f32.gmra.mrb[0].mxu0 %v913
      %v1092 = vpop.f32.mrb[0].mxu0
      %v1093 = vadd.f32 %v883, %v1092
      %v1094 = vpop.f32.mrb[0].mxu0
      %1095 = vmatprep.mubr.f32.mxu0 0.0
      %1096 = vmatmul.mubr.f32.gmra.mrb[0].mxu0 %v916
      %v1097 = vpop.f32.mrb[0].mxu0
      %v1098 = vadd.f32 %v883, %v1097
      %v1099 = vpop.f32.mrb[0].mxu0
      %1100 = vmatprep.mubr.f32.mxu0 0.0
      %1101 = vmatmul.mubr.f32.gmra.mrb[0].mxu0 %v919
      %v1102 = vpop.f32.mrb[0].mxu0
      %v1103 = vadd.f32 %v883, %v1102
      %v1104 = vpop.f32.mrb[0].mxu0
      %1105 = vmatprep.mubr.f32.mxu0 0.0
      %1106 = vmatmul.mubr.f32.gmra.mrb[0].mxu0 %v922
      %v1107 = vpop.f32.mrb[0].mxu0
      %v1108 = vadd.f32 %v883, %v1107
      %v1109 = vpop.f32.mrb[0].mxu0
      %1110 = vmatprep.mubr.f32.mxu0 0.0
      %1111 = vmatmul.mubr.f32.gmra.mrb[0].mxu0 %v925
      %v1112 = vpop.f32.mrb[0].mxu0
      %v1113 = vadd.f32 %v883, %v1112
      %v1114 = vpop.f32.mrb[0].mxu0
      %1115 = vmatprep.mubr.f32.mxu0 0.0
      %1116 = vmatmul.mubr.f32.gmra.mrb[0].mxu0 %v928
      %v1117 = vpop.f32.mrb[0].mxu0
      %v1118 = vadd.f32 %v883, %v1117
      %v1119 = vpop.f32.mrb[0].mxu0
      %1120 = vmatprep.mubr.f32.mxu0 0.0
      %1121 = vmatmul.mubr.f32.gmra.mrb[0].mxu0 %v931
      %v1122 = vpop.f32.mrb[0].mxu0
      %v1123 = vadd.f32 %v883, %v1122
      %v1124 = vpop.f32.mrb[0].mxu0
      %1125 = vmatprep.mubr.f32.mxu0 0.0
      %1126 = vmatmul.mubr.f32.gmra.mrb[0].mxu0 %v934
      %v1127 = vpop.f32.mrb[0].mxu0
      %v1128 = vadd.f32 %v883, %v1127
      %v1129 = vpop.f32.mrb[0].mxu0
      %1130 = vmatprep.mubr.f32.mxu0 0.0
      %1131 = vmatmul.mubr.f32.gmra.mrb[0].mxu0 %v937
      %v1132 = vpop.f32.mrb[0].mxu0
      %v1133 = vadd.f32 %v883, %v1132
      %v1134 = vpop.f32.mrb[0].mxu0
      %1135 = vmatprep.mubr.f32.mxu0 0.0
      %1136 = vmatmul.mubr.f32.gmra.mrb[0].mxu0 %v940
      %v1137 = vpop.f32.mrb[0].mxu0
      %v1138 = vadd.f32 %v883, %v1137
      %v1139 = vpop.f32.mrb[0].mxu0
      %1140 = vmatprep.mubr.f32.mxu0 0.0
      %1141 = vmatmul.mubr.f32.gmra.mrb[0].mxu0 %v943
      %v1142 = vpop.f32.mrb[0].mxu0
      %v1143 = vadd.f32 %v883, %v1142
      %v1144 = vpop.f32.mrb[0].mxu0
      %1145 = vmatprep.mubr.f32.mxu0 0.0
      %1146 = vmatmul.mubr.f32.gmra.mrb[0].mxu0 %v946
      %v1147 = vpop.f32.mrb[0].mxu0
      %v1148 = vadd.f32 %v883, %v1147
      %v1149 = vpop.f32.mrb[0].mxu0
      %1150 = vmatprep.mubr.f32.mxu0 0.0
      %1151 = vmatmul.mubr.f32.gmra.mrb[0].mxu0 %v949
      %v1152 = vpop.f32.mrb[0].mxu0
      %v1153 = vadd.f32 %v883, %v1152
      %v1154 = vpop.f32.mrb[0].mxu0
      %1155 = vmatprep.mubr.f32.mxu0 0.0
      %1156 = vmatmul.mubr.f32.gmra.mrb[0].mxu0 %v952
      %v1157 = vpop.f32.mrb[0].mxu0
      %v1158 = vadd.f32 %v883, %v1157
      %v1159 = vpop.f32.mrb[0].mxu0
      %1160 = vmatprep.mubr.f32.mxu0 0.0
      %1161 = vmatmul.mubr.f32.gmra.mrb[0].mxu0 %v955
      %v1162 = vpop.f32.mrb[0].mxu0
      %v1163 = vadd.f32 %v883, %v1162
      %v1164 = vpop.f32.mrb[0].mxu0
      %1165 = vmatprep.mubr.f32.mxu0 0.0
      %1166 = vmatmul.mubr.f32.gmra.mrb[0].mxu0 %v958
      %v1167 = vpop.f32.mrb[0].mxu0
      %v1168 = vadd.f32 %v883, %v1167
      %v1169 = vpop.f32.mrb[0].mxu0
      %1170 = vmatprep.mubr.f32.mxu0 0.0
      %1171 = vmatmul.mubr.f32.gmra.mrb[0].mxu0 %v961
      %v1172 = vpop.f32.mrb[0].mxu0
      %v1173 = vadd.f32 %v883, %v1172
      %v1174 = vpop.f32.mrb[0].mxu0
      %1175 = vmatprep.mubr.f32.mxu0 0.0
      %1176 = vmatmul.mubr.f32.gmra.mrb[0].mxu0 %v964
      %v1177 = vpop.f32.mrb[0].mxu0
      %v1178 = vadd.f32 %v883, %v1177
      %v1179 = vpop.f32.mrb[0].mxu0
      %1180 = vmatprep.mubr.f32.mxu0 0.0
      %1181 = vmatmul.mubr.f32.gmra.mrb[0].mxu0 %v967
      %v1182 = vpop.f32.mrb[0].mxu0
      %v1183 = vadd.f32 %v883, %v1182
      %v1184 = vpop.f32.mrb[0].mxu0
      %1185 = vmatprep.mubr.f32.mxu0 0.0
      %1186 = vmatmul.mubr.f32.gmra.mrb[0].mxu0 %v970
      %v1187 = vpop.f32.mrb[0].mxu0
      %v1188 = vadd.f32 %v883, %v1187
      %v1189 = vpop.f32.mrb[0].mxu0
      %1190 = vmatprep.mubr.f32.mxu0 0.0
      %1191 = vmatmul.mubr.f32.gmra.mrb[0].mxu0 %v973
      %v1192 = vpop.f32.mrb[0].mxu0
      %v1193 = vadd.f32 %v883, %v1192
      %v1194 = vpop.f32.mrb[0].mxu0
      %1195 = vmatprep.mubr.f32.mxu0 0.0
      %1196 = vmatmul.mubr.f32.gmra.mrb[0].mxu0 %v976
      %v1197 = vpop.f32.mrb[0].mxu0
      %v1198 = vadd.f32 %v883, %v1197
      %v1199 = vpop.f32.mrb[0].mxu0
      %1200 = vmatprep.mubr.f32.mxu0 0.0
      %1201 = vmatmul.mubr.f32.gmra.mrb[0].mxu0 %v979
      %v1202 = vpop.f32.mrb[0].mxu0
      %v1203 = vadd.f32 %v883, %v1202
      %v1204 = vpop.f32.mrb[0].mxu0
      %1205 = vdwg.mxu0
      %v1206 = vadd.f32 %v1048, %v716
      %v1207 = vadd.f32 %v1053, %v721
      %v1208 = vadd.f32 %v1058, %v726
      %v1209 = vadd.f32 %v1063, %v731
      %v1210 = vadd.f32 %v1068, %v736
      %v1211 = vadd.f32 %v1073, %v741
      %v1212 = vadd.f32 %v1078, %v746
      %v1213 = vadd.f32 %v1083, %v751
      %v1214 = vadd.f32 %v1088, %v756
      %v1215 = vadd.f32 %v1093, %v761
      %v1216 = vadd.f32 %v1098, %v766
      %v1217 = vadd.f32 %v1103, %v771
      %v1218 = vadd.f32 %v1108, %v776
      %v1219 = vadd.f32 %v1113, %v781
      %v1220 = vadd.f32 %v1118, %v786
      %v1221 = vadd.f32 %v1123, %v791
      %v1222 = vadd.f32 %v1128, %v796
      %v1223 = vadd.f32 %v1133, %v801
      %v1224 = vadd.f32 %v1138, %v806
      %v1225 = vadd.f32 %v1143, %v811
      %v1226 = vadd.f32 %v1148, %v816
      %v1227 = vadd.f32 %v1153, %v821
      %v1228 = vadd.f32 %v1158, %v826
      %v1229 = vadd.f32 %v1163, %v831
      %v1230 = vadd.f32 %v1168, %v836
      %v1231 = vadd.f32 %v1173, %v841
      %v1232 = vadd.f32 %v1178, %v846
      %v1233 = vadd.f32 %v1183, %v851
      %v1234 = vadd.f32 %v1188, %v856
      %v1235 = vadd.f32 %v1193, %v861
      %v1236 = vadd.f32 %v1198, %v866
      %v1237 = vadd.f32 %v1203, %v871
      %v1238 = vmul.f32 %v1206, 0.25
      %v1239 = vmul.f32 %v1207, 0.25
      %v1240 = vmul.f32 %v1208, 0.25
      %v1241 = vmul.f32 %v1209, 0.25
      %v1242 = vmul.f32 %v1210, 0.25
      %v1243 = vmul.f32 %v1211, 0.25
      %v1244 = vmul.f32 %v1212, 0.25
      %v1245 = vmul.f32 %v1213, 0.25
      %v1246 = vmul.f32 %v1214, 0.25
      %v1247 = vmul.f32 %v1215, 0.25
      %v1248 = vmul.f32 %v1216, 0.25
      %v1249 = vmul.f32 %v1217, 0.25
      %v1250 = vmul.f32 %v1218, 0.25
      %v1251 = vmul.f32 %v1219, 0.25
      %v1252 = vmul.f32 %v1220, 0.25
      %v1253 = vmul.f32 %v1221, 0.25
      %v1254 = vmul.f32 %v1222, 0.25
      %v1255 = vmul.f32 %v1223, 0.25
      %v1256 = vmul.f32 %v1224, 0.25
      %v1257 = vmul.f32 %v1225, 0.25
      %v1258 = vmul.f32 %v1226, 0.25
      %v1259 = vmul.f32 %v1227, 0.25
      %v1260 = vmul.f32 %v1228, 0.25
      %v1261 = vmul.f32 %v1229, 0.25
      %v1262 = vmul.f32 %v1230, 0.25
      %v1263 = vmul.f32 %v1231, 0.25
      %v1264 = vmul.f32 %v1232, 0.25
      %v1265 = vmul.f32 %v1233, 0.25
      %v1266 = vmul.f32 %v1234, 0.25
      %v1267 = vmul.f32 %v1235, 0.25
      %v1268 = vmul.f32 %v1236, 0.25
      %v1269 = vmul.f32 %v1237, 0.25
      %v1270 = vld [vmem:[%s4] sm:$0xff]
      %v1271 = vld [vmem:[%s4 + $0x8] sm:$0xff]
      %v1272 = vld [vmem:[%s4 + $0x10] sm:$0xff]
      %v1273 = vld [vmem:[%s4 + $0x18] sm:$0xff]
      %v1274 = vld [vmem:[%s8] sm:$0x1]
      %v1276 = vlaneseq
      %v1277 = vshrl.u32 %v1276, 7
      %v1278 = vsub.s32 0, %v1277
      %v1279 = vrot.slane %v1274, %v1278
      %v1282 = vsel %vm552, %v477, 0
      %v1285 = vsel %vm552, %v478, 0
      %v1288 = vsel %vm552, %v479, 0
      %v1291 = vsel %vm552, %v480, 0
      %v1294 = vsel %vm552, %v481, 0
      %v1297 = vsel %vm552, %v482, 0
      %v1300 = vsel %vm552, %v483, 0
      %v1303 = vsel %vm552, %v484, 0
      %v1306 = vsel %vm552, %v485, 0
      %v1309 = vsel %vm552, %v486, 0
      %v1312 = vsel %vm552, %v487, 0
      %v1315 = vsel %vm552, %v488, 0
      %v1318 = vsel %vm552, %v489, 0
      %v1321 = vsel %vm552, %v490, 0
      %v1324 = vsel %vm552, %v491, 0
      %v1327 = vsel %vm552, %v492, 0
      %v1330 = vsel %vm552, %v493, 0
      %v1333 = vsel %vm552, %v494, 0
      %v1336 = vsel %vm552, %v495, 0
      %v1339 = vsel %vm552, %v496, 0
      %v1342 = vsel %vm552, %v497, 0
      %v1345 = vsel %vm552, %v498, 0
      %v1348 = vsel %vm552, %v499, 0
      %v1351 = vsel %vm552, %v500, 0
      %v1354 = vsel %vm552, %v501, 0
      %v1357 = vsel %vm552, %v502, 0
      %v1360 = vsel %vm552, %v503, 0
      %v1363 = vsel %vm552, %v504, 0
      %v1366 = vsel %vm552, %v505, 0
      %v1369 = vsel %vm552, %v506, 0
      %v1372 = vsel %vm552, %v507, 0
      %v1375 = vsel %vm552, %v508, 0
      %1377 = vmatprep.subr.mxu0 0.0
      %1378 = vmatpush1.msra.mxu0 %v1270
      %1379 = vmatprep.subr.mxu0 0.0
      %1380 = vmatpush1.msra.mxu0 %v1271
      %1381 = vmatprep.subr.mxu0 0.0
      %1382 = vmatpush1.msra.mxu0 %v1272
      %1383 = vmatprep.subr.mxu0 0.0
      %1384 = vmatpush1.msra.mxu0 %v1273
      %1385 = vmatprep.subr.mxu0 0.0
      %1386 = vmatpush1.msra.mxu0 0.0
      %1387 = vmatprep.subr.mxu0 0.0
      %1388 = vmatpush1.msra.mxu0 0.0
      %1389 = vmatprep.subr.mxu0 0.0
      %1390 = vmatpush1.msra.mxu0 0.0
      %1391 = vmatprep.subr.mxu0 0.0
      %1392 = vmatpush1.msra.mxu0 0.0
      %1393 = vmatprep.subr.mxu0 0.0
      %1394 = vmatpush1.msra.mxu0 0.0
      %1395 = vmatprep.subr.mxu0 0.0
      %1396 = vmatpush1.msra.mxu0 0.0
      %1397 = vmatprep.subr.mxu0 0.0
      %1398 = vmatpush1.msra.mxu0 0.0
      %1399 = vmatprep.subr.mxu0 0.0
      %1400 = vmatpush1.msra.mxu0 0.0
      %1401 = vmatprep.subr.mxu0 0.0
      %1402 = vmatpush1.msra.mxu0 0.0
      %1403 = vmatprep.subr.mxu0 0.0
      %1404 = vmatpush1.msra.mxu0 0.0
      %1405 = vmatprep.subr.mxu0 0.0
      %1406 = vmatpush1.msra.mxu0 0.0
      %1407 = vmatprep.subr.mxu0 0.0
      %1408 = vmatpush1.msra.mxu0 0.0
      %1409 = vmatprep.subr.mxu0 0.0
      %1410 = vmatpush1.msra.mxu0 0.0
      %1411 = vmatprep.subr.mxu0 0.0
      %1412 = vmatpush1.msra.mxu0 0.0
      %1413 = vmatprep.subr.mxu0 0.0
      %1414 = vmatpush1.msra.mxu0 0.0
      %1415 = vmatprep.subr.mxu0 0.0
      %1416 = vmatpush1.msra.mxu0 0.0
      %1417 = vmatprep.subr.mxu0 0.0
      %1418 = vmatpush1.msra.mxu0 0.0
      %1419 = vmatprep.subr.mxu0 0.0
      %1420 = vmatpush1.msra.mxu0 0.0
      %1421 = vmatprep.subr.mxu0 0.0
      %1422 = vmatpush1.msra.mxu0 0.0
      %1423 = vmatprep.subr.mxu0 0.0
      %1424 = vmatpush1.msra.mxu0 0.0
      %1425 = vmatprep.subr.mxu0 0.0
      %1426 = vmatpush1.msra.mxu0 0.0
      %1427 = vmatprep.subr.mxu0 0.0
      %1428 = vmatpush1.msra.mxu0 0.0
      %1429 = vmatprep.subr.mxu0 0.0
      %1430 = vmatpush1.msra.mxu0 0.0
      %1431 = vmatprep.subr.mxu0 0.0
      %1432 = vmatpush1.msra.mxu0 0.0
      %1433 = vmatprep.subr.mxu0 0.0
      %1434 = vmatpush1.msra.mxu0 0.0
      %1435 = vmatprep.subr.mxu0 0.0
      %1436 = vmatpush1.msra.mxu0 0.0
      %1437 = vmatprep.subr.mxu0 0.0
      %1438 = vmatpush1.msra.mxu0 0.0
      %1439 = vmatprep.subr.mxu0 0.0
      %1440 = vmatpush1.msra.mxu0 0.0
      %1441 = vmatprep.mubr.f32.mxu0 0.0
      %1442 = vmatmul.mubr.f32.gmra.mrb[0].mxu0 %v1282
      %v1443 = vpop.f32.mrb[0].mxu0
      %v1444 = vadd.f32 %v1279, %v1443
      %v1445 = vpop.f32.mrb[0].mxu0
      %1446 = vmatprep.mubr.f32.mxu0 0.0
      %1447 = vmatmul.mubr.f32.gmra.mrb[0].mxu0 %v1285
      %v1448 = vpop.f32.mrb[0].mxu0
      %v1449 = vadd.f32 %v1279, %v1448
      %v1450 = vpop.f32.mrb[0].mxu0
      %1451 = vmatprep.mubr.f32.mxu0 0.0
      %1452 = vmatmul.mubr.f32.gmra.mrb[0].mxu0 %v1288
      %v1453 = vpop.f32.mrb[0].mxu0
      %v1454 = vadd.f32 %v1279, %v1453
      %v1455 = vpop.f32.mrb[0].mxu0
      %1456 = vmatprep.mubr.f32.mxu0 0.0
      %1457 = vmatmul.mubr.f32.gmra.mrb[0].mxu0 %v1291
      %v1458 = vpop.f32.mrb[0].mxu0
      %v1459 = vadd.f32 %v1279, %v1458
      %v1460 = vpop.f32.mrb[0].mxu0
      %1461 = vmatprep.mubr.f32.mxu0 0.0
      %1462 = vmatmul.mubr.f32.gmra.mrb[0].mxu0 %v1294
      %v1463 = vpop.f32.mrb[0].mxu0
      %v1464 = vadd.f32 %v1279, %v1463
      %v1465 = vpop.f32.mrb[0].mxu0
      %1466 = vmatprep.mubr.f32.mxu0 0.0
      %1467 = vmatmul.mubr.f32.gmra.mrb[0].mxu0 %v1297
      %v1468 = vpop.f32.mrb[0].mxu0
      %v1469 = vadd.f32 %v1279, %v1468
      %v1470 = vpop.f32.mrb[0].mxu0
      %1471 = vmatprep.mubr.f32.mxu0 0.0
      %1472 = vmatmul.mubr.f32.gmra.mrb[0].mxu0 %v1300
      %v1473 = vpop.f32.mrb[0].mxu0
      %v1474 = vadd.f32 %v1279, %v1473
      %v1475 = vpop.f32.mrb[0].mxu0
      %1476 = vmatprep.mubr.f32.mxu0 0.0
      %1477 = vmatmul.mubr.f32.gmra.mrb[0].mxu0 %v1303
      %v1478 = vpop.f32.mrb[0].mxu0
      %v1479 = vadd.f32 %v1279, %v1478
      %v1480 = vpop.f32.mrb[0].mxu0
      %1481 = vmatprep.mubr.f32.mxu0 0.0
      %1482 = vmatmul.mubr.f32.gmra.mrb[0].mxu0 %v1306
      %v1483 = vpop.f32.mrb[0].mxu0
      %v1484 = vadd.f32 %v1279, %v1483
      %v1485 = vpop.f32.mrb[0].mxu0
      %1486 = vmatprep.mubr.f32.mxu0 0.0
      %1487 = vmatmul.mubr.f32.gmra.mrb[0].mxu0 %v1309
      %v1488 = vpop.f32.mrb[0].mxu0
      %v1489 = vadd.f32 %v1279, %v1488
      %v1490 = vpop.f32.mrb[0].mxu0
      %1491 = vmatprep.mubr.f32.mxu0 0.0
      %1492 = vmatmul.mubr.f32.gmra.mrb[0].mxu0 %v1312
      %v1493 = vpop.f32.mrb[0].mxu0
      %v1494 = vadd.f32 %v1279, %v1493
      %v1495 = vpop.f32.mrb[0].mxu0
      %1496 = vmatprep.mubr.f32.mxu0 0.0
      %1497 = vmatmul.mubr.f32.gmra.mrb[0].mxu0 %v1315
      %v1498 = vpop.f32.mrb[0].mxu0
      %v1499 = vadd.f32 %v1279, %v1498
      %v1500 = vpop.f32.mrb[0].mxu0
      %1501 = vmatprep.mubr.f32.mxu0 0.0
      %1502 = vmatmul.mubr.f32.gmra.mrb[0].mxu0 %v1318
      %v1503 = vpop.f32.mrb[0].mxu0
      %v1504 = vadd.f32 %v1279, %v1503
      %v1505 = vpop.f32.mrb[0].mxu0
      %1506 = vmatprep.mubr.f32.mxu0 0.0
      %1507 = vmatmul.mubr.f32.gmra.mrb[0].mxu0 %v1321
      %v1508 = vpop.f32.mrb[0].mxu0
      %v1509 = vadd.f32 %v1279, %v1508
      %v1510 = vpop.f32.mrb[0].mxu0
      %1511 = vmatprep.mubr.f32.mxu0 0.0
      %1512 = vmatmul.mubr.f32.gmra.mrb[0].mxu0 %v1324
      %v1513 = vpop.f32.mrb[0].mxu0
      %v1514 = vadd.f32 %v1279, %v1513
      %v1515 = vpop.f32.mrb[0].mxu0
      %1516 = vmatprep.mubr.f32.mxu0 0.0
      %1517 = vmatmul.mubr.f32.gmra.mrb[0].mxu0 %v1327
      %v1518 = vpop.f32.mrb[0].mxu0
      %v1519 = vadd.f32 %v1279, %v1518
      %v1520 = vpop.f32.mrb[0].mxu0
      %1521 = vmatprep.mubr.f32.mxu0 0.0
      %1522 = vmatmul.mubr.f32.gmra.mrb[0].mxu0 %v1330
      %v1523 = vpop.f32.mrb[0].mxu0
      %v1524 = vadd.f32 %v1279, %v1523
      %v1525 = vpop.f32.mrb[0].mxu0
      %1526 = vmatprep.mubr.f32.mxu0 0.0
      %1527 = vmatmul.mubr.f32.gmra.mrb[0].mxu0 %v1333
      %v1528 = vpop.f32.mrb[0].mxu0
      %v1529 = vadd.f32 %v1279, %v1528
      %v1530 = vpop.f32.mrb[0].mxu0
      %1531 = vmatprep.mubr.f32.mxu0 0.0
      %1532 = vmatmul.mubr.f32.gmra.mrb[0].mxu0 %v1336
      %v1533 = vpop.f32.mrb[0].mxu0
      %v1534 = vadd.f32 %v1279, %v1533
      %v1535 = vpop.f32.mrb[0].mxu0
      %1536 = vmatprep.mubr.f32.mxu0 0.0
      %1537 = vmatmul.mubr.f32.gmra.mrb[0].mxu0 %v1339
      %v1538 = vpop.f32.mrb[0].mxu0
      %v1539 = vadd.f32 %v1279, %v1538
      %v1540 = vpop.f32.mrb[0].mxu0
      %1541 = vmatprep.mubr.f32.mxu0 0.0
      %1542 = vmatmul.mubr.f32.gmra.mrb[0].mxu0 %v1342
      %v1543 = vpop.f32.mrb[0].mxu0
      %v1544 = vadd.f32 %v1279, %v1543
      %v1545 = vpop.f32.mrb[0].mxu0
      %1546 = vmatprep.mubr.f32.mxu0 0.0
      %1547 = vmatmul.mubr.f32.gmra.mrb[0].mxu0 %v1345
      %v1548 = vpop.f32.mrb[0].mxu0
      %v1549 = vadd.f32 %v1279, %v1548
      %v1550 = vpop.f32.mrb[0].mxu0
      %1551 = vmatprep.mubr.f32.mxu0 0.0
      %1552 = vmatmul.mubr.f32.gmra.mrb[0].mxu0 %v1348
      %v1553 = vpop.f32.mrb[0].mxu0
      %v1554 = vadd.f32 %v1279, %v1553
      %v1555 = vpop.f32.mrb[0].mxu0
      %1556 = vmatprep.mubr.f32.mxu0 0.0
      %1557 = vmatmul.mubr.f32.gmra.mrb[0].mxu0 %v1351
      %v1558 = vpop.f32.mrb[0].mxu0
      %v1559 = vadd.f32 %v1279, %v1558
      %v1560 = vpop.f32.mrb[0].mxu0
      %1561 = vmatprep.mubr.f32.mxu0 0.0
      %1562 = vmatmul.mubr.f32.gmra.mrb[0].mxu0 %v1354
      %v1563 = vpop.f32.mrb[0].mxu0
      %v1564 = vadd.f32 %v1279, %v1563
      %v1565 = vpop.f32.mrb[0].mxu0
      %1566 = vmatprep.mubr.f32.mxu0 0.0
      %1567 = vmatmul.mubr.f32.gmra.mrb[0].mxu0 %v1357
      %v1568 = vpop.f32.mrb[0].mxu0
      %v1569 = vadd.f32 %v1279, %v1568
      %v1570 = vpop.f32.mrb[0].mxu0
      %1571 = vmatprep.mubr.f32.mxu0 0.0
      %1572 = vmatmul.mubr.f32.gmra.mrb[0].mxu0 %v1360
      %v1573 = vpop.f32.mrb[0].mxu0
      %v1574 = vadd.f32 %v1279, %v1573
      %v1575 = vpop.f32.mrb[0].mxu0
      %1576 = vmatprep.mubr.f32.mxu0 0.0
      %1577 = vmatmul.mubr.f32.gmra.mrb[0].mxu0 %v1363
      %v1578 = vpop.f32.mrb[0].mxu0
      %v1579 = vadd.f32 %v1279, %v1578
      %v1580 = vpop.f32.mrb[0].mxu0
      %1581 = vmatprep.mubr.f32.mxu0 0.0
      %1582 = vmatmul.mubr.f32.gmra.mrb[0].mxu0 %v1366
      %v1583 = vpop.f32.mrb[0].mxu0
      %v1584 = vadd.f32 %v1279, %v1583
      %v1585 = vpop.f32.mrb[0].mxu0
      %1586 = vmatprep.mubr.f32.mxu0 0.0
      %1587 = vmatmul.mubr.f32.gmra.mrb[0].mxu0 %v1369
      %v1588 = vpop.f32.mrb[0].mxu0
      %v1589 = vadd.f32 %v1279, %v1588
      %v1590 = vpop.f32.mrb[0].mxu0
      %1591 = vmatprep.mubr.f32.mxu0 0.0
      %1592 = vmatmul.mubr.f32.gmra.mrb[0].mxu0 %v1372
      %v1593 = vpop.f32.mrb[0].mxu0
      %v1594 = vadd.f32 %v1279, %v1593
      %v1595 = vpop.f32.mrb[0].mxu0
      %1596 = vmatprep.mubr.f32.mxu0 0.0
      %1597 = vmatmul.mubr.f32.gmra.mrb[0].mxu0 %v1375
      %v1598 = vpop.f32.mrb[0].mxu0
      %v1599 = vadd.f32 %v1279, %v1598
      %v1600 = vpop.f32.mrb[0].mxu0
      %1601 = vdwg.mxu0
      %v1602 = vadd.f32 %v1444, %v716
      %v1603 = vadd.f32 %v1449, %v721
      %v1604 = vadd.f32 %v1454, %v726
      %v1605 = vadd.f32 %v1459, %v731
      %v1606 = vadd.f32 %v1464, %v736
      %v1607 = vadd.f32 %v1469, %v741
      %v1608 = vadd.f32 %v1474, %v746
      %v1609 = vadd.f32 %v1479, %v751
      %v1610 = vadd.f32 %v1484, %v756
      %v1611 = vadd.f32 %v1489, %v761
      %v1612 = vadd.f32 %v1494, %v766
      %v1613 = vadd.f32 %v1499, %v771
      %v1614 = vadd.f32 %v1504, %v776
      %v1615 = vadd.f32 %v1509, %v781
      %v1616 = vadd.f32 %v1514, %v786
      %v1617 = vadd.f32 %v1519, %v791
      %v1618 = vadd.f32 %v1524, %v796
      %v1619 = vadd.f32 %v1529, %v801
      %v1620 = vadd.f32 %v1534, %v806
      %v1621 = vadd.f32 %v1539, %v811
      %v1622 = vadd.f32 %v1544, %v816
      %v1623 = vadd.f32 %v1549, %v821
      %v1624 = vadd.f32 %v1554, %v826
      %v1625 = vadd.f32 %v1559, %v831
      %v1626 = vadd.f32 %v1564, %v836
      %v1627 = vadd.f32 %v1569, %v841
      %v1628 = vadd.f32 %v1574, %v846
      %v1629 = vadd.f32 %v1579, %v851
      %v1630 = vadd.f32 %v1584, %v856
      %v1631 = vadd.f32 %v1589, %v861
      %v1632 = vadd.f32 %v1594, %v866
      %v1633 = vadd.f32 %v1599, %v871
      %vm1634 = vcmask 130048
      %v1636 = vsel %vm1634, %v1238, 0
      %v1639 = vsel %vm1634, %v1239, 0
      %v1642 = vsel %vm1634, %v1240, 0
      %v1645 = vsel %vm1634, %v1241, 0
      %v1648 = vsel %vm1634, %v1242, 0
      %v1651 = vsel %vm1634, %v1243, 0
      %v1654 = vsel %vm1634, %v1244, 0
      %v1657 = vsel %vm1634, %v1245, 0
      %v1660 = vsel %vm1634, %v1602, 0
      %v1663 = vsel %vm1634, %v1603, 0
      %v1666 = vsel %vm1634, %v1604, 0
      %v1669 = vsel %vm1634, %v1605, 0
      %v1672 = vsel %vm1634, %v1606, 0
      %v1675 = vsel %vm1634, %v1607, 0
      %v1678 = vsel %vm1634, %v1608, 0
      %v1681 = vsel %vm1634, %v1609, 0
      %1683 = vmatprep.subr.mxu0 0.0
      %1684 = vmatpush1.xpose.msra.mxu0 %v1660
      %1685 = vmatprep.subr.mxu0 0.0
      %1686 = vmatpush1.xpose.msra.mxu0 %v1663
      %1687 = vmatprep.subr.mxu0 0.0
      %1688 = vmatpush1.xpose.msra.mxu0 %v1666
      %1689 = vmatprep.subr.mxu0 0.0
      %1690 = vmatpush1.xpose.msra.mxu0 %v1669
      %1691 = vmatprep.subr.mxu0 0.0
      %1692 = vmatpush1.xpose.msra.mxu0 %v1672
      %1693 = vmatprep.subr.mxu0 0.0
      %1694 = vmatpush1.xpose.msra.mxu0 %v1675
      %1695 = vmatprep.subr.mxu0 0.0
      %1696 = vmatpush1.xpose.msra.mxu0 %v1678
      %1697 = vmatprep.subr.mxu0 0.0
      %1698 = vmatpush1.xpose.msra.mxu0 %v1681
      %1699 = vmatprep.subr.mxu0 0.0
      %1700 = vmatpush1.xpose.msra.mxu0 0.0
      %1701 = vmatprep.subr.mxu0 0.0
      %1702 = vmatpush1.xpose.msra.mxu0 0.0
      %1703 = vmatprep.subr.mxu0 0.0
      %1704 = vmatpush1.xpose.msra.mxu0 0.0
      %1705 = vmatprep.subr.mxu0 0.0
      %1706 = vmatpush1.xpose.msra.mxu0 0.0
      %1707 = vmatprep.subr.mxu0 0.0
      %1708 = vmatpush1.xpose.msra.mxu0 0.0
      %1709 = vmatprep.subr.mxu0 0.0
      %1710 = vmatpush1.xpose.msra.mxu0 0.0
      %1711 = vmatprep.subr.mxu0 0.0
      %1712 = vmatpush1.xpose.msra.mxu0 0.0
      %1713 = vmatprep.subr.mxu0 0.0
      %1714 = vmatpush1.xpose.msra.mxu0 0.0
      %1715 = vmatprep.subr.mxu0 0.0
      %1716 = vmatpush1.xpose.msra.mxu0 0.0
      %1717 = vmatprep.subr.mxu0 0.0
      %1718 = vmatpush1.xpose.msra.mxu0 0.0
      %1719 = vmatprep.subr.mxu0 0.0
      %1720 = vmatpush1.xpose.msra.mxu0 0.0
      %1721 = vmatprep.subr.mxu0 0.0
      %1722 = vmatpush1.xpose.msra.mxu0 0.0
      %1723 = vmatprep.subr.mxu0 0.0
      %1724 = vmatpush1.xpose.msra.mxu0 0.0
      %1725 = vmatprep.subr.mxu0 0.0
      %1726 = vmatpush1.xpose.msra.mxu0 0.0
      %1727 = vmatprep.subr.mxu0 0.0
      %1728 = vmatpush1.xpose.msra.mxu0 0.0
      %1729 = vmatprep.subr.mxu0 0.0
      %1730 = vmatpush1.xpose.msra.mxu0 0.0
      %1731 = vmatprep.subr.mxu0 0.0
      %1732 = vmatpush1.xpose.msra.mxu0 0.0
      %1733 = vmatprep.subr.mxu0 0.0
      %1734 = vmatpush1.xpose.msra.mxu0 0.0
      %1735 = vmatprep.subr.mxu0 0.0
      %1736 = vmatpush1.xpose.msra.mxu0 0.0
      %1737 = vmatprep.subr.mxu0 0.0
      %1738 = vmatpush1.xpose.msra.mxu0 0.0
      %1739 = vmatprep.subr.mxu0 0.0
      %1740 = vmatpush1.xpose.msra.mxu0 0.0
      %1741 = vmatprep.subr.mxu0 0.0
      %1742 = vmatpush1.xpose.msra.mxu0 0.0
      %1743 = vmatprep.subr.mxu0 0.0
      %1744 = vmatpush1.xpose.msra.mxu0 0.0
      %1745 = vmatprep.subr.mxu0 0.0
      %1746 = vmatpush1.xpose.msra.mxu0 0.0
      %1747 = vmatprep.mubr.f32.mxu0 0.0
      %1748 = vmatmul.mubr.f32.gmra.mrb[0].mxu0 %v1636
      %v1749 = vpop.f32.mrb[0].mxu0
      %v1750 = vadd.f32 0.0, %v1749
      %v1751 = vpop.f32.mrb[0].mxu0
      %1752 = vmatprep.mubr.f32.mxu0 0.0
      %1753 = vmatmul.mubr.f32.gmra.mrb[0].mxu0 %v1639
      %v1754 = vpop.f32.mrb[0].mxu0
      %v1755 = vadd.f32 0.0, %v1754
      %v1756 = vpop.f32.mrb[0].mxu0
      %1757 = vmatprep.mubr.f32.mxu0 0.0
      %1758 = vmatmul.mubr.f32.gmra.mrb[0].mxu0 %v1642
      %v1759 = vpop.f32.mrb[0].mxu0
      %v1760 = vadd.f32 0.0, %v1759
      %v1761 = vpop.f32.mrb[0].mxu0
      %1762 = vmatprep.mubr.f32.mxu0 0.0
      %1763 = vmatmul.mubr.f32.gmra.mrb[0].mxu0 %v1645
      %v1764 = vpop.f32.mrb[0].mxu0
      %v1765 = vadd.f32 0.0, %v1764
      %v1766 = vpop.f32.mrb[0].mxu0
      %1767 = vmatprep.mubr.f32.mxu0 0.0
      %1768 = vmatmul.mubr.f32.gmra.mrb[0].mxu0 %v1648
      %v1769 = vpop.f32.mrb[0].mxu0
      %v1770 = vadd.f32 0.0, %v1769
      %v1771 = vpop.f32.mrb[0].mxu0
      %1772 = vmatprep.mubr.f32.mxu0 0.0
      %1773 = vmatmul.mubr.f32.gmra.mrb[0].mxu0 %v1651
      %v1774 = vpop.f32.mrb[0].mxu0
      %v1775 = vadd.f32 0.0, %v1774
      %v1776 = vpop.f32.mrb[0].mxu0
      %1777 = vmatprep.mubr.f32.mxu0 0.0
      %1778 = vmatmul.mubr.f32.gmra.mrb[0].mxu0 %v1654
      %v1779 = vpop.f32.mrb[0].mxu0
      %v1780 = vadd.f32 0.0, %v1779
      %v1781 = vpop.f32.mrb[0].mxu0
      %1782 = vmatprep.mubr.f32.mxu0 0.0
      %1783 = vmatmul.mubr.f32.gmra.mrb[0].mxu0 %v1657
      %v1784 = vpop.f32.mrb[0].mxu0
      %v1785 = vadd.f32 0.0, %v1784
      %v1786 = vpop.f32.mrb[0].mxu0
      %1787 = vdwg.mxu0
      %v1789 = vsel %vm1634, %v1246, 0
      %v1792 = vsel %vm1634, %v1247, 0
      %v1795 = vsel %vm1634, %v1248, 0
      %v1798 = vsel %vm1634, %v1249, 0
      %v1801 = vsel %vm1634, %v1250, 0
      %v1804 = vsel %vm1634, %v1251, 0
      %v1807 = vsel %vm1634, %v1252, 0
      %v1810 = vsel %vm1634, %v1253, 0
      %v1813 = vsel %vm1634, %v1610, 0
      %v1816 = vsel %vm1634, %v1611, 0
      %v1819 = vsel %vm1634, %v1612, 0
      %v1822 = vsel %vm1634, %v1613, 0
      %v1825 = vsel %vm1634, %v1614, 0
      %v1828 = vsel %vm1634, %v1615, 0
      %v1831 = vsel %vm1634, %v1616, 0
      %v1834 = vsel %vm1634, %v1617, 0
      %1836 = vmatprep.subr.mxu0 0.0
      %1837 = vmatpush1.xpose.msra.mxu0 %v1813
      %1838 = vmatprep.subr.mxu0 0.0
      %1839 = vmatpush1.xpose.msra.mxu0 %v1816
      %1840 = vmatprep.subr.mxu0 0.0
      %1841 = vmatpush1.xpose.msra.mxu0 %v1819
      %1842 = vmatprep.subr.mxu0 0.0
      %1843 = vmatpush1.xpose.msra.mxu0 %v1822
      %1844 = vmatprep.subr.mxu0 0.0
      %1845 = vmatpush1.xpose.msra.mxu0 %v1825
      %1846 = vmatprep.subr.mxu0 0.0
      %1847 = vmatpush1.xpose.msra.mxu0 %v1828
      %1848 = vmatprep.subr.mxu0 0.0
      %1849 = vmatpush1.xpose.msra.mxu0 %v1831
      %1850 = vmatprep.subr.mxu0 0.0
      %1851 = vmatpush1.xpose.msra.mxu0 %v1834
      %1852 = vmatprep.subr.mxu0 0.0
      %1853 = vmatpush1.xpose.msra.mxu0 0.0
      %1854 = vmatprep.subr.mxu0 0.0
      %1855 = vmatpush1.xpose.msra.mxu0 0.0
      %1856 = vmatprep.subr.mxu0 0.0
      %1857 = vmatpush1.xpose.msra.mxu0 0.0
      %1858 = vmatprep.subr.mxu0 0.0
      %1859 = vmatpush1.xpose.msra.mxu0 0.0
      %1860 = vmatprep.subr.mxu0 0.0
      %1861 = vmatpush1.xpose.msra.mxu0 0.0
      %1862 = vmatprep.subr.mxu0 0.0
      %1863 = vmatpush1.xpose.msra.mxu0 0.0
      %1864 = vmatprep.subr.mxu0 0.0
      %1865 = vmatpush1.xpose.msra.mxu0 0.0
      %1866 = vmatprep.subr.mxu0 0.0
      %1867 = vmatpush1.xpose.msra.mxu0 0.0
      %1868 = vmatprep.subr.mxu0 0.0
      %1869 = vmatpush1.xpose.msra.mxu0 0.0
      %1870 = vmatprep.subr.mxu0 0.0
      %1871 = vmatpush1.xpose.msra.mxu0 0.0
      %1872 = vmatprep.subr.mxu0 0.0
      %1873 = vmatpush1.xpose.msra.mxu0 0.0
      %1874 = vmatprep.subr.mxu0 0.0
      %1875 = vmatpush1.xpose.msra.mxu0 0.0
      %1876 = vmatprep.subr.mxu0 0.0
      %1877 = vmatpush1.xpose.msra.mxu0 0.0
      %1878 = vmatprep.subr.mxu0 0.0
      %1879 = vmatpush1.xpose.msra.mxu0 0.0
      %1880 = vmatprep.subr.mxu0 0.0
      %1881 = vmatpush1.xpose.msra.mxu0 0.0
      %1882 = vmatprep.subr.mxu0 0.0
      %1883 = vmatpush1.xpose.msra.mxu0 0.0
      %1884 = vmatprep.subr.mxu0 0.0
      %1885 = vmatpush1.xpose.msra.mxu0 0.0
      %1886 = vmatprep.subr.mxu0 0.0
      %1887 = vmatpush1.xpose.msra.mxu0 0.0
      %1888 = vmatprep.subr.mxu0 0.0
      %1889 = vmatpush1.xpose.msra.mxu0 0.0
      %1890 = vmatprep.subr.mxu0 0.0
      %1891 = vmatpush1.xpose.msra.mxu0 0.0
      %1892 = vmatprep.subr.mxu0 0.0
      %1893 = vmatpush1.xpose.msra.mxu0 0.0
      %1894 = vmatprep.subr.mxu0 0.0
      %1895 = vmatpush1.xpose.msra.mxu0 0.0
      %1896 = vmatprep.subr.mxu0 0.0
      %1897 = vmatpush1.xpose.msra.mxu0 0.0
      %1898 = vmatprep.subr.mxu0 0.0
      %1899 = vmatpush1.xpose.msra.mxu0 0.0
      %1900 = vmatprep.mubr.f32.mxu0 0.0
      %1901 = vmatmul.mubr.f32.gmra.mrb[0].mxu0 %v1789
      %v1902 = vpop.f32.mrb[0].mxu0
      %v1903 = vadd.f32 0.0, %v1902
      %v1904 = vpop.f32.mrb[0].mxu0
      %1905 = vmatprep.mubr.f32.mxu0 0.0
      %1906 = vmatmul.mubr.f32.gmra.mrb[0].mxu0 %v1792
      %v1907 = vpop.f32.mrb[0].mxu0
      %v1908 = vadd.f32 0.0, %v1907
      %v1909 = vpop.f32.mrb[0].mxu0
      %1910 = vmatprep.mubr.f32.mxu0 0.0
      %1911 = vmatmul.mubr.f32.gmra.mrb[0].mxu0 %v1795
      %v1912 = vpop.f32.mrb[0].mxu0
      %v1913 = vadd.f32 0.0, %v1912
      %v1914 = vpop.f32.mrb[0].mxu0
      %1915 = vmatprep.mubr.f32.mxu0 0.0
      %1916 = vmatmul.mubr.f32.gmra.mrb[0].mxu0 %v1798
      %v1917 = vpop.f32.mrb[0].mxu0
      %v1918 = vadd.f32 0.0, %v1917
      %v1919 = vpop.f32.mrb[0].mxu0
      %1920 = vmatprep.mubr.f32.mxu0 0.0
      %1921 = vmatmul.mubr.f32.gmra.mrb[0].mxu0 %v1801
      %v1922 = vpop.f32.mrb[0].mxu0
      %v1923 = vadd.f32 0.0, %v1922
      %v1924 = vpop.f32.mrb[0].mxu0
      %1925 = vmatprep.mubr.f32.mxu0 0.0
      %1926 = vmatmul.mubr.f32.gmra.mrb[0].mxu0 %v1804
      %v1927 = vpop.f32.mrb[0].mxu0
      %v1928 = vadd.f32 0.0, %v1927
      %v1929 = vpop.f32.mrb[0].mxu0
      %1930 = vmatprep.mubr.f32.mxu0 0.0
      %1931 = vmatmul.mubr.f32.gmra.mrb[0].mxu0 %v1807
      %v1932 = vpop.f32.mrb[0].mxu0
      %v1933 = vadd.f32 0.0, %v1932
      %v1934 = vpop.f32.mrb[0].mxu0
      %1935 = vmatprep.mubr.f32.mxu0 0.0
      %1936 = vmatmul.mubr.f32.gmra.mrb[0].mxu0 %v1810
      %v1937 = vpop.f32.mrb[0].mxu0
      %v1938 = vadd.f32 0.0, %v1937
      %v1939 = vpop.f32.mrb[0].mxu0
      %1940 = vdwg.mxu0
      %v1942 = vsel %vm1634, %v1254, 0
      %v1945 = vsel %vm1634, %v1255, 0
      %v1948 = vsel %vm1634, %v1256, 0
      %v1951 = vsel %vm1634, %v1257, 0
      %v1954 = vsel %vm1634, %v1258, 0
      %v1957 = vsel %vm1634, %v1259, 0
      %v1960 = vsel %vm1634, %v1260, 0
      %v1963 = vsel %vm1634, %v1261, 0
      %v1966 = vsel %vm1634, %v1618, 0
      %v1969 = vsel %vm1634, %v1619, 0
      %v1972 = vsel %vm1634, %v1620, 0
      %v1975 = vsel %vm1634, %v1621, 0
      %v1978 = vsel %vm1634, %v1622, 0
      %v1981 = vsel %vm1634, %v1623, 0
      %v1984 = vsel %vm1634, %v1624, 0
      %v1987 = vsel %vm1634, %v1625, 0
      %1989 = vmatprep.subr.mxu0 0.0
      %1990 = vmatpush1.xpose.msra.mxu0 %v1966
      %1991 = vmatprep.subr.mxu0 0.0
      %1992 = vmatpush1.xpose.msra.mxu0 %v1969
      %1993 = vmatprep.subr.mxu0 0.0
      %1994 = vmatpush1.xpose.msra.mxu0 %v1972
      %1995 = vmatprep.subr.mxu0 0.0
      %1996 = vmatpush1.xpose.msra.mxu0 %v1975
      %1997 = vmatprep.subr.mxu0 0.0
      %1998 = vmatpush1.xpose.msra.mxu0 %v1978
      %1999 = vmatprep.subr.mxu0 0.0
      %2000 = vmatpush1.xpose.msra.mxu0 %v1981
      %2001 = vmatprep.subr.mxu0 0.0
      %2002 = vmatpush1.xpose.msra.mxu0 %v1984
      %2003 = vmatprep.subr.mxu0 0.0
      %2004 = vmatpush1.xpose.msra.mxu0 %v1987
      %2005 = vmatprep.subr.mxu0 0.0
      %2006 = vmatpush1.xpose.msra.mxu0 0.0
      %2007 = vmatprep.subr.mxu0 0.0
      %2008 = vmatpush1.xpose.msra.mxu0 0.0
      %2009 = vmatprep.subr.mxu0 0.0
      %2010 = vmatpush1.xpose.msra.mxu0 0.0
      %2011 = vmatprep.subr.mxu0 0.0
      %2012 = vmatpush1.xpose.msra.mxu0 0.0
      %2013 = vmatprep.subr.mxu0 0.0
      %2014 = vmatpush1.xpose.msra.mxu0 0.0
      %2015 = vmatprep.subr.mxu0 0.0
      %2016 = vmatpush1.xpose.msra.mxu0 0.0
      %2017 = vmatprep.subr.mxu0 0.0
      %2018 = vmatpush1.xpose.msra.mxu0 0.0
      %2019 = vmatprep.subr.mxu0 0.0
      %2020 = vmatpush1.xpose.msra.mxu0 0.0
      %2021 = vmatprep.subr.mxu0 0.0
      %2022 = vmatpush1.xpose.msra.mxu0 0.0
      %2023 = vmatprep.subr.mxu0 0.0
      %2024 = vmatpush1.xpose.msra.mxu0 0.0
      %2025 = vmatprep.subr.mxu0 0.0
      %2026 = vmatpush1.xpose.msra.mxu0 0.0
      %2027 = vmatprep.subr.mxu0 0.0
      %2028 = vmatpush1.xpose.msra.mxu0 0.0
      %2029 = vmatprep.subr.mxu0 0.0
      %2030 = vmatpush1.xpose.msra.mxu0 0.0
      %2031 = vmatprep.subr.mxu0 0.0
      %2032 = vmatpush1.xpose.msra.mxu0 0.0
      %2033 = vmatprep.subr.mxu0 0.0
      %2034 = vmatpush1.xpose.msra.mxu0 0.0
      %2035 = vmatprep.subr.mxu0 0.0
      %2036 = vmatpush1.xpose.msra.mxu0 0.0
      %2037 = vmatprep.subr.mxu0 0.0
      %2038 = vmatpush1.xpose.msra.mxu0 0.0
      %2039 = vmatprep.subr.mxu0 0.0
      %2040 = vmatpush1.xpose.msra.mxu0 0.0
      %2041 = vmatprep.subr.mxu0 0.0
      %2042 = vmatpush1.xpose.msra.mxu0 0.0
      %2043 = vmatprep.subr.mxu0 0.0
      %2044 = vmatpush1.xpose.msra.mxu0 0.0
      %2045 = vmatprep.subr.mxu0 0.0
      %2046 = vmatpush1.xpose.msra.mxu0 0.0
      %2047 = vmatprep.subr.mxu0 0.0
      %2048 = vmatpush1.xpose.msra.mxu0 0.0
      %2049 = vmatprep.subr.mxu0 0.0
      %2050 = vmatpush1.xpose.msra.mxu0 0.0
      %2051 = vmatprep.subr.mxu0 0.0
      %2052 = vmatpush1.xpose.msra.mxu0 0.0
      %2053 = vmatprep.mubr.f32.mxu0 0.0
      %2054 = vmatmul.mubr.f32.gmra.mrb[0].mxu0 %v1942
      %v2055 = vpop.f32.mrb[0].mxu0
      %v2056 = vadd.f32 0.0, %v2055
      %v2057 = vpop.f32.mrb[0].mxu0
      %2058 = vmatprep.mubr.f32.mxu0 0.0
      %2059 = vmatmul.mubr.f32.gmra.mrb[0].mxu0 %v1945
      %v2060 = vpop.f32.mrb[0].mxu0
      %v2061 = vadd.f32 0.0, %v2060
      %v2062 = vpop.f32.mrb[0].mxu0
      %2063 = vmatprep.mubr.f32.mxu0 0.0
      %2064 = vmatmul.mubr.f32.gmra.mrb[0].mxu0 %v1948
      %v2065 = vpop.f32.mrb[0].mxu0
      %v2066 = vadd.f32 0.0, %v2065
      %v2067 = vpop.f32.mrb[0].mxu0
      %2068 = vmatprep.mubr.f32.mxu0 0.0
      %2069 = vmatmul.mubr.f32.gmra.mrb[0].mxu0 %v1951
      %v2070 = vpop.f32.mrb[0].mxu0
      %v2071 = vadd.f32 0.0, %v2070
      %v2072 = vpop.f32.mrb[0].mxu0
      %2073 = vmatprep.mubr.f32.mxu0 0.0
      %2074 = vmatmul.mubr.f32.gmra.mrb[0].mxu0 %v1954
      %v2075 = vpop.f32.mrb[0].mxu0
      %v2076 = vadd.f32 0.0, %v2075
      %v2077 = vpop.f32.mrb[0].mxu0
      %2078 = vmatprep.mubr.f32.mxu0 0.0
      %2079 = vmatmul.mubr.f32.gmra.mrb[0].mxu0 %v1957
      %v2080 = vpop.f32.mrb[0].mxu0
      %v2081 = vadd.f32 0.0, %v2080
      %v2082 = vpop.f32.mrb[0].mxu0
      %2083 = vmatprep.mubr.f32.mxu0 0.0
      %2084 = vmatmul.mubr.f32.gmra.mrb[0].mxu0 %v1960
      %v2085 = vpop.f32.mrb[0].mxu0
      %v2086 = vadd.f32 0.0, %v2085
      %v2087 = vpop.f32.mrb[0].mxu0
      %2088 = vmatprep.mubr.f32.mxu0 0.0
      %2089 = vmatmul.mubr.f32.gmra.mrb[0].mxu0 %v1963
      %v2090 = vpop.f32.mrb[0].mxu0
      %v2091 = vadd.f32 0.0, %v2090
      %v2092 = vpop.f32.mrb[0].mxu0
      %2093 = vdwg.mxu0
      %v2095 = vsel %vm1634, %v1262, 0
      %v2098 = vsel %vm1634, %v1263, 0
      %v2101 = vsel %vm1634, %v1264, 0
      %v2104 = vsel %vm1634, %v1265, 0
      %v2107 = vsel %vm1634, %v1266, 0
      %v2110 = vsel %vm1634, %v1267, 0
      %v2113 = vsel %vm1634, %v1268, 0
      %v2116 = vsel %vm1634, %v1269, 0
      %v2119 = vsel %vm1634, %v1626, 0
      %v2122 = vsel %vm1634, %v1627, 0
      %v2125 = vsel %vm1634, %v1628, 0
      %v2128 = vsel %vm1634, %v1629, 0
      %v2131 = vsel %vm1634, %v1630, 0
      %v2134 = vsel %vm1634, %v1631, 0
      %v2137 = vsel %vm1634, %v1632, 0
      %v2140 = vsel %vm1634, %v1633, 0
      %2142 = vmatprep.subr.mxu0 0.0
      %2143 = vmatpush1.xpose.msra.mxu0 %v2119
      %2144 = vmatprep.subr.mxu0 0.0
      %2145 = vmatpush1.xpose.msra.mxu0 %v2122
      %2146 = vmatprep.subr.mxu0 0.0
      %2147 = vmatpush1.xpose.msra.mxu0 %v2125
      %2148 = vmatprep.subr.mxu0 0.0
      %2149 = vmatpush1.xpose.msra.mxu0 %v2128
      %2150 = vmatprep.subr.mxu0 0.0
      %2151 = vmatpush1.xpose.msra.mxu0 %v2131
      %2152 = vmatprep.subr.mxu0 0.0
      %2153 = vmatpush1.xpose.msra.mxu0 %v2134
      %2154 = vmatprep.subr.mxu0 0.0
      %2155 = vmatpush1.xpose.msra.mxu0 %v2137
      %2156 = vmatprep.subr.mxu0 0.0
      %2157 = vmatpush1.xpose.msra.mxu0 %v2140
      %2158 = vmatprep.subr.mxu0 0.0
      %2159 = vmatpush1.xpose.msra.mxu0 0.0
      %2160 = vmatprep.subr.mxu0 0.0
      %2161 = vmatpush1.xpose.msra.mxu0 0.0
      %2162 = vmatprep.subr.mxu0 0.0
      %2163 = vmatpush1.xpose.msra.mxu0 0.0
      %2164 = vmatprep.subr.mxu0 0.0
      %2165 = vmatpush1.xpose.msra.mxu0 0.0
      %2166 = vmatprep.subr.mxu0 0.0
      %2167 = vmatpush1.xpose.msra.mxu0 0.0
      %2168 = vmatprep.subr.mxu0 0.0
      %2169 = vmatpush1.xpose.msra.mxu0 0.0
      %2170 = vmatprep.subr.mxu0 0.0
      %2171 = vmatpush1.xpose.msra.mxu0 0.0
      %2172 = vmatprep.subr.mxu0 0.0
      %2173 = vmatpush1.xpose.msra.mxu0 0.0
      %2174 = vmatprep.subr.mxu0 0.0
      %2175 = vmatpush1.xpose.msra.mxu0 0.0
      %2176 = vmatprep.subr.mxu0 0.0
      %2177 = vmatpush1.xpose.msra.mxu0 0.0
      %2178 = vmatprep.subr.mxu0 0.0
      %2179 = vmatpush1.xpose.msra.mxu0 0.0
      %2180 = vmatprep.subr.mxu0 0.0
      %2181 = vmatpush1.xpose.msra.mxu0 0.0
      %2182 = vmatprep.subr.mxu0 0.0
      %2183 = vmatpush1.xpose.msra.mxu0 0.0
      %2184 = vmatprep.subr.mxu0 0.0
      %2185 = vmatpush1.xpose.msra.mxu0 0.0
      %2186 = vmatprep.subr.mxu0 0.0
      %2187 = vmatpush1.xpose.msra.mxu0 0.0
      %2188 = vmatprep.subr.mxu0 0.0
      %2189 = vmatpush1.xpose.msra.mxu0 0.0
      %2190 = vmatprep.subr.mxu0 0.0
      %2191 = vmatpush1.xpose.msra.mxu0 0.0
      %2192 = vmatprep.subr.mxu0 0.0
      %2193 = vmatpush1.xpose.msra.mxu0 0.0
      %2194 = vmatprep.subr.mxu0 0.0
      %2195 = vmatpush1.xpose.msra.mxu0 0.0
      %2196 = vmatprep.subr.mxu0 0.0
      %2197 = vmatpush1.xpose.msra.mxu0 0.0
      %2198 = vmatprep.subr.mxu0 0.0
      %2199 = vmatpush1.xpose.msra.mxu0 0.0
      %2200 = vmatprep.subr.mxu0 0.0
      %2201 = vmatpush1.xpose.msra.mxu0 0.0
      %2202 = vmatprep.subr.mxu0 0.0
      %2203 = vmatpush1.xpose.msra.mxu0 0.0
      %2204 = vmatprep.subr.mxu0 0.0
      %2205 = vmatpush1.xpose.msra.mxu0 0.0
      %2206 = vmatprep.mubr.f32.mxu0 0.0
      %2207 = vmatmul.mubr.f32.gmra.mrb[0].mxu0 %v2095
      %v2208 = vpop.f32.mrb[0].mxu0
      %v2209 = vadd.f32 0.0, %v2208
      %v2210 = vpop.f32.mrb[0].mxu0
      %2211 = vmatprep.mubr.f32.mxu0 0.0
      %2212 = vmatmul.mubr.f32.gmra.mrb[0].mxu0 %v2098
      %v2213 = vpop.f32.mrb[0].mxu0
      %v2214 = vadd.f32 0.0, %v2213
      %v2215 = vpop.f32.mrb[0].mxu0
      %2216 = vmatprep.mubr.f32.mxu0 0.0
      %2217 = vmatmul.mubr.f32.gmra.mrb[0].mxu0 %v2101
      %v2218 = vpop.f32.mrb[0].mxu0
      %v2219 = vadd.f32 0.0, %v2218
      %v2220 = vpop.f32.mrb[0].mxu0
      %2221 = vmatprep.mubr.f32.mxu0 0.0
      %2222 = vmatmul.mubr.f32.gmra.mrb[0].mxu0 %v2104
      %v2223 = vpop.f32.mrb[0].mxu0
      %v2224 = vadd.f32 0.0, %v2223
      %v2225 = vpop.f32.mrb[0].mxu0
      %2226 = vmatprep.mubr.f32.mxu0 0.0
      %2227 = vmatmul.mubr.f32.gmra.mrb[0].mxu0 %v2107
      %v2228 = vpop.f32.mrb[0].mxu0
      %v2229 = vadd.f32 0.0, %v2228
      %v2230 = vpop.f32.mrb[0].mxu0
      %2231 = vmatprep.mubr.f32.mxu0 0.0
      %2232 = vmatmul.mubr.f32.gmra.mrb[0].mxu0 %v2110
      %v2233 = vpop.f32.mrb[0].mxu0
      %v2234 = vadd.f32 0.0, %v2233
      %v2235 = vpop.f32.mrb[0].mxu0
      %2236 = vmatprep.mubr.f32.mxu0 0.0
      %2237 = vmatmul.mubr.f32.gmra.mrb[0].mxu0 %v2113
      %v2238 = vpop.f32.mrb[0].mxu0
      %v2239 = vadd.f32 0.0, %v2238
      %v2240 = vpop.f32.mrb[0].mxu0
      %2241 = vmatprep.mubr.f32.mxu0 0.0
      %2242 = vmatmul.mubr.f32.gmra.mrb[0].mxu0 %v2116
      %v2243 = vpop.f32.mrb[0].mxu0
      %v2244 = vadd.f32 0.0, %v2243
      %v2245 = vpop.f32.mrb[0].mxu0
      %2246 = vdwg.mxu0
      %vm2247 = vcmask 523264
      %v2248 = vsel %vm2247, %v1750, -inf
      %2249 = vmax.xlane.f32.xlu0 %v2248
      %v2250 = vpop.xlane.xlu0 %2249
      %v2251 = vsel %vm2247, %v1755, -inf
      %2252 = vmax.xlane.f32.xlu0 %v2251
      %v2253 = vpop.xlane.xlu0 %2252
      %v2254 = vsel %vm2247, %v1760, -inf
      %2255 = vmax.xlane.f32.xlu0 %v2254
      %v2256 = vpop.xlane.xlu0 %2255
      %v2257 = vsel %vm2247, %v1765, -inf
      %2258 = vmax.xlane.f32.xlu0 %v2257
      %v2259 = vpop.xlane.xlu0 %2258
      %v2260 = vsel %vm2247, %v1770, -inf
      %2261 = vmax.xlane.f32.xlu0 %v2260
      %v2262 = vpop.xlane.xlu0 %2261
      %v2263 = vsel %vm2247, %v1775, -inf
      %2264 = vmax.xlane.f32.xlu0 %v2263
      %v2265 = vpop.xlane.xlu0 %2264
      %v2266 = vsel %vm2247, %v1780, -inf
      %2267 = vmax.xlane.f32.xlu0 %v2266
      %v2268 = vpop.xlane.xlu0 %2267
      %v2269 = vsel %vm2247, %v1785, -inf
      %2270 = vmax.xlane.f32.xlu0 %v2269
      %v2271 = vpop.xlane.xlu0 %2270
      %v2272 = vsel %vm2247, %v1903, -inf
      %2273 = vmax.xlane.f32.xlu0 %v2272
      %v2274 = vpop.xlane.xlu0 %2273
      %v2275 = vsel %vm2247, %v1908, -inf
      %2276 = vmax.xlane.f32.xlu0 %v2275
      %v2277 = vpop.xlane.xlu0 %2276
      %v2278 = vsel %vm2247, %v1913, -inf
      %2279 = vmax.xlane.f32.xlu0 %v2278
      %v2280 = vpop.xlane.xlu0 %2279
      %v2281 = vsel %vm2247, %v1918, -inf
      %2282 = vmax.xlane.f32.xlu0 %v2281
      %v2283 = vpop.xlane.xlu0 %2282
      %v2284 = vsel %vm2247, %v1923, -inf
      %2285 = vmax.xlane.f32.xlu0 %v2284
      %v2286 = vpop.xlane.xlu0 %2285
      %v2287 = vsel %vm2247, %v1928, -inf
      %2288 = vmax.xlane.f32.xlu0 %v2287
      %v2289 = vpop.xlane.xlu0 %2288
      %v2290 = vsel %vm2247, %v1933, -inf
      %2291 = vmax.xlane.f32.xlu0 %v2290
      %v2292 = vpop.xlane.xlu0 %2291
      %v2293 = vsel %vm2247, %v1938, -inf
      %2294 = vmax.xlane.f32.xlu0 %v2293
      %v2295 = vpop.xlane.xlu0 %2294
      %v2296 = vsel %vm2247, %v2056, -inf
      %2297 = vmax.xlane.f32.xlu0 %v2296
      %v2298 = vpop.xlane.xlu0 %2297
      %v2299 = vsel %vm2247, %v2061, -inf
      %2300 = vmax.xlane.f32.xlu0 %v2299
      %v2301 = vpop.xlane.xlu0 %2300
      %v2302 = vsel %vm2247, %v2066, -inf
      %2303 = vmax.xlane.f32.xlu0 %v2302
      %v2304 = vpop.xlane.xlu0 %2303
      %v2305 = vsel %vm2247, %v2071, -inf
      %2306 = vmax.xlane.f32.xlu0 %v2305
      %v2307 = vpop.xlane.xlu0 %2306
      %v2308 = vsel %vm2247, %v2076, -inf
      %2309 = vmax.xlane.f32.xlu0 %v2308
      %v2310 = vpop.xlane.xlu0 %2309
      %v2311 = vsel %vm2247, %v2081, -inf
      %2312 = vmax.xlane.f32.xlu0 %v2311
      %v2313 = vpop.xlane.xlu0 %2312
      %v2314 = vsel %vm2247, %v2086, -inf
      %2315 = vmax.xlane.f32.xlu0 %v2314
      %v2316 = vpop.xlane.xlu0 %2315
      %v2317 = vsel %vm2247, %v2091, -inf
      %2318 = vmax.xlane.f32.xlu0 %v2317
      %v2319 = vpop.xlane.xlu0 %2318
      %v2320 = vsel %vm2247, %v2209, -inf
      %2321 = vmax.xlane.f32.xlu0 %v2320
      %v2322 = vpop.xlane.xlu0 %2321
      %v2323 = vsel %vm2247, %v2214, -inf
      %2324 = vmax.xlane.f32.xlu0 %v2323
      %v2325 = vpop.xlane.xlu0 %2324
      %v2326 = vsel %vm2247, %v2219, -inf
      %2327 = vmax.xlane.f32.xlu0 %v2326
      %v2328 = vpop.xlane.xlu0 %2327
      %v2329 = vsel %vm2247, %v2224, -inf
      %2330 = vmax.xlane.f32.xlu0 %v2329
      %v2331 = vpop.xlane.xlu0 %2330
      %v2332 = vsel %vm2247, %v2229, -inf
      %2333 = vmax.xlane.f32.xlu0 %v2332
      %v2334 = vpop.xlane.xlu0 %2333
      %v2335 = vsel %vm2247, %v2234, -inf
      %2336 = vmax.xlane.f32.xlu0 %v2335
      %v2337 = vpop.xlane.xlu0 %2336
      %v2338 = vsel %vm2247, %v2239, -inf
      %2339 = vmax.xlane.f32.xlu0 %v2338
      %v2340 = vpop.xlane.xlu0 %2339
      %v2341 = vsel %vm2247, %v2244, -inf
      %2342 = vmax.xlane.f32.xlu0 %v2341
      %v2343 = vpop.xlane.xlu0 %2342
      %v2344 = vsub.f32 %v1750, %v2250
      %v2345 = vsub.f32 %v1755, %v2253
      %v2346 = vsub.f32 %v1760, %v2256
      %v2347 = vsub.f32 %v1765, %v2259
      %v2348 = vsub.f32 %v1770, %v2262
      %v2349 = vsub.f32 %v1775, %v2265
      %v2350 = vsub.f32 %v1780, %v2268
      %v2351 = vsub.f32 %v1785, %v2271
      %v2352 = vsub.f32 %v1903, %v2274
      %v2353 = vsub.f32 %v1908, %v2277
      %v2354 = vsub.f32 %v1913, %v2280
      %v2355 = vsub.f32 %v1918, %v2283
      %v2356 = vsub.f32 %v1923, %v2286
      %v2357 = vsub.f32 %v1928, %v2289
      %v2358 = vsub.f32 %v1933, %v2292
      %v2359 = vsub.f32 %v1938, %v2295
      %v2360 = vsub.f32 %v2056, %v2298
      %v2361 = vsub.f32 %v2061, %v2301
      %v2362 = vsub.f32 %v2066, %v2304
      %v2363 = vsub.f32 %v2071, %v2307
      %v2364 = vsub.f32 %v2076, %v2310
      %v2365 = vsub.f32 %v2081, %v2313
      %v2366 = vsub.f32 %v2086, %v2316
      %v2367 = vsub.f32 %v2091, %v2319
      %v2368 = vsub.f32 %v2209, %v2322
      %v2369 = vsub.f32 %v2214, %v2325
      %v2370 = vsub.f32 %v2219, %v2328
      %v2371 = vsub.f32 %v2224, %v2331
      %v2372 = vsub.f32 %v2229, %v2334
      %v2373 = vsub.f32 %v2234, %v2337
      %v2374 = vsub.f32 %v2239, %v2340
      %v2375 = vsub.f32 %v2244, %v2343
      %v2376 = vmul.f32 %v2344, 1.442695
      %v2377 = vpow.pop %v2376
      %v2378 = vmul.f32 %v2345, 1.442695
      %v2379 = vpow.pop %v2378
      %v2380 = vmul.f32 %v2346, 1.442695
      %v2381 = vpow.pop %v2380
      %v2382 = vmul.f32 %v2347, 1.442695
      %v2383 = vpow.pop %v2382
      %v2384 = vmul.f32 %v2348, 1.442695
      %v2385 = vpow.pop %v2384
      %v2386 = vmul.f32 %v2349, 1.442695
      %v2387 = vpow.pop %v2386
      %v2388 = vmul.f32 %v2350, 1.442695
      %v2389 = vpow.pop %v2388
      %v2390 = vmul.f32 %v2351, 1.442695
      %v2391 = vpow.pop %v2390
      %v2392 = vmul.f32 %v2352, 1.442695
      %v2393 = vpow.pop %v2392
      %v2394 = vmul.f32 %v2353, 1.442695
      %v2395 = vpow.pop %v2394
      %v2396 = vmul.f32 %v2354, 1.442695
      %v2397 = vpow.pop %v2396
      %v2398 = vmul.f32 %v2355, 1.442695
      %v2399 = vpow.pop %v2398
      %v2400 = vmul.f32 %v2356, 1.442695
      %v2401 = vpow.pop %v2400
      %v2402 = vmul.f32 %v2357, 1.442695
      %v2403 = vpow.pop %v2402
      %v2404 = vmul.f32 %v2358, 1.442695
      %v2405 = vpow.pop %v2404
      %v2406 = vmul.f32 %v2359, 1.442695
      %v2407 = vpow.pop %v2406
      %v2408 = vmul.f32 %v2360, 1.442695
      %v2409 = vpow.pop %v2408
      %v2410 = vmul.f32 %v2361, 1.442695
      %v2411 = vpow.pop %v2410
      %v2412 = vmul.f32 %v2362, 1.442695
      %v2413 = vpow.pop %v2412
      %v2414 = vmul.f32 %v2363, 1.442695
      %v2415 = vpow.pop %v2414
      %v2416 = vmul.f32 %v2364, 1.442695
      %v2417 = vpow.pop %v2416
      %v2418 = vmul.f32 %v2365, 1.442695
      %v2419 = vpow.pop %v2418
      %v2420 = vmul.f32 %v2366, 1.442695
      %v2421 = vpow.pop %v2420
      %v2422 = vmul.f32 %v2367, 1.442695
      %v2423 = vpow.pop %v2422
      %v2424 = vmul.f32 %v2368, 1.442695
      %v2425 = vpow.pop %v2424
      %v2426 = vmul.f32 %v2369, 1.442695
      %v2427 = vpow.pop %v2426
      %v2428 = vmul.f32 %v2370, 1.442695
      %v2429 = vpow.pop %v2428
      %v2430 = vmul.f32 %v2371, 1.442695
      %v2431 = vpow.pop %v2430
      %v2432 = vmul.f32 %v2372, 1.442695
      %v2433 = vpow.pop %v2432
      %v2434 = vmul.f32 %v2373, 1.442695
      %v2435 = vpow.pop %v2434
      %v2436 = vmul.f32 %v2374, 1.442695
      %v2437 = vpow.pop %v2436
      %v2438 = vmul.f32 %v2375, 1.442695
      %v2439 = vpow.pop %v2438
      %v2440 = vsel %vm2247, %v2377, 0.0
      %2441 = vadd.xlane.f32.xlu0 %v2440
      %v2442 = vpop.xlane.xlu0 %2441
      %v2443 = vsel %vm2247, %v2379, 0.0
      %2444 = vadd.xlane.f32.xlu0 %v2443
      %v2445 = vpop.xlane.xlu0 %2444
      %v2446 = vsel %vm2247, %v2381, 0.0
      %2447 = vadd.xlane.f32.xlu0 %v2446
      %v2448 = vpop.xlane.xlu0 %2447
      %v2449 = vsel %vm2247, %v2383, 0.0
      %2450 = vadd.xlane.f32.xlu0 %v2449
      %v2451 = vpop.xlane.xlu0 %2450
      %v2452 = vsel %vm2247, %v2385, 0.0
      %2453 = vadd.xlane.f32.xlu0 %v2452
      %v2454 = vpop.xlane.xlu0 %2453
      %v2455 = vsel %vm2247, %v2387, 0.0
      %2456 = vadd.xlane.f32.xlu0 %v2455
      %v2457 = vpop.xlane.xlu0 %2456
      %v2458 = vsel %vm2247, %v2389, 0.0
      %2459 = vadd.xlane.f32.xlu0 %v2458
      %v2460 = vpop.xlane.xlu0 %2459
      %v2461 = vsel %vm2247, %v2391, 0.0
      %2462 = vadd.xlane.f32.xlu0 %v2461
      %v2463 = vpop.xlane.xlu0 %2462
      %v2464 = vsel %vm2247, %v2393, 0.0
      %2465 = vadd.xlane.f32.xlu0 %v2464
      %v2466 = vpop.xlane.xlu0 %2465
      %v2467 = vsel %vm2247, %v2395, 0.0
      %2468 = vadd.xlane.f32.xlu0 %v2467
      %v2469 = vpop.xlane.xlu0 %2468
      %v2470 = vsel %vm2247, %v2397, 0.0
      %2471 = vadd.xlane.f32.xlu0 %v2470
      %v2472 = vpop.xlane.xlu0 %2471
      %v2473 = vsel %vm2247, %v2399, 0.0
      %2474 = vadd.xlane.f32.xlu0 %v2473
      %v2475 = vpop.xlane.xlu0 %2474
      %v2476 = vsel %vm2247, %v2401, 0.0
      %2477 = vadd.xlane.f32.xlu0 %v2476
      %v2478 = vpop.xlane.xlu0 %2477
      %v2479 = vsel %vm2247, %v2403, 0.0
      %2480 = vadd.xlane.f32.xlu0 %v2479
      %v2481 = vpop.xlane.xlu0 %2480
      %v2482 = vsel %vm2247, %v2405, 0.0
      %2483 = vadd.xlane.f32.xlu0 %v2482
      %v2484 = vpop.xlane.xlu0 %2483
      %v2485 = vsel %vm2247, %v2407, 0.0
      %2486 = vadd.xlane.f32.xlu0 %v2485
      %v2487 = vpop.xlane.xlu0 %2486
      %v2488 = vsel %vm2247, %v2409, 0.0
      %2489 = vadd.xlane.f32.xlu0 %v2488
      %v2490 = vpop.xlane.xlu0 %2489
      %v2491 = vsel %vm2247, %v2411, 0.0
      %2492 = vadd.xlane.f32.xlu0 %v2491
      %v2493 = vpop.xlane.xlu0 %2492
      %v2494 = vsel %vm2247, %v2413, 0.0
      %2495 = vadd.xlane.f32.xlu0 %v2494
      %v2496 = vpop.xlane.xlu0 %2495
      %v2497 = vsel %vm2247, %v2415, 0.0
      %2498 = vadd.xlane.f32.xlu0 %v2497
      %v2499 = vpop.xlane.xlu0 %2498
      %v2500 = vsel %vm2247, %v2417, 0.0
      %2501 = vadd.xlane.f32.xlu0 %v2500
      %v2502 = vpop.xlane.xlu0 %2501
      %v2503 = vsel %vm2247, %v2419, 0.0
      %2504 = vadd.xlane.f32.xlu0 %v2503
      %v2505 = vpop.xlane.xlu0 %2504
      %v2506 = vsel %vm2247, %v2421, 0.0
      %2507 = vadd.xlane.f32.xlu0 %v2506
      %v2508 = vpop.xlane.xlu0 %2507
      %v2509 = vsel %vm2247, %v2423, 0.0
      %2510 = vadd.xlane.f32.xlu0 %v2509
      %v2511 = vpop.xlane.xlu0 %2510
      %v2512 = vsel %vm2247, %v2425, 0.0
      %2513 = vadd.xlane.f32.xlu0 %v2512
      %v2514 = vpop.xlane.xlu0 %2513
      %v2515 = vsel %vm2247, %v2427, 0.0
      %2516 = vadd.xlane.f32.xlu0 %v2515
      %v2517 = vpop.xlane.xlu0 %2516
      %v2518 = vsel %vm2247, %v2429, 0.0
      %2519 = vadd.xlane.f32.xlu0 %v2518
      %v2520 = vpop.xlane.xlu0 %2519
      %v2521 = vsel %vm2247, %v2431, 0.0
      %2522 = vadd.xlane.f32.xlu0 %v2521
      %v2523 = vpop.xlane.xlu0 %2522
      %v2524 = vsel %vm2247, %v2433, 0.0
      %2525 = vadd.xlane.f32.xlu0 %v2524
      %v2526 = vpop.xlane.xlu0 %2525
      %v2527 = vsel %vm2247, %v2435, 0.0
      %2528 = vadd.xlane.f32.xlu0 %v2527
      %v2529 = vpop.xlane.xlu0 %2528
      %v2530 = vsel %vm2247, %v2437, 0.0
      %2531 = vadd.xlane.f32.xlu0 %v2530
      %v2532 = vpop.xlane.xlu0 %2531
      %v2533 = vsel %vm2247, %v2439, 0.0
      %2534 = vadd.xlane.f32.xlu0 %v2533
      %v2535 = vpop.xlane.xlu0 %2534
      %v2537 = vsel %vm2247, %v2377, 0
      %v2540 = vsel %vm2247, %v2379, 0
      %v2543 = vsel %vm2247, %v2381, 0
      %v2546 = vsel %vm2247, %v2383, 0
      %v2549 = vsel %vm2247, %v2385, 0
      %v2552 = vsel %vm2247, %v2387, 0
      %v2555 = vsel %vm2247, %v2389, 0
      %v2558 = vsel %vm2247, %v2391, 0
      %2560 = vmatprep.subr.mxu0 0.0
      %2561 = vmatpush1.msra.mxu0 %v716
      %2562 = vmatprep.subr.mxu0 0.0
      %2563 = vmatpush1.msra.mxu0 %v721
      %2564 = vmatprep.subr.mxu0 0.0
      %2565 = vmatpush1.msra.mxu0 %v726
      %2566 = vmatprep.subr.mxu0 0.0
      %2567 = vmatpush1.msra.mxu0 %v731
      %2568 = vmatprep.subr.mxu0 0.0
      %2569 = vmatpush1.msra.mxu0 %v736
      %2570 = vmatprep.subr.mxu0 0.0
      %2571 = vmatpush1.msra.mxu0 %v741
      %2572 = vmatprep.subr.mxu0 0.0
      %2573 = vmatpush1.msra.mxu0 %v746
      %2574 = vmatprep.subr.mxu0 0.0
      %2575 = vmatpush1.msra.mxu0 %v751
      %2576 = vmatprep.subr.mxu0 0.0
      %2577 = vmatpush1.msra.mxu0 0.0
      %2578 = vmatprep.subr.mxu0 0.0
      %2579 = vmatpush1.msra.mxu0 0.0
      %2580 = vmatprep.subr.mxu0 0.0
      %2581 = vmatpush1.msra.mxu0 0.0
      %2582 = vmatprep.subr.mxu0 0.0
      %2583 = vmatpush1.msra.mxu0 0.0
      %2584 = vmatprep.subr.mxu0 0.0
      %2585 = vmatpush1.msra.mxu0 0.0
      %2586 = vmatprep.subr.mxu0 0.0
      %2587 = vmatpush1.msra.mxu0 0.0
      %2588 = vmatprep.subr.mxu0 0.0
      %2589 = vmatpush1.msra.mxu0 0.0
      %2590 = vmatprep.subr.mxu0 0.0
      %2591 = vmatpush1.msra.mxu0 0.0
      %2592 = vmatprep.subr.mxu0 0.0
      %2593 = vmatpush1.msra.mxu0 0.0
      %2594 = vmatprep.subr.mxu0 0.0
      %2595 = vmatpush1.msra.mxu0 0.0
      %2596 = vmatprep.subr.mxu0 0.0
      %2597 = vmatpush1.msra.mxu0 0.0
      %2598 = vmatprep.subr.mxu0 0.0
      %2599 = vmatpush1.msra.mxu0 0.0
      %2600 = vmatprep.subr.mxu0 0.0
      %2601 = vmatpush1.msra.mxu0 0.0
      %2602 = vmatprep.subr.mxu0 0.0
      %2603 = vmatpush1.msra.mxu0 0.0
      %2604 = vmatprep.subr.mxu0 0.0
      %2605 = vmatpush1.msra.mxu0 0.0
      %2606 = vmatprep.subr.mxu0 0.0
      %2607 = vmatpush1.msra.mxu0 0.0
      %2608 = vmatprep.subr.mxu0 0.0
      %2609 = vmatpush1.msra.mxu0 0.0
      %2610 = vmatprep.subr.mxu0 0.0
      %2611 = vmatpush1.msra.mxu0 0.0
      %2612 = vmatprep.subr.mxu0 0.0
      %2613 = vmatpush1.msra.mxu0 0.0
      %2614 = vmatprep.subr.mxu0 0.0
      %2615 = vmatpush1.msra.mxu0 0.0
      %2616 = vmatprep.subr.mxu0 0.0
      %2617 = vmatpush1.msra.mxu0 0.0
      %2618 = vmatprep.subr.mxu0 0.0
      %2619 = vmatpush1.msra.mxu0 0.0
      %2620 = vmatprep.subr.mxu0 0.0
      %2621 = vmatpush1.msra.mxu0 0.0
      %2622 = vmatprep.subr.mxu0 0.0
      %2623 = vmatpush1.msra.mxu0 0.0
      %2624 = vmatprep.mubr.f32.mxu0 0.0
      %2625 = vmatmul.mubr.f32.gmra.mrb[0].mxu0 %v2537
      %v2626 = vpop.f32.mrb[0].mxu0
      %v2627 = vadd.f32 0.0, %v2626
      %v2628 = vpop.f32.mrb[0].mxu0
      %2629 = vmatprep.mubr.f32.mxu0 0.0
      %2630 = vmatmul.mubr.f32.gmra.mrb[0].mxu0 %v2540
      %v2631 = vpop.f32.mrb[0].mxu0
      %v2632 = vadd.f32 0.0, %v2631
      %v2633 = vpop.f32.mrb[0].mxu0
      %2634 = vmatprep.mubr.f32.mxu0 0.0
      %2635 = vmatmul.mubr.f32.gmra.mrb[0].mxu0 %v2543
      %v2636 = vpop.f32.mrb[0].mxu0
      %v2637 = vadd.f32 0.0, %v2636
      %v2638 = vpop.f32.mrb[0].mxu0
      %2639 = vmatprep.mubr.f32.mxu0 0.0
      %2640 = vmatmul.mubr.f32.gmra.mrb[0].mxu0 %v2546
      %v2641 = vpop.f32.mrb[0].mxu0
      %v2642 = vadd.f32 0.0, %v2641
      %v2643 = vpop.f32.mrb[0].mxu0
      %2644 = vmatprep.mubr.f32.mxu0 0.0
      %2645 = vmatmul.mubr.f32.gmra.mrb[0].mxu0 %v2549
      %v2646 = vpop.f32.mrb[0].mxu0
      %v2647 = vadd.f32 0.0, %v2646
      %v2648 = vpop.f32.mrb[0].mxu0
      %2649 = vmatprep.mubr.f32.mxu0 0.0
      %2650 = vmatmul.mubr.f32.gmra.mrb[0].mxu0 %v2552
      %v2651 = vpop.f32.mrb[0].mxu0
      %v2652 = vadd.f32 0.0, %v2651
      %v2653 = vpop.f32.mrb[0].mxu0
      %2654 = vmatprep.mubr.f32.mxu0 0.0
      %2655 = vmatmul.mubr.f32.gmra.mrb[0].mxu0 %v2555
      %v2656 = vpop.f32.mrb[0].mxu0
      %v2657 = vadd.f32 0.0, %v2656
      %v2658 = vpop.f32.mrb[0].mxu0
      %2659 = vmatprep.mubr.f32.mxu0 0.0
      %2660 = vmatmul.mubr.f32.gmra.mrb[0].mxu0 %v2558
      %v2661 = vpop.f32.mrb[0].mxu0
      %v2662 = vadd.f32 0.0, %v2661
      %v2663 = vpop.f32.mrb[0].mxu0
      %2664 = vdwg.mxu0
      %v2666 = vsel %vm2247, %v2393, 0
      %v2669 = vsel %vm2247, %v2395, 0
      %v2672 = vsel %vm2247, %v2397, 0
      %v2675 = vsel %vm2247, %v2399, 0
      %v2678 = vsel %vm2247, %v2401, 0
      %v2681 = vsel %vm2247, %v2403, 0
      %v2684 = vsel %vm2247, %v2405, 0
      %v2687 = vsel %vm2247, %v2407, 0
      %2689 = vmatprep.subr.mxu0 0.0
      %2690 = vmatpush1.msra.mxu0 %v756
      %2691 = vmatprep.subr.mxu0 0.0
      %2692 = vmatpush1.msra.mxu0 %v761
      %2693 = vmatprep.subr.mxu0 0.0
      %2694 = vmatpush1.msra.mxu0 %v766
      %2695 = vmatprep.subr.mxu0 0.0
      %2696 = vmatpush1.msra.mxu0 %v771
      %2697 = vmatprep.subr.mxu0 0.0
      %2698 = vmatpush1.msra.mxu0 %v776
      %2699 = vmatprep.subr.mxu0 0.0
      %2700 = vmatpush1.msra.mxu0 %v781
      %2701 = vmatprep.subr.mxu0 0.0
      %2702 = vmatpush1.msra.mxu0 %v786
      %2703 = vmatprep.subr.mxu0 0.0
      %2704 = vmatpush1.msra.mxu0 %v791
      %2705 = vmatprep.subr.mxu0 0.0
      %2706 = vmatpush1.msra.mxu0 0.0
      %2707 = vmatprep.subr.mxu0 0.0
      %2708 = vmatpush1.msra.mxu0 0.0
      %2709 = vmatprep.subr.mxu0 0.0
      %2710 = vmatpush1.msra.mxu0 0.0
      %2711 = vmatprep.subr.mxu0 0.0
      %2712 = vmatpush1.msra.mxu0 0.0
      %2713 = vmatprep.subr.mxu0 0.0
      %2714 = vmatpush1.msra.mxu0 0.0
      %2715 = vmatprep.subr.mxu0 0.0
      %2716 = vmatpush1.msra.mxu0 0.0
      %2717 = vmatprep.subr.mxu0 0.0
      %2718 = vmatpush1.msra.mxu0 0.0
      %2719 = vmatprep.subr.mxu0 0.0
      %2720 = vmatpush1.msra.mxu0 0.0
      %2721 = vmatprep.subr.mxu0 0.0
      %2722 = vmatpush1.msra.mxu0 0.0
      %2723 = vmatprep.subr.mxu0 0.0
      %2724 = vmatpush1.msra.mxu0 0.0
      %2725 = vmatprep.subr.mxu0 0.0
      %2726 = vmatpush1.msra.mxu0 0.0
      %2727 = vmatprep.subr.mxu0 0.0
      %2728 = vmatpush1.msra.mxu0 0.0
      %2729 = vmatprep.subr.mxu0 0.0
      %2730 = vmatpush1.msra.mxu0 0.0
      %2731 = vmatprep.subr.mxu0 0.0
      %2732 = vmatpush1.msra.mxu0 0.0
      %2733 = vmatprep.subr.mxu0 0.0
      %2734 = vmatpush1.msra.mxu0 0.0
      %2735 = vmatprep.subr.mxu0 0.0
      %2736 = vmatpush1.msra.mxu0 0.0
      %2737 = vmatprep.subr.mxu0 0.0
      %2738 = vmatpush1.msra.mxu0 0.0
      %2739 = vmatprep.subr.mxu0 0.0
      %2740 = vmatpush1.msra.mxu0 0.0
      %2741 = vmatprep.subr.mxu0 0.0
      %2742 = vmatpush1.msra.mxu0 0.0
      %2743 = vmatprep.subr.mxu0 0.0
      %2744 = vmatpush1.msra.mxu0 0.0
      %2745 = vmatprep.subr.mxu0 0.0
      %2746 = vmatpush1.msra.mxu0 0.0
      %2747 = vmatprep.subr.mxu0 0.0
      %2748 = vmatpush1.msra.mxu0 0.0
      %2749 = vmatprep.subr.mxu0 0.0
      %2750 = vmatpush1.msra.mxu0 0.0
      %2751 = vmatprep.subr.mxu0 0.0
      %2752 = vmatpush1.msra.mxu0 0.0
      %2753 = vmatprep.mubr.f32.mxu0 0.0
      %2754 = vmatmul.mubr.f32.gmra.mrb[0].mxu0 %v2666
      %v2755 = vpop.f32.mrb[0].mxu0
      %v2756 = vadd.f32 0.0, %v2755
      %v2757 = vpop.f32.mrb[0].mxu0
      %2758 = vmatprep.mubr.f32.mxu0 0.0
      %2759 = vmatmul.mubr.f32.gmra.mrb[0].mxu0 %v2669
      %v2760 = vpop.f32.mrb[0].mxu0
      %v2761 = vadd.f32 0.0, %v2760
      %v2762 = vpop.f32.mrb[0].mxu0
      %2763 = vmatprep.mubr.f32.mxu0 0.0
      %2764 = vmatmul.mubr.f32.gmra.mrb[0].mxu0 %v2672
      %v2765 = vpop.f32.mrb[0].mxu0
      %v2766 = vadd.f32 0.0, %v2765
      %v2767 = vpop.f32.mrb[0].mxu0
      %2768 = vmatprep.mubr.f32.mxu0 0.0
      %2769 = vmatmul.mubr.f32.gmra.mrb[0].mxu0 %v2675
      %v2770 = vpop.f32.mrb[0].mxu0
      %v2771 = vadd.f32 0.0, %v2770
      %v2772 = vpop.f32.mrb[0].mxu0
      %2773 = vmatprep.mubr.f32.mxu0 0.0
      %2774 = vmatmul.mubr.f32.gmra.mrb[0].mxu0 %v2678
      %v2775 = vpop.f32.mrb[0].mxu0
      %v2776 = vadd.f32 0.0, %v2775
      %v2777 = vpop.f32.mrb[0].mxu0
      %2778 = vmatprep.mubr.f32.mxu0 0.0
      %2779 = vmatmul.mubr.f32.gmra.mrb[0].mxu0 %v2681
      %v2780 = vpop.f32.mrb[0].mxu0
      %v2781 = vadd.f32 0.0, %v2780
      %v2782 = vpop.f32.mrb[0].mxu0
      %2783 = vmatprep.mubr.f32.mxu0 0.0
      %2784 = vmatmul.mubr.f32.gmra.mrb[0].mxu0 %v2684
      %v2785 = vpop.f32.mrb[0].mxu0
      %v2786 = vadd.f32 0.0, %v2785
      %v2787 = vpop.f32.mrb[0].mxu0
      %2788 = vmatprep.mubr.f32.mxu0 0.0
      %2789 = vmatmul.mubr.f32.gmra.mrb[0].mxu0 %v2687
      %v2790 = vpop.f32.mrb[0].mxu0
      %v2791 = vadd.f32 0.0, %v2790
      %v2792 = vpop.f32.mrb[0].mxu0
      %2793 = vdwg.mxu0
      %v2795 = vsel %vm2247, %v2409, 0
      %v2798 = vsel %vm2247, %v2411, 0
      %v2801 = vsel %vm2247, %v2413, 0
      %v2804 = vsel %vm2247, %v2415, 0
      %v2807 = vsel %vm2247, %v2417, 0
      %v2810 = vsel %vm2247, %v2419, 0
      %v2813 = vsel %vm2247, %v2421, 0
      %v2816 = vsel %vm2247, %v2423, 0
      %2818 = vmatprep.subr.mxu0 0.0
      %2819 = vmatpush1.msra.mxu0 %v796
      %2820 = vmatprep.subr.mxu0 0.0
      %2821 = vmatpush1.msra.mxu0 %v801
      %2822 = vmatprep.subr.mxu0 0.0
      %2823 = vmatpush1.msra.mxu0 %v806
      %2824 = vmatprep.subr.mxu0 0.0
      %2825 = vmatpush1.msra.mxu0 %v811
      %2826 = vmatprep.subr.mxu0 0.0
      %2827 = vmatpush1.msra.mxu0 %v816
      %2828 = vmatprep.subr.mxu0 0.0
      %2829 = vmatpush1.msra.mxu0 %v821
      %2830 = vmatprep.subr.mxu0 0.0
      %2831 = vmatpush1.msra.mxu0 %v826
      %2832 = vmatprep.subr.mxu0 0.0
      %2833 = vmatpush1.msra.mxu0 %v831
      %2834 = vmatprep.subr.mxu0 0.0
      %2835 = vmatpush1.msra.mxu0 0.0
      %2836 = vmatprep.subr.mxu0 0.0
      %2837 = vmatpush1.msra.mxu0 0.0
      %2838 = vmatprep.subr.mxu0 0.0
      %2839 = vmatpush1.msra.mxu0 0.0
      %2840 = vmatprep.subr.mxu0 0.0
      %2841 = vmatpush1.msra.mxu0 0.0
      %2842 = vmatprep.subr.mxu0 0.0
      %2843 = vmatpush1.msra.mxu0 0.0
      %2844 = vmatprep.subr.mxu0 0.0
      %2845 = vmatpush1.msra.mxu0 0.0
      %2846 = vmatprep.subr.mxu0 0.0
      %2847 = vmatpush1.msra.mxu0 0.0
      %2848 = vmatprep.subr.mxu0 0.0
      %2849 = vmatpush1.msra.mxu0 0.0
      %2850 = vmatprep.subr.mxu0 0.0
      %2851 = vmatpush1.msra.mxu0 0.0
      %2852 = vmatprep.subr.mxu0 0.0
      %2853 = vmatpush1.msra.mxu0 0.0
      %2854 = vmatprep.subr.mxu0 0.0
      %2855 = vmatpush1.msra.mxu0 0.0
      %2856 = vmatprep.subr.mxu0 0.0
      %2857 = vmatpush1.msra.mxu0 0.0
      %2858 = vmatprep.subr.mxu0 0.0
      %2859 = vmatpush1.msra.mxu0 0.0
      %2860 = vmatprep.subr.mxu0 0.0
      %2861 = vmatpush1.msra.mxu0 0.0
      %2862 = vmatprep.subr.mxu0 0.0
      %2863 = vmatpush1.msra.mxu0 0.0
      %2864 = vmatprep.subr.mxu0 0.0
      %2865 = vmatpush1.msra.mxu0 0.0
      %2866 = vmatprep.subr.mxu0 0.0
      %2867 = vmatpush1.msra.mxu0 0.0
      %2868 = vmatprep.subr.mxu0 0.0
      %2869 = vmatpush1.msra.mxu0 0.0
      %2870 = vmatprep.subr.mxu0 0.0
      %2871 = vmatpush1.msra.mxu0 0.0
      %2872 = vmatprep.subr.mxu0 0.0
      %2873 = vmatpush1.msra.mxu0 0.0
      %2874 = vmatprep.subr.mxu0 0.0
      %2875 = vmatpush1.msra.mxu0 0.0
      %2876 = vmatprep.subr.mxu0 0.0
      %2877 = vmatpush1.msra.mxu0 0.0
      %2878 = vmatprep.subr.mxu0 0.0
      %2879 = vmatpush1.msra.mxu0 0.0
      %2880 = vmatprep.subr.mxu0 0.0
      %2881 = vmatpush1.msra.mxu0 0.0
      %2882 = vmatprep.mubr.f32.mxu0 0.0
      %2883 = vmatmul.mubr.f32.gmra.mrb[0].mxu0 %v2795
      %v2884 = vpop.f32.mrb[0].mxu0
      %v2885 = vadd.f32 0.0, %v2884
      %v2886 = vpop.f32.mrb[0].mxu0
      %2887 = vmatprep.mubr.f32.mxu0 0.0
      %2888 = vmatmul.mubr.f32.gmra.mrb[0].mxu0 %v2798
      %v2889 = vpop.f32.mrb[0].mxu0
      %v2890 = vadd.f32 0.0, %v2889
      %v2891 = vpop.f32.mrb[0].mxu0
      %2892 = vmatprep.mubr.f32.mxu0 0.0
      %2893 = vmatmul.mubr.f32.gmra.mrb[0].mxu0 %v2801
      %v2894 = vpop.f32.mrb[0].mxu0
      %v2895 = vadd.f32 0.0, %v2894
      %v2896 = vpop.f32.mrb[0].mxu0
      %2897 = vmatprep.mubr.f32.mxu0 0.0
      %2898 = vmatmul.mubr.f32.gmra.mrb[0].mxu0 %v2804
      %v2899 = vpop.f32.mrb[0].mxu0
      %v2900 = vadd.f32 0.0, %v2899
      %v2901 = vpop.f32.mrb[0].mxu0
      %2902 = vmatprep.mubr.f32.mxu0 0.0
      %2903 = vmatmul.mubr.f32.gmra.mrb[0].mxu0 %v2807
      %v2904 = vpop.f32.mrb[0].mxu0
      %v2905 = vadd.f32 0.0, %v2904
      %v2906 = vpop.f32.mrb[0].mxu0
      %2907 = vmatprep.mubr.f32.mxu0 0.0
      %2908 = vmatmul.mubr.f32.gmra.mrb[0].mxu0 %v2810
      %v2909 = vpop.f32.mrb[0].mxu0
      %v2910 = vadd.f32 0.0, %v2909
      %v2911 = vpop.f32.mrb[0].mxu0
      %2912 = vmatprep.mubr.f32.mxu0 0.0
      %2913 = vmatmul.mubr.f32.gmra.mrb[0].mxu0 %v2813
      %v2914 = vpop.f32.mrb[0].mxu0
      %v2915 = vadd.f32 0.0, %v2914
      %v2916 = vpop.f32.mrb[0].mxu0
      %2917 = vmatprep.mubr.f32.mxu0 0.0
      %2918 = vmatmul.mubr.f32.gmra.mrb[0].mxu0 %v2816
      %v2919 = vpop.f32.mrb[0].mxu0
      %v2920 = vadd.f32 0.0, %v2919
      %v2921 = vpop.f32.mrb[0].mxu0
      %2922 = vdwg.mxu0
      %v2924 = vsel %vm2247, %v2425, 0
      %v2927 = vsel %vm2247, %v2427, 0
      %v2930 = vsel %vm2247, %v2429, 0
      %v2933 = vsel %vm2247, %v2431, 0
      %v2936 = vsel %vm2247, %v2433, 0
      %v2939 = vsel %vm2247, %v2435, 0
      %v2942 = vsel %vm2247, %v2437, 0
      %v2945 = vsel %vm2247, %v2439, 0
      %2947 = vmatprep.subr.mxu0 0.0
      %2948 = vmatpush1.msra.mxu0 %v836
      %2949 = vmatprep.subr.mxu0 0.0
      %2950 = vmatpush1.msra.mxu0 %v841
      %2951 = vmatprep.subr.mxu0 0.0
      %2952 = vmatpush1.msra.mxu0 %v846
      %2953 = vmatprep.subr.mxu0 0.0
      %2954 = vmatpush1.msra.mxu0 %v851
      %2955 = vmatprep.subr.mxu0 0.0
      %2956 = vmatpush1.msra.mxu0 %v856
      %2957 = vmatprep.subr.mxu0 0.0
      %2958 = vmatpush1.msra.mxu0 %v861
      %2959 = vmatprep.subr.mxu0 0.0
      %2960 = vmatpush1.msra.mxu0 %v866
      %2961 = vmatprep.subr.mxu0 0.0
      %2962 = vmatpush1.msra.mxu0 %v871
      %2963 = vmatprep.subr.mxu0 0.0
      %2964 = vmatpush1.msra.mxu0 0.0
      %2965 = vmatprep.subr.mxu0 0.0
      %2966 = vmatpush1.msra.mxu0 0.0
      %2967 = vmatprep.subr.mxu0 0.0
      %2968 = vmatpush1.msra.mxu0 0.0
      %2969 = vmatprep.subr.mxu0 0.0
      %2970 = vmatpush1.msra.mxu0 0.0
      %2971 = vmatprep.subr.mxu0 0.0
      %2972 = vmatpush1.msra.mxu0 0.0
      %2973 = vmatprep.subr.mxu0 0.0
      %2974 = vmatpush1.msra.mxu0 0.0
      %2975 = vmatprep.subr.mxu0 0.0
      %2976 = vmatpush1.msra.mxu0 0.0
      %2977 = vmatprep.subr.mxu0 0.0
      %2978 = vmatpush1.msra.mxu0 0.0
      %2979 = vmatprep.subr.mxu0 0.0
      %2980 = vmatpush1.msra.mxu0 0.0
      %2981 = vmatprep.subr.mxu0 0.0
      %2982 = vmatpush1.msra.mxu0 0.0
      %2983 = vmatprep.subr.mxu0 0.0
      %2984 = vmatpush1.msra.mxu0 0.0
      %2985 = vmatprep.subr.mxu0 0.0
      %2986 = vmatpush1.msra.mxu0 0.0
      %2987 = vmatprep.subr.mxu0 0.0
      %2988 = vmatpush1.msra.mxu0 0.0
      %2989 = vmatprep.subr.mxu0 0.0
      %2990 = vmatpush1.msra.mxu0 0.0
      %2991 = vmatprep.subr.mxu0 0.0
      %2992 = vmatpush1.msra.mxu0 0.0
      %2993 = vmatprep.subr.mxu0 0.0
      %2994 = vmatpush1.msra.mxu0 0.0
      %2995 = vmatprep.subr.mxu0 0.0
      %2996 = vmatpush1.msra.mxu0 0.0
      %2997 = vmatprep.subr.mxu0 0.0
      %2998 = vmatpush1.msra.mxu0 0.0
      %2999 = vmatprep.subr.mxu0 0.0
      %3000 = vmatpush1.msra.mxu0 0.0
      %3001 = vmatprep.subr.mxu0 0.0
      %3002 = vmatpush1.msra.mxu0 0.0
      %3003 = vmatprep.subr.mxu0 0.0
      %3004 = vmatpush1.msra.mxu0 0.0
      %3005 = vmatprep.subr.mxu0 0.0
      %3006 = vmatpush1.msra.mxu0 0.0
      %3007 = vmatprep.subr.mxu0 0.0
      %3008 = vmatpush1.msra.mxu0 0.0
      %3009 = vmatprep.subr.mxu0 0.0
      %3010 = vmatpush1.msra.mxu0 0.0
      %3011 = vmatprep.mubr.f32.mxu0 0.0
      %3012 = vmatmul.mubr.f32.gmra.mrb[0].mxu0 %v2924
      %v3013 = vpop.f32.mrb[0].mxu0
      %v3014 = vadd.f32 0.0, %v3013
      %v3015 = vpop.f32.mrb[0].mxu0
      %3016 = vmatprep.mubr.f32.mxu0 0.0
      %3017 = vmatmul.mubr.f32.gmra.mrb[0].mxu0 %v2927
      %v3018 = vpop.f32.mrb[0].mxu0
      %v3019 = vadd.f32 0.0, %v3018
      %v3020 = vpop.f32.mrb[0].mxu0
      %3021 = vmatprep.mubr.f32.mxu0 0.0
      %3022 = vmatmul.mubr.f32.gmra.mrb[0].mxu0 %v2930
      %v3023 = vpop.f32.mrb[0].mxu0
      %v3024 = vadd.f32 0.0, %v3023
      %v3025 = vpop.f32.mrb[0].mxu0
      %3026 = vmatprep.mubr.f32.mxu0 0.0
      %3027 = vmatmul.mubr.f32.gmra.mrb[0].mxu0 %v2933
      %v3028 = vpop.f32.mrb[0].mxu0
      %v3029 = vadd.f32 0.0, %v3028
      %v3030 = vpop.f32.mrb[0].mxu0
      %3031 = vmatprep.mubr.f32.mxu0 0.0
      %3032 = vmatmul.mubr.f32.gmra.mrb[0].mxu0 %v2936
      %v3033 = vpop.f32.mrb[0].mxu0
      %v3034 = vadd.f32 0.0, %v3033
      %v3035 = vpop.f32.mrb[0].mxu0
      %3036 = vmatprep.mubr.f32.mxu0 0.0
      %3037 = vmatmul.mubr.f32.gmra.mrb[0].mxu0 %v2939
      %v3038 = vpop.f32.mrb[0].mxu0
      %v3039 = vadd.f32 0.0, %v3038
      %v3040 = vpop.f32.mrb[0].mxu0
      %3041 = vmatprep.mubr.f32.mxu0 0.0
      %3042 = vmatmul.mubr.f32.gmra.mrb[0].mxu0 %v2942
      %v3043 = vpop.f32.mrb[0].mxu0
      %v3044 = vadd.f32 0.0, %v3043
      %v3045 = vpop.f32.mrb[0].mxu0
      %3046 = vmatprep.mubr.f32.mxu0 0.0
      %3047 = vmatmul.mubr.f32.gmra.mrb[0].mxu0 %v2945
      %v3048 = vpop.f32.mrb[0].mxu0
      %v3049 = vadd.f32 0.0, %v3048
      %v3050 = vpop.f32.mrb[0].mxu0
      %3051 = vdwg.mxu0
      %v3052 = vrcp.pop %v2442
      %v3053 = vrcp.pop %v2445
      %v3054 = vrcp.pop %v2448
      %v3055 = vrcp.pop %v2451
      %v3056 = vrcp.pop %v2454
      %v3057 = vrcp.pop %v2457
      %v3058 = vrcp.pop %v2460
      %v3059 = vrcp.pop %v2463
      %v3060 = vrcp.pop %v2466
      %v3061 = vrcp.pop %v2469
      %v3062 = vrcp.pop %v2472
      %v3063 = vrcp.pop %v2475
      %v3064 = vrcp.pop %v2478
      %v3065 = vrcp.pop %v2481
      %v3066 = vrcp.pop %v2484
      %v3067 = vrcp.pop %v2487
      %v3068 = vrcp.pop %v2490
      %v3069 = vrcp.pop %v2493
      %v3070 = vrcp.pop %v2496
      %v3071 = vrcp.pop %v2499
      %v3072 = vrcp.pop %v2502
      %v3073 = vrcp.pop %v2505
      %v3074 = vrcp.pop %v2508
      %v3075 = vrcp.pop %v2511
      %v3076 = vrcp.pop %v2514
      %v3077 = vrcp.pop %v2517
      %v3078 = vrcp.pop %v2520
      %v3079 = vrcp.pop %v2523
      %v3080 = vrcp.pop %v2526
      %v3081 = vrcp.pop %v2529
      %v3082 = vrcp.pop %v2532
      %v3083 = vrcp.pop %v2535
      %v3084 = vmul.f32 %v2627, %v3052
      %v3085 = vmul.f32 %v2632, %v3053
      %v3086 = vmul.f32 %v2637, %v3054
      %v3087 = vmul.f32 %v2642, %v3055
      %v3088 = vmul.f32 %v2647, %v3056
      %v3089 = vmul.f32 %v2652, %v3057
      %v3090 = vmul.f32 %v2657, %v3058
      %v3091 = vmul.f32 %v2662, %v3059
      %v3092 = vmul.f32 %v2756, %v3060
      %v3093 = vmul.f32 %v2761, %v3061
      %v3094 = vmul.f32 %v2766, %v3062
      %v3095 = vmul.f32 %v2771, %v3063
      %v3096 = vmul.f32 %v2776, %v3064
      %v3097 = vmul.f32 %v2781, %v3065
      %v3098 = vmul.f32 %v2786, %v3066
      %v3099 = vmul.f32 %v2791, %v3067
      %v3100 = vmul.f32 %v2885, %v3068
      %v3101 = vmul.f32 %v2890, %v3069
      %v3102 = vmul.f32 %v2895, %v3070
      %v3103 = vmul.f32 %v2900, %v3071
      %v3104 = vmul.f32 %v2905, %v3072
      %v3105 = vmul.f32 %v2910, %v3073
      %v3106 = vmul.f32 %v2915, %v3074
      %v3107 = vmul.f32 %v2920, %v3075
      %v3108 = vmul.f32 %v3014, %v3076
      %v3109 = vmul.f32 %v3019, %v3077
      %v3110 = vmul.f32 %v3024, %v3078
      %v3111 = vmul.f32 %v3029, %v3079
      %v3112 = vmul.f32 %v3034, %v3080
      %v3113 = vmul.f32 %v3039, %v3081
      %v3114 = vmul.f32 %v3044, %v3082
      %v3115 = vmul.f32 %v3049, %v3083
      %v3116 = vld [vmem:[%s6] sm:$0xff]
      %v3117 = vld [vmem:[%s6 + $0x8] sm:$0xff]
      %s3118 = scalar_lea.vmem %s5, 32
      %v3119 = vld [vmem:[%s3118] sm:$0xff]
      %v3120 = vld [vmem:[%s3118 + $0x8] sm:$0xff]
      %v3121 = vld [vmem:[%s3118 + $0x10] sm:$0xff]
      %v3122 = vld [vmem:[%s3118 + $0x18] sm:$0xff]
      %s3123 = scalar_lea.vmem %s9, 1
      %v3124 = vld [vmem:[%s3123] sm:$0x1]
      %v3126 = vlaneseq
      %v3127 = vshrl.u32 %v3126, 7
      %v3128 = vsub.s32 0, %v3127
      %v3129 = vrot.slane %v3124, %v3128
      %3131 = vmatprep.subr.mxu0 0.0
      %3132 = vmatpush1.msra.mxu0 %v3119
      %3133 = vmatprep.subr.mxu0 0.0
      %3134 = vmatpush1.msra.mxu0 %v3120
      %3135 = vmatprep.subr.mxu0 0.0
      %3136 = vmatpush1.msra.mxu0 %v3121
      %3137 = vmatprep.subr.mxu0 0.0
      %3138 = vmatpush1.msra.mxu0 %v3122
      %3139 = vmatprep.subr.mxu0 0.0
      %3140 = vmatpush1.msra.mxu0 0.0
      %3141 = vmatprep.subr.mxu0 0.0
      %3142 = vmatpush1.msra.mxu0 0.0
      %3143 = vmatprep.subr.mxu0 0.0
      %3144 = vmatpush1.msra.mxu0 0.0
      %3145 = vmatprep.subr.mxu0 0.0
      %3146 = vmatpush1.msra.mxu0 0.0
      %3147 = vmatprep.subr.mxu0 0.0
      %3148 = vmatpush1.msra.mxu0 0.0
      %3149 = vmatprep.subr.mxu0 0.0
      %3150 = vmatpush1.msra.mxu0 0.0
      %3151 = vmatprep.subr.mxu0 0.0
      %3152 = vmatpush1.msra.mxu0 0.0
      %3153 = vmatprep.subr.mxu0 0.0
      %3154 = vmatpush1.msra.mxu0 0.0
      %3155 = vmatprep.subr.mxu0 0.0
      %3156 = vmatpush1.msra.mxu0 0.0
      %3157 = vmatprep.subr.mxu0 0.0
      %3158 = vmatpush1.msra.mxu0 0.0
      %3159 = vmatprep.subr.mxu0 0.0
      %3160 = vmatpush1.msra.mxu0 0.0
      %3161 = vmatprep.subr.mxu0 0.0
      %3162 = vmatpush1.msra.mxu0 0.0
      %3163 = vmatprep.subr.mxu0 0.0
      %3164 = vmatpush1.msra.mxu0 0.0
      %3165 = vmatprep.subr.mxu0 0.0
      %3166 = vmatpush1.msra.mxu0 0.0
      %3167 = vmatprep.subr.mxu0 0.0
      %3168 = vmatpush1.msra.mxu0 0.0
      %3169 = vmatprep.subr.mxu0 0.0
      %3170 = vmatpush1.msra.mxu0 0.0
      %3171 = vmatprep.subr.mxu0 0.0
      %3172 = vmatpush1.msra.mxu0 0.0
      %3173 = vmatprep.subr.mxu0 0.0
      %3174 = vmatpush1.msra.mxu0 0.0
      %3175 = vmatprep.subr.mxu0 0.0
      %3176 = vmatpush1.msra.mxu0 0.0
      %3177 = vmatprep.subr.mxu0 0.0
      %3178 = vmatpush1.msra.mxu0 0.0
      %3179 = vmatprep.subr.mxu0 0.0
      %3180 = vmatpush1.msra.mxu0 0.0
      %3181 = vmatprep.subr.mxu0 0.0
      %3182 = vmatpush1.msra.mxu0 0.0
      %3183 = vmatprep.subr.mxu0 0.0
      %3184 = vmatpush1.msra.mxu0 0.0
      %3185 = vmatprep.subr.mxu0 0.0
      %3186 = vmatpush1.msra.mxu0 0.0
      %3187 = vmatprep.subr.mxu0 0.0
      %3188 = vmatpush1.msra.mxu0 0.0
      %3189 = vmatprep.subr.mxu0 0.0
      %3190 = vmatpush1.msra.mxu0 0.0
      %3191 = vmatprep.subr.mxu0 0.0
      %3192 = vmatpush1.msra.mxu0 0.0
      %3193 = vmatprep.subr.mxu0 0.0
      %3194 = vmatpush1.msra.mxu0 0.0
      %3195 = vmatprep.mubr.f32.mxu0 0.0
      %3196 = vmatmul.mubr.f32.gmra.mrb[0].mxu0 %v554
      %v3197 = vpop.f32.mrb[0].mxu0
      %v3198 = vadd.f32 %v3129, %v3197
      %v3199 = vpop.f32.mrb[0].mxu0
      %3200 = vmatprep.mubr.f32.mxu0 0.0
      %3201 = vmatmul.mubr.f32.gmra.mrb[0].mxu0 %v557
      %v3202 = vpop.f32.mrb[0].mxu0
      %v3203 = vadd.f32 %v3129, %v3202
      %v3204 = vpop.f32.mrb[0].mxu0
      %3205 = vmatprep.mubr.f32.mxu0 0.0
      %3206 = vmatmul.mubr.f32.gmra.mrb[0].mxu0 %v560
      %v3207 = vpop.f32.mrb[0].mxu0
      %v3208 = vadd.f32 %v3129, %v3207
      %v3209 = vpop.f32.mrb[0].mxu0
      %3210 = vmatprep.mubr.f32.mxu0 0.0
      %3211 = vmatmul.mubr.f32.gmra.mrb[0].mxu0 %v563
      %v3212 = vpop.f32.mrb[0].mxu0
      %v3213 = vadd.f32 %v3129, %v3212
      %v3214 = vpop.f32.mrb[0].mxu0
      %3215 = vmatprep.mubr.f32.mxu0 0.0
      %3216 = vmatmul.mubr.f32.gmra.mrb[0].mxu0 %v566
      %v3217 = vpop.f32.mrb[0].mxu0
      %v3218 = vadd.f32 %v3129, %v3217
      %v3219 = vpop.f32.mrb[0].mxu0
      %3220 = vmatprep.mubr.f32.mxu0 0.0
      %3221 = vmatmul.mubr.f32.gmra.mrb[0].mxu0 %v569
      %v3222 = vpop.f32.mrb[0].mxu0
      %v3223 = vadd.f32 %v3129, %v3222
      %v3224 = vpop.f32.mrb[0].mxu0
      %3225 = vmatprep.mubr.f32.mxu0 0.0
      %3226 = vmatmul.mubr.f32.gmra.mrb[0].mxu0 %v572
      %v3227 = vpop.f32.mrb[0].mxu0
      %v3228 = vadd.f32 %v3129, %v3227
      %v3229 = vpop.f32.mrb[0].mxu0
      %3230 = vmatprep.mubr.f32.mxu0 0.0
      %3231 = vmatmul.mubr.f32.gmra.mrb[0].mxu0 %v575
      %v3232 = vpop.f32.mrb[0].mxu0
      %v3233 = vadd.f32 %v3129, %v3232
      %v3234 = vpop.f32.mrb[0].mxu0
      %3235 = vmatprep.mubr.f32.mxu0 0.0
      %3236 = vmatmul.mubr.f32.gmra.mrb[0].mxu0 %v578
      %v3237 = vpop.f32.mrb[0].mxu0
      %v3238 = vadd.f32 %v3129, %v3237
      %v3239 = vpop.f32.mrb[0].mxu0
      %3240 = vmatprep.mubr.f32.mxu0 0.0
      %3241 = vmatmul.mubr.f32.gmra.mrb[0].mxu0 %v581
      %v3242 = vpop.f32.mrb[0].mxu0
      %v3243 = vadd.f32 %v3129, %v3242
      %v3244 = vpop.f32.mrb[0].mxu0
      %3245 = vmatprep.mubr.f32.mxu0 0.0
      %3246 = vmatmul.mubr.f32.gmra.mrb[0].mxu0 %v584
      %v3247 = vpop.f32.mrb[0].mxu0
      %v3248 = vadd.f32 %v3129, %v3247
      %v3249 = vpop.f32.mrb[0].mxu0
      %3250 = vmatprep.mubr.f32.mxu0 0.0
      %3251 = vmatmul.mubr.f32.gmra.mrb[0].mxu0 %v587
      %v3252 = vpop.f32.mrb[0].mxu0
      %v3253 = vadd.f32 %v3129, %v3252
      %v3254 = vpop.f32.mrb[0].mxu0
      %3255 = vmatprep.mubr.f32.mxu0 0.0
      %3256 = vmatmul.mubr.f32.gmra.mrb[0].mxu0 %v590
      %v3257 = vpop.f32.mrb[0].mxu0
      %v3258 = vadd.f32 %v3129, %v3257
      %v3259 = vpop.f32.mrb[0].mxu0
      %3260 = vmatprep.mubr.f32.mxu0 0.0
      %3261 = vmatmul.mubr.f32.gmra.mrb[0].mxu0 %v593
      %v3262 = vpop.f32.mrb[0].mxu0
      %v3263 = vadd.f32 %v3129, %v3262
      %v3264 = vpop.f32.mrb[0].mxu0
      %3265 = vmatprep.mubr.f32.mxu0 0.0
      %3266 = vmatmul.mubr.f32.gmra.mrb[0].mxu0 %v596
      %v3267 = vpop.f32.mrb[0].mxu0
      %v3268 = vadd.f32 %v3129, %v3267
      %v3269 = vpop.f32.mrb[0].mxu0
      %3270 = vmatprep.mubr.f32.mxu0 0.0
      %3271 = vmatmul.mubr.f32.gmra.mrb[0].mxu0 %v599
      %v3272 = vpop.f32.mrb[0].mxu0
      %v3273 = vadd.f32 %v3129, %v3272
      %v3274 = vpop.f32.mrb[0].mxu0
      %3275 = vmatprep.mubr.f32.mxu0 0.0
      %3276 = vmatmul.mubr.f32.gmra.mrb[0].mxu0 %v602
      %v3277 = vpop.f32.mrb[0].mxu0
      %v3278 = vadd.f32 %v3129, %v3277
      %v3279 = vpop.f32.mrb[0].mxu0
      %3280 = vmatprep.mubr.f32.mxu0 0.0
      %3281 = vmatmul.mubr.f32.gmra.mrb[0].mxu0 %v605
      %v3282 = vpop.f32.mrb[0].mxu0
      %v3283 = vadd.f32 %v3129, %v3282
      %v3284 = vpop.f32.mrb[0].mxu0
      %3285 = vmatprep.mubr.f32.mxu0 0.0
      %3286 = vmatmul.mubr.f32.gmra.mrb[0].mxu0 %v608
      %v3287 = vpop.f32.mrb[0].mxu0
      %v3288 = vadd.f32 %v3129, %v3287
      %v3289 = vpop.f32.mrb[0].mxu0
      %3290 = vmatprep.mubr.f32.mxu0 0.0
      %3291 = vmatmul.mubr.f32.gmra.mrb[0].mxu0 %v611
      %v3292 = vpop.f32.mrb[0].mxu0
      %v3293 = vadd.f32 %v3129, %v3292
      %v3294 = vpop.f32.mrb[0].mxu0
      %3295 = vmatprep.mubr.f32.mxu0 0.0
      %3296 = vmatmul.mubr.f32.gmra.mrb[0].mxu0 %v614
      %v3297 = vpop.f32.mrb[0].mxu0
      %v3298 = vadd.f32 %v3129, %v3297
      %v3299 = vpop.f32.mrb[0].mxu0
      %3300 = vmatprep.mubr.f32.mxu0 0.0
      %3301 = vmatmul.mubr.f32.gmra.mrb[0].mxu0 %v617
      %v3302 = vpop.f32.mrb[0].mxu0
      %v3303 = vadd.f32 %v3129, %v3302
      %v3304 = vpop.f32.mrb[0].mxu0
      %3305 = vmatprep.mubr.f32.mxu0 0.0
      %3306 = vmatmul.mubr.f32.gmra.mrb[0].mxu0 %v620
      %v3307 = vpop.f32.mrb[0].mxu0
      %v3308 = vadd.f32 %v3129, %v3307
      %v3309 = vpop.f32.mrb[0].mxu0
      %3310 = vmatprep.mubr.f32.mxu0 0.0
      %3311 = vmatmul.mubr.f32.gmra.mrb[0].mxu0 %v623
      %v3312 = vpop.f32.mrb[0].mxu0
      %v3313 = vadd.f32 %v3129, %v3312
      %v3314 = vpop.f32.mrb[0].mxu0
      %3315 = vmatprep.mubr.f32.mxu0 0.0
      %3316 = vmatmul.mubr.f32.gmra.mrb[0].mxu0 %v626
      %v3317 = vpop.f32.mrb[0].mxu0
      %v3318 = vadd.f32 %v3129, %v3317
      %v3319 = vpop.f32.mrb[0].mxu0
      %3320 = vmatprep.mubr.f32.mxu0 0.0
      %3321 = vmatmul.mubr.f32.gmra.mrb[0].mxu0 %v629
      %v3322 = vpop.f32.mrb[0].mxu0
      %v3323 = vadd.f32 %v3129, %v3322
      %v3324 = vpop.f32.mrb[0].mxu0
      %3325 = vmatprep.mubr.f32.mxu0 0.0
      %3326 = vmatmul.mubr.f32.gmra.mrb[0].mxu0 %v632
      %v3327 = vpop.f32.mrb[0].mxu0
      %v3328 = vadd.f32 %v3129, %v3327
      %v3329 = vpop.f32.mrb[0].mxu0
      %3330 = vmatprep.mubr.f32.mxu0 0.0
      %3331 = vmatmul.mubr.f32.gmra.mrb[0].mxu0 %v635
      %v3332 = vpop.f32.mrb[0].mxu0
      %v3333 = vadd.f32 %v3129, %v3332
      %v3334 = vpop.f32.mrb[0].mxu0
      %3335 = vmatprep.mubr.f32.mxu0 0.0
      %3336 = vmatmul.mubr.f32.gmra.mrb[0].mxu0 %v638
      %v3337 = vpop.f32.mrb[0].mxu0
      %v3338 = vadd.f32 %v3129, %v3337
      %v3339 = vpop.f32.mrb[0].mxu0
      %3340 = vmatprep.mubr.f32.mxu0 0.0
      %3341 = vmatmul.mubr.f32.gmra.mrb[0].mxu0 %v641
      %v3342 = vpop.f32.mrb[0].mxu0
      %v3343 = vadd.f32 %v3129, %v3342
      %v3344 = vpop.f32.mrb[0].mxu0
      %3345 = vmatprep.mubr.f32.mxu0 0.0
      %3346 = vmatmul.mubr.f32.gmra.mrb[0].mxu0 %v644
      %v3347 = vpop.f32.mrb[0].mxu0
      %v3348 = vadd.f32 %v3129, %v3347
      %v3349 = vpop.f32.mrb[0].mxu0
      %3350 = vmatprep.mubr.f32.mxu0 0.0
      %3351 = vmatmul.mubr.f32.gmra.mrb[0].mxu0 %v647
      %v3352 = vpop.f32.mrb[0].mxu0
      %v3353 = vadd.f32 %v3129, %v3352
      %v3354 = vpop.f32.mrb[0].mxu0
      %3355 = vdwg.mxu0
      %s3356 = scalar_lea.vmem %s3, 32
      %v3357 = vld [vmem:[%s3356] sm:$0xff]
      %v3358 = vld [vmem:[%s3356 + $0x8] sm:$0xff]
      %v3359 = vld [vmem:[%s3356 + $0x10] sm:$0xff]
      %v3360 = vld [vmem:[%s3356 + $0x18] sm:$0xff]
      %s3361 = scalar_lea.vmem %s7, 1
      %v3362 = vld [vmem:[%s3361] sm:$0x1]
      %v3364 = vlaneseq
      %v3365 = vshrl.u32 %v3364, 7
      %v3366 = vsub.s32 0, %v3365
      %v3367 = vrot.slane %v3362, %v3366
      %3369 = vmatprep.subr.mxu0 0.0
      %3370 = vmatpush1.msra.mxu0 %v3357
      %3371 = vmatprep.subr.mxu0 0.0
      %3372 = vmatpush1.msra.mxu0 %v3358
      %3373 = vmatprep.subr.mxu0 0.0
      %3374 = vmatpush1.msra.mxu0 %v3359
      %3375 = vmatprep.subr.mxu0 0.0
      %3376 = vmatpush1.msra.mxu0 %v3360
      %3377 = vmatprep.subr.mxu0 0.0
      %3378 = vmatpush1.msra.mxu0 0.0
      %3379 = vmatprep.subr.mxu0 0.0
      %3380 = vmatpush1.msra.mxu0 0.0
      %3381 = vmatprep.subr.mxu0 0.0
      %3382 = vmatpush1.msra.mxu0 0.0
      %3383 = vmatprep.subr.mxu0 0.0
      %3384 = vmatpush1.msra.mxu0 0.0
      %3385 = vmatprep.subr.mxu0 0.0
      %3386 = vmatpush1.msra.mxu0 0.0
      %3387 = vmatprep.subr.mxu0 0.0
      %3388 = vmatpush1.msra.mxu0 0.0
      %3389 = vmatprep.subr.mxu0 0.0
      %3390 = vmatpush1.msra.mxu0 0.0
      %3391 = vmatprep.subr.mxu0 0.0
      %3392 = vmatpush1.msra.mxu0 0.0
      %3393 = vmatprep.subr.mxu0 0.0
      %3394 = vmatpush1.msra.mxu0 0.0
      %3395 = vmatprep.subr.mxu0 0.0
      %3396 = vmatpush1.msra.mxu0 0.0
      %3397 = vmatprep.subr.mxu0 0.0
      %3398 = vmatpush1.msra.mxu0 0.0
      %3399 = vmatprep.subr.mxu0 0.0
      %3400 = vmatpush1.msra.mxu0 0.0
      %3401 = vmatprep.subr.mxu0 0.0
      %3402 = vmatpush1.msra.mxu0 0.0
      %3403 = vmatprep.subr.mxu0 0.0
      %3404 = vmatpush1.msra.mxu0 0.0
      %3405 = vmatprep.subr.mxu0 0.0
      %3406 = vmatpush1.msra.mxu0 0.0
      %3407 = vmatprep.subr.mxu0 0.0
      %3408 = vmatpush1.msra.mxu0 0.0
      %3409 = vmatprep.subr.mxu0 0.0
      %3410 = vmatpush1.msra.mxu0 0.0
      %3411 = vmatprep.subr.mxu0 0.0
      %3412 = vmatpush1.msra.mxu0 0.0
      %3413 = vmatprep.subr.mxu0 0.0
      %3414 = vmatpush1.msra.mxu0 0.0
      %3415 = vmatprep.subr.mxu0 0.0
      %3416 = vmatpush1.msra.mxu0 0.0
      %3417 = vmatprep.subr.mxu0 0.0
      %3418 = vmatpush1.msra.mxu0 0.0
      %3419 = vmatprep.subr.mxu0 0.0
      %3420 = vmatpush1.msra.mxu0 0.0
      %3421 = vmatprep.subr.mxu0 0.0
      %3422 = vmatpush1.msra.mxu0 0.0
      %3423 = vmatprep.subr.mxu0 0.0
      %3424 = vmatpush1.msra.mxu0 0.0
      %3425 = vmatprep.subr.mxu0 0.0
      %3426 = vmatpush1.msra.mxu0 0.0
      %3427 = vmatprep.subr.mxu0 0.0
      %3428 = vmatpush1.msra.mxu0 0.0
      %3429 = vmatprep.subr.mxu0 0.0
      %3430 = vmatpush1.msra.mxu0 0.0
      %3431 = vmatprep.subr.mxu0 0.0
      %3432 = vmatpush1.msra.mxu0 0.0
      %3433 = vmatprep.mubr.f32.mxu0 0.0
      %3434 = vmatmul.mubr.f32.gmra.mrb[0].mxu0 %v886
      %v3435 = vpop.f32.mrb[0].mxu0
      %v3436 = vadd.f32 %v3367, %v3435
      %v3437 = vpop.f32.mrb[0].mxu0
      %3438 = vmatprep.mubr.f32.mxu0 0.0
      %3439 = vmatmul.mubr.f32.gmra.mrb[0].mxu0 %v889
      %v3440 = vpop.f32.mrb[0].mxu0
      %v3441 = vadd.f32 %v3367, %v3440
      %v3442 = vpop.f32.mrb[0].mxu0
      %3443 = vmatprep.mubr.f32.mxu0 0.0
      %3444 = vmatmul.mubr.f32.gmra.mrb[0].mxu0 %v892
      %v3445 = vpop.f32.mrb[0].mxu0
      %v3446 = vadd.f32 %v3367, %v3445
      %v3447 = vpop.f32.mrb[0].mxu0
      %3448 = vmatprep.mubr.f32.mxu0 0.0
      %3449 = vmatmul.mubr.f32.gmra.mrb[0].mxu0 %v895
      %v3450 = vpop.f32.mrb[0].mxu0
      %v3451 = vadd.f32 %v3367, %v3450
      %v3452 = vpop.f32.mrb[0].mxu0
      %3453 = vmatprep.mubr.f32.mxu0 0.0
      %3454 = vmatmul.mubr.f32.gmra.mrb[0].mxu0 %v898
      %v3455 = vpop.f32.mrb[0].mxu0
      %v3456 = vadd.f32 %v3367, %v3455
      %v3457 = vpop.f32.mrb[0].mxu0
      %3458 = vmatprep.mubr.f32.mxu0 0.0
      %3459 = vmatmul.mubr.f32.gmra.mrb[0].mxu0 %v901
      %v3460 = vpop.f32.mrb[0].mxu0
      %v3461 = vadd.f32 %v3367, %v3460
      %v3462 = vpop.f32.mrb[0].mxu0
      %3463 = vmatprep.mubr.f32.mxu0 0.0
      %3464 = vmatmul.mubr.f32.gmra.mrb[0].mxu0 %v904
      %v3465 = vpop.f32.mrb[0].mxu0
      %v3466 = vadd.f32 %v3367, %v3465
      %v3467 = vpop.f32.mrb[0].mxu0
      %3468 = vmatprep.mubr.f32.mxu0 0.0
      %3469 = vmatmul.mubr.f32.gmra.mrb[0].mxu0 %v907
      %v3470 = vpop.f32.mrb[0].mxu0
      %v3471 = vadd.f32 %v3367, %v3470
      %v3472 = vpop.f32.mrb[0].mxu0
      %3473 = vmatprep.mubr.f32.mxu0 0.0
      %3474 = vmatmul.mubr.f32.gmra.mrb[0].mxu0 %v910
      %v3475 = vpop.f32.mrb[0].mxu0
      %v3476 = vadd.f32 %v3367, %v3475
      %v3477 = vpop.f32.mrb[0].mxu0
      %3478 = vmatprep.mubr.f32.mxu0 0.0
      %3479 = vmatmul.mubr.f32.gmra.mrb[0].mxu0 %v913
      %v3480 = vpop.f32.mrb[0].mxu0
      %v3481 = vadd.f32 %v3367, %v3480
      %v3482 = vpop.f32.mrb[0].mxu0
      %3483 = vmatprep.mubr.f32.mxu0 0.0
      %3484 = vmatmul.mubr.f32.gmra.mrb[0].mxu0 %v916
      %v3485 = vpop.f32.mrb[0].mxu0
      %v3486 = vadd.f32 %v3367, %v3485
      %v3487 = vpop.f32.mrb[0].mxu0
      %3488 = vmatprep.mubr.f32.mxu0 0.0
      %3489 = vmatmul.mubr.f32.gmra.mrb[0].mxu0 %v919
      %v3490 = vpop.f32.mrb[0].mxu0
      %v3491 = vadd.f32 %v3367, %v3490
      %v3492 = vpop.f32.mrb[0].mxu0
      %3493 = vmatprep.mubr.f32.mxu0 0.0
      %3494 = vmatmul.mubr.f32.gmra.mrb[0].mxu0 %v922
      %v3495 = vpop.f32.mrb[0].mxu0
      %v3496 = vadd.f32 %v3367, %v3495
      %v3497 = vpop.f32.mrb[0].mxu0
      %3498 = vmatprep.mubr.f32.mxu0 0.0
      %3499 = vmatmul.mubr.f32.gmra.mrb[0].mxu0 %v925
      %v3500 = vpop.f32.mrb[0].mxu0
      %v3501 = vadd.f32 %v3367, %v3500
      %v3502 = vpop.f32.mrb[0].mxu0
      %3503 = vmatprep.mubr.f32.mxu0 0.0
      %3504 = vmatmul.mubr.f32.gmra.mrb[0].mxu0 %v928
      %v3505 = vpop.f32.mrb[0].mxu0
      %v3506 = vadd.f32 %v3367, %v3505
      %v3507 = vpop.f32.mrb[0].mxu0
      %3508 = vmatprep.mubr.f32.mxu0 0.0
      %3509 = vmatmul.mubr.f32.gmra.mrb[0].mxu0 %v931
      %v3510 = vpop.f32.mrb[0].mxu0
      %v3511 = vadd.f32 %v3367, %v3510
      %v3512 = vpop.f32.mrb[0].mxu0
      %3513 = vmatprep.mubr.f32.mxu0 0.0
      %3514 = vmatmul.mubr.f32.gmra.mrb[0].mxu0 %v934
      %v3515 = vpop.f32.mrb[0].mxu0
      %v3516 = vadd.f32 %v3367, %v3515
      %v3517 = vpop.f32.mrb[0].mxu0
      %3518 = vmatprep.mubr.f32.mxu0 0.0
      %3519 = vmatmul.mubr.f32.gmra.mrb[0].mxu0 %v937
      %v3520 = vpop.f32.mrb[0].mxu0
      %v3521 = vadd.f32 %v3367, %v3520
      %v3522 = vpop.f32.mrb[0].mxu0
      %3523 = vmatprep.mubr.f32.mxu0 0.0
      %3524 = vmatmul.mubr.f32.gmra.mrb[0].mxu0 %v940
      %v3525 = vpop.f32.mrb[0].mxu0
      %v3526 = vadd.f32 %v3367, %v3525
      %v3527 = vpop.f32.mrb[0].mxu0
      %3528 = vmatprep.mubr.f32.mxu0 0.0
      %3529 = vmatmul.mubr.f32.gmra.mrb[0].mxu0 %v943
      %v3530 = vpop.f32.mrb[0].mxu0
      %v3531 = vadd.f32 %v3367, %v3530
      %v3532 = vpop.f32.mrb[0].mxu0
      %3533 = vmatprep.mubr.f32.mxu0 0.0
      %3534 = vmatmul.mubr.f32.gmra.mrb[0].mxu0 %v946
      %v3535 = vpop.f32.mrb[0].mxu0
      %v3536 = vadd.f32 %v3367, %v3535
      %v3537 = vpop.f32.mrb[0].mxu0
      %3538 = vmatprep.mubr.f32.mxu0 0.0
      %3539 = vmatmul.mubr.f32.gmra.mrb[0].mxu0 %v949
      %v3540 = vpop.f32.mrb[0].mxu0
      %v3541 = vadd.f32 %v3367, %v3540
      %v3542 = vpop.f32.mrb[0].mxu0
      %3543 = vmatprep.mubr.f32.mxu0 0.0
      %3544 = vmatmul.mubr.f32.gmra.mrb[0].mxu0 %v952
      %v3545 = vpop.f32.mrb[0].mxu0
      %v3546 = vadd.f32 %v3367, %v3545
      %v3547 = vpop.f32.mrb[0].mxu0
      %3548 = vmatprep.mubr.f32.mxu0 0.0
      %3549 = vmatmul.mubr.f32.gmra.mrb[0].mxu0 %v955
      %v3550 = vpop.f32.mrb[0].mxu0
      %v3551 = vadd.f32 %v3367, %v3550
      %v3552 = vpop.f32.mrb[0].mxu0
      %3553 = vmatprep.mubr.f32.mxu0 0.0
      %3554 = vmatmul.mubr.f32.gmra.mrb[0].mxu0 %v958
      %v3555 = vpop.f32.mrb[0].mxu0
      %v3556 = vadd.f32 %v3367, %v3555
      %v3557 = vpop.f32.mrb[0].mxu0
      %3558 = vmatprep.mubr.f32.mxu0 0.0
      %3559 = vmatmul.mubr.f32.gmra.mrb[0].mxu0 %v961
      %v3560 = vpop.f32.mrb[0].mxu0
      %v3561 = vadd.f32 %v3367, %v3560
      %v3562 = vpop.f32.mrb[0].mxu0
      %3563 = vmatprep.mubr.f32.mxu0 0.0
      %3564 = vmatmul.mubr.f32.gmra.mrb[0].mxu0 %v964
      %v3565 = vpop.f32.mrb[0].mxu0
      %v3566 = vadd.f32 %v3367, %v3565
      %v3567 = vpop.f32.mrb[0].mxu0
      %3568 = vmatprep.mubr.f32.mxu0 0.0
      %3569 = vmatmul.mubr.f32.gmra.mrb[0].mxu0 %v967
      %v3570 = vpop.f32.mrb[0].mxu0
      %v3571 = vadd.f32 %v3367, %v3570
      %v3572 = vpop.f32.mrb[0].mxu0
      %3573 = vmatprep.mubr.f32.mxu0 0.0
      %3574 = vmatmul.mubr.f32.gmra.mrb[0].mxu0 %v970
      %v3575 = vpop.f32.mrb[0].mxu0
      %v3576 = vadd.f32 %v3367, %v3575
      %v3577 = vpop.f32.mrb[0].mxu0
      %3578 = vmatprep.mubr.f32.mxu0 0.0
      %3579 = vmatmul.mubr.f32.gmra.mrb[0].mxu0 %v973
      %v3580 = vpop.f32.mrb[0].mxu0
      %v3581 = vadd.f32 %v3367, %v3580
      %v3582 = vpop.f32.mrb[0].mxu0
      %3583 = vmatprep.mubr.f32.mxu0 0.0
      %3584 = vmatmul.mubr.f32.gmra.mrb[0].mxu0 %v976
      %v3585 = vpop.f32.mrb[0].mxu0
      %v3586 = vadd.f32 %v3367, %v3585
      %v3587 = vpop.f32.mrb[0].mxu0
      %3588 = vmatprep.mubr.f32.mxu0 0.0
      %3589 = vmatmul.mubr.f32.gmra.mrb[0].mxu0 %v979
      %v3590 = vpop.f32.mrb[0].mxu0
      %v3591 = vadd.f32 %v3367, %v3590
      %v3592 = vpop.f32.mrb[0].mxu0
      %3593 = vdwg.mxu0
      %v3594 = vadd.f32 %v3436, %v3198
      %v3595 = vadd.f32 %v3441, %v3203
      %v3596 = vadd.f32 %v3446, %v3208
      %v3597 = vadd.f32 %v3451, %v3213
      %v3598 = vadd.f32 %v3456, %v3218
      %v3599 = vadd.f32 %v3461, %v3223
      %v3600 = vadd.f32 %v3466, %v3228
      %v3601 = vadd.f32 %v3471, %v3233
      %v3602 = vadd.f32 %v3476, %v3238
      %v3603 = vadd.f32 %v3481, %v3243
      %v3604 = vadd.f32 %v3486, %v3248
      %v3605 = vadd.f32 %v3491, %v3253
      %v3606 = vadd.f32 %v3496, %v3258
      %v3607 = vadd.f32 %v3501, %v3263
      %v3608 = vadd.f32 %v3506, %v3268
      %v3609 = vadd.f32 %v3511, %v3273
      %v3610 = vadd.f32 %v3516, %v3278
      %v3611 = vadd.f32 %v3521, %v3283
      %v3612 = vadd.f32 %v3526, %v3288
      %v3613 = vadd.f32 %v3531, %v3293
      %v3614 = vadd.f32 %v3536, %v3298
      %v3615 = vadd.f32 %v3541, %v3303
      %v3616 = vadd.f32 %v3546, %v3308
      %v3617 = vadd.f32 %v3551, %v3313
      %v3618 = vadd.f32 %v3556, %v3318
      %v3619 = vadd.f32 %v3561, %v3323
      %v3620 = vadd.f32 %v3566, %v3328
      %v3621 = vadd.f32 %v3571, %v3333
      %v3622 = vadd.f32 %v3576, %v3338
      %v3623 = vadd.f32 %v3581, %v3343
      %v3624 = vadd.f32 %v3586, %v3348
      %v3625 = vadd.f32 %v3591, %v3353
      %v3626 = vmul.f32 %v3594, 0.25
      %v3627 = vmul.f32 %v3595, 0.25
      %v3628 = vmul.f32 %v3596, 0.25
      %v3629 = vmul.f32 %v3597, 0.25
      %v3630 = vmul.f32 %v3598, 0.25
      %v3631 = vmul.f32 %v3599, 0.25
      %v3632 = vmul.f32 %v3600, 0.25
      %v3633 = vmul.f32 %v3601, 0.25
      %v3634 = vmul.f32 %v3602, 0.25
      %v3635 = vmul.f32 %v3603, 0.25
      %v3636 = vmul.f32 %v3604, 0.25
      %v3637 = vmul.f32 %v3605, 0.25
      %v3638 = vmul.f32 %v3606, 0.25
      %v3639 = vmul.f32 %v3607, 0.25
      %v3640 = vmul.f32 %v3608, 0.25
      %v3641 = vmul.f32 %v3609, 0.25
      %v3642 = vmul.f32 %v3610, 0.25
      %v3643 = vmul.f32 %v3611, 0.25
      %v3644 = vmul.f32 %v3612, 0.25
      %v3645 = vmul.f32 %v3613, 0.25
      %v3646 = vmul.f32 %v3614, 0.25
      %v3647 = vmul.f32 %v3615, 0.25
      %v3648 = vmul.f32 %v3616, 0.25
      %v3649 = vmul.f32 %v3617, 0.25
      %v3650 = vmul.f32 %v3618, 0.25
      %v3651 = vmul.f32 %v3619, 0.25
      %v3652 = vmul.f32 %v3620, 0.25
      %v3653 = vmul.f32 %v3621, 0.25
      %v3654 = vmul.f32 %v3622, 0.25
      %v3655 = vmul.f32 %v3623, 0.25
      %v3656 = vmul.f32 %v3624, 0.25
      %v3657 = vmul.f32 %v3625, 0.25
      %s3658 = scalar_lea.vmem %s4, 32
      %v3659 = vld [vmem:[%s3658] sm:$0xff]
      %v3660 = vld [vmem:[%s3658 + $0x8] sm:$0xff]
      %v3661 = vld [vmem:[%s3658 + $0x10] sm:$0xff]
      %v3662 = vld [vmem:[%s3658 + $0x18] sm:$0xff]
      %s3663 = scalar_lea.vmem %s8, 1
      %v3664 = vld [vmem:[%s3663] sm:$0x1]
      %v3666 = vlaneseq
      %v3667 = vshrl.u32 %v3666, 7
      %v3668 = vsub.s32 0, %v3667
      %v3669 = vrot.slane %v3664, %v3668
      %3671 = vmatprep.subr.mxu0 0.0
      %3672 = vmatpush1.msra.mxu0 %v3659
      %3673 = vmatprep.subr.mxu0 0.0
      %3674 = vmatpush1.msra.mxu0 %v3660
      %3675 = vmatprep.subr.mxu0 0.0
      %3676 = vmatpush1.msra.mxu0 %v3661
      %3677 = vmatprep.subr.mxu0 0.0
      %3678 = vmatpush1.msra.mxu0 %v3662
      %3679 = vmatprep.subr.mxu0 0.0
      %3680 = vmatpush1.msra.mxu0 0.0
      %3681 = vmatprep.subr.mxu0 0.0
      %3682 = vmatpush1.msra.mxu0 0.0
      %3683 = vmatprep.subr.mxu0 0.0
      %3684 = vmatpush1.msra.mxu0 0.0
      %3685 = vmatprep.subr.mxu0 0.0
      %3686 = vmatpush1.msra.mxu0 0.0
      %3687 = vmatprep.subr.mxu0 0.0
      %3688 = vmatpush1.msra.mxu0 0.0
      %3689 = vmatprep.subr.mxu0 0.0
      %3690 = vmatpush1.msra.mxu0 0.0
      %3691 = vmatprep.subr.mxu0 0.0
      %3692 = vmatpush1.msra.mxu0 0.0
      %3693 = vmatprep.subr.mxu0 0.0
      %3694 = vmatpush1.msra.mxu0 0.0
      %3695 = vmatprep.subr.mxu0 0.0
      %3696 = vmatpush1.msra.mxu0 0.0
      %3697 = vmatprep.subr.mxu0 0.0
      %3698 = vmatpush1.msra.mxu0 0.0
      %3699 = vmatprep.subr.mxu0 0.0
      %3700 = vmatpush1.msra.mxu0 0.0
      %3701 = vmatprep.subr.mxu0 0.0
      %3702 = vmatpush1.msra.mxu0 0.0
      %3703 = vmatprep.subr.mxu0 0.0
      %3704 = vmatpush1.msra.mxu0 0.0
      %3705 = vmatprep.subr.mxu0 0.0
      %3706 = vmatpush1.msra.mxu0 0.0
      %3707 = vmatprep.subr.mxu0 0.0
      %3708 = vmatpush1.msra.mxu0 0.0
      %3709 = vmatprep.subr.mxu0 0.0
      %3710 = vmatpush1.msra.mxu0 0.0
      %3711 = vmatprep.subr.mxu0 0.0
      %3712 = vmatpush1.msra.mxu0 0.0
      %3713 = vmatprep.subr.mxu0 0.0
      %3714 = vmatpush1.msra.mxu0 0.0
      %3715 = vmatprep.subr.mxu0 0.0
      %3716 = vmatpush1.msra.mxu0 0.0
      %3717 = vmatprep.subr.mxu0 0.0
      %3718 = vmatpush1.msra.mxu0 0.0
      %3719 = vmatprep.subr.mxu0 0.0
      %3720 = vmatpush1.msra.mxu0 0.0
      %3721 = vmatprep.subr.mxu0 0.0
      %3722 = vmatpush1.msra.mxu0 0.0
      %3723 = vmatprep.subr.mxu0 0.0
      %3724 = vmatpush1.msra.mxu0 0.0
      %3725 = vmatprep.subr.mxu0 0.0
      %3726 = vmatpush1.msra.mxu0 0.0
      %3727 = vmatprep.subr.mxu0 0.0
      %3728 = vmatpush1.msra.mxu0 0.0
      %3729 = vmatprep.subr.mxu0 0.0
      %3730 = vmatpush1.msra.mxu0 0.0
      %3731 = vmatprep.subr.mxu0 0.0
      %3732 = vmatpush1.msra.mxu0 0.0
      %3733 = vmatprep.subr.mxu0 0.0
      %3734 = vmatpush1.msra.mxu0 0.0
      %3735 = vmatprep.mubr.f32.mxu0 0.0
      %3736 = vmatmul.mubr.f32.gmra.mrb[0].mxu0 %v1282
      %v3737 = vpop.f32.mrb[0].mxu0
      %v3738 = vadd.f32 %v3669, %v3737
      %v3739 = vpop.f32.mrb[0].mxu0
      %3740 = vmatprep.mubr.f32.mxu0 0.0
      %3741 = vmatmul.mubr.f32.gmra.mrb[0].mxu0 %v1285
      %v3742 = vpop.f32.mrb[0].mxu0
      %v3743 = vadd.f32 %v3669, %v3742
      %v3744 = vpop.f32.mrb[0].mxu0
      %3745 = vmatprep.mubr.f32.mxu0 0.0
      %3746 = vmatmul.mubr.f32.gmra.mrb[0].mxu0 %v1288
      %v3747 = vpop.f32.mrb[0].mxu0
      %v3748 = vadd.f32 %v3669, %v3747
      %v3749 = vpop.f32.mrb[0].mxu0
      %3750 = vmatprep.mubr.f32.mxu0 0.0
      %3751 = vmatmul.mubr.f32.gmra.mrb[0].mxu0 %v1291
      %v3752 = vpop.f32.mrb[0].mxu0
      %v3753 = vadd.f32 %v3669, %v3752
      %v3754 = vpop.f32.mrb[0].mxu0
      %3755 = vmatprep.mubr.f32.mxu0 0.0
      %3756 = vmatmul.mubr.f32.gmra.mrb[0].mxu0 %v1294
      %v3757 = vpop.f32.mrb[0].mxu0
      %v3758 = vadd.f32 %v3669, %v3757
      %v3759 = vpop.f32.mrb[0].mxu0
      %3760 = vmatprep.mubr.f32.mxu0 0.0
      %3761 = vmatmul.mubr.f32.gmra.mrb[0].mxu0 %v1297
      %v3762 = vpop.f32.mrb[0].mxu0
      %v3763 = vadd.f32 %v3669, %v3762
      %v3764 = vpop.f32.mrb[0].mxu0
      %3765 = vmatprep.mubr.f32.mxu0 0.0
      %3766 = vmatmul.mubr.f32.gmra.mrb[0].mxu0 %v1300
      %v3767 = vpop.f32.mrb[0].mxu0
      %v3768 = vadd.f32 %v3669, %v3767
      %v3769 = vpop.f32.mrb[0].mxu0
      %3770 = vmatprep.mubr.f32.mxu0 0.0
      %3771 = vmatmul.mubr.f32.gmra.mrb[0].mxu0 %v1303
      %v3772 = vpop.f32.mrb[0].mxu0
      %v3773 = vadd.f32 %v3669, %v3772
      %v3774 = vpop.f32.mrb[0].mxu0
      %3775 = vmatprep.mubr.f32.mxu0 0.0
      %3776 = vmatmul.mubr.f32.gmra.mrb[0].mxu0 %v1306
      %v3777 = vpop.f32.mrb[0].mxu0
      %v3778 = vadd.f32 %v3669, %v3777
      %v3779 = vpop.f32.mrb[0].mxu0
      %3780 = vmatprep.mubr.f32.mxu0 0.0
      %3781 = vmatmul.mubr.f32.gmra.mrb[0].mxu0 %v1309
      %v3782 = vpop.f32.mrb[0].mxu0
      %v3783 = vadd.f32 %v3669, %v3782
      %v3784 = vpop.f32.mrb[0].mxu0
      %3785 = vmatprep.mubr.f32.mxu0 0.0
      %3786 = vmatmul.mubr.f32.gmra.mrb[0].mxu0 %v1312
      %v3787 = vpop.f32.mrb[0].mxu0
      %v3788 = vadd.f32 %v3669, %v3787
      %v3789 = vpop.f32.mrb[0].mxu0
      %3790 = vmatprep.mubr.f32.mxu0 0.0
      %3791 = vmatmul.mubr.f32.gmra.mrb[0].mxu0 %v1315
      %v3792 = vpop.f32.mrb[0].mxu0
      %v3793 = vadd.f32 %v3669, %v3792
      %v3794 = vpop.f32.mrb[0].mxu0
      %3795 = vmatprep.mubr.f32.mxu0 0.0
      %3796 = vmatmul.mubr.f32.gmra.mrb[0].mxu0 %v1318
      %v3797 = vpop.f32.mrb[0].mxu0
      %v3798 = vadd.f32 %v3669, %v3797
      %v3799 = vpop.f32.mrb[0].mxu0
      %3800 = vmatprep.mubr.f32.mxu0 0.0
      %3801 = vmatmul.mubr.f32.gmra.mrb[0].mxu0 %v1321
      %v3802 = vpop.f32.mrb[0].mxu0
      %v3803 = vadd.f32 %v3669, %v3802
      %v3804 = vpop.f32.mrb[0].mxu0
      %3805 = vmatprep.mubr.f32.mxu0 0.0
      %3806 = vmatmul.mubr.f32.gmra.mrb[0].mxu0 %v1324
      %v3807 = vpop.f32.mrb[0].mxu0
      %v3808 = vadd.f32 %v3669, %v3807
      %v3809 = vpop.f32.mrb[0].mxu0
      %3810 = vmatprep.mubr.f32.mxu0 0.0
      %3811 = vmatmul.mubr.f32.gmra.mrb[0].mxu0 %v1327
      %v3812 = vpop.f32.mrb[0].mxu0
      %v3813 = vadd.f32 %v3669, %v3812
      %v3814 = vpop.f32.mrb[0].mxu0
      %3815 = vmatprep.mubr.f32.mxu0 0.0
      %3816 = vmatmul.mubr.f32.gmra.mrb[0].mxu0 %v1330
      %v3817 = vpop.f32.mrb[0].mxu0
      %v3818 = vadd.f32 %v3669, %v3817
      %v3819 = vpop.f32.mrb[0].mxu0
      %3820 = vmatprep.mubr.f32.mxu0 0.0
      %3821 = vmatmul.mubr.f32.gmra.mrb[0].mxu0 %v1333
      %v3822 = vpop.f32.mrb[0].mxu0
      %v3823 = vadd.f32 %v3669, %v3822
      %v3824 = vpop.f32.mrb[0].mxu0
      %3825 = vmatprep.mubr.f32.mxu0 0.0
      %3826 = vmatmul.mubr.f32.gmra.mrb[0].mxu0 %v1336
      %v3827 = vpop.f32.mrb[0].mxu0
      %v3828 = vadd.f32 %v3669, %v3827
      %v3829 = vpop.f32.mrb[0].mxu0
      %3830 = vmatprep.mubr.f32.mxu0 0.0
      %3831 = vmatmul.mubr.f32.gmra.mrb[0].mxu0 %v1339
      %v3832 = vpop.f32.mrb[0].mxu0
      %v3833 = vadd.f32 %v3669, %v3832
      %v3834 = vpop.f32.mrb[0].mxu0
      %3835 = vmatprep.mubr.f32.mxu0 0.0
      %3836 = vmatmul.mubr.f32.gmra.mrb[0].mxu0 %v1342
      %v3837 = vpop.f32.mrb[0].mxu0
      %v3838 = vadd.f32 %v3669, %v3837
      %v3839 = vpop.f32.mrb[0].mxu0
      %3840 = vmatprep.mubr.f32.mxu0 0.0
      %3841 = vmatmul.mubr.f32.gmra.mrb[0].mxu0 %v1345
      %v3842 = vpop.f32.mrb[0].mxu0
      %v3843 = vadd.f32 %v3669, %v3842
      %v3844 = vpop.f32.mrb[0].mxu0
      %3845 = vmatprep.mubr.f32.mxu0 0.0
      %3846 = vmatmul.mubr.f32.gmra.mrb[0].mxu0 %v1348
      %v3847 = vpop.f32.mrb[0].mxu0
      %v3848 = vadd.f32 %v3669, %v3847
      %v3849 = vpop.f32.mrb[0].mxu0
      %3850 = vmatprep.mubr.f32.mxu0 0.0
      %3851 = vmatmul.mubr.f32.gmra.mrb[0].mxu0 %v1351
      %v3852 = vpop.f32.mrb[0].mxu0
      %v3853 = vadd.f32 %v3669, %v3852
      %v3854 = vpop.f32.mrb[0].mxu0
      %3855 = vmatprep.mubr.f32.mxu0 0.0
      %3856 = vmatmul.mubr.f32.gmra.mrb[0].mxu0 %v1354
      %v3857 = vpop.f32.mrb[0].mxu0
      %v3858 = vadd.f32 %v3669, %v3857
      %v3859 = vpop.f32.mrb[0].mxu0
      %3860 = vmatprep.mubr.f32.mxu0 0.0
      %3861 = vmatmul.mubr.f32.gmra.mrb[0].mxu0 %v1357
      %v3862 = vpop.f32.mrb[0].mxu0
      %v3863 = vadd.f32 %v3669, %v3862
      %v3864 = vpop.f32.mrb[0].mxu0
      %3865 = vmatprep.mubr.f32.mxu0 0.0
      %3866 = vmatmul.mubr.f32.gmra.mrb[0].mxu0 %v1360
      %v3867 = vpop.f32.mrb[0].mxu0
      %v3868 = vadd.f32 %v3669, %v3867
      %v3869 = vpop.f32.mrb[0].mxu0
      %3870 = vmatprep.mubr.f32.mxu0 0.0
      %3871 = vmatmul.mubr.f32.gmra.mrb[0].mxu0 %v1363
      %v3872 = vpop.f32.mrb[0].mxu0
      %v3873 = vadd.f32 %v3669, %v3872
      %v3874 = vpop.f32.mrb[0].mxu0
      %3875 = vmatprep.mubr.f32.mxu0 0.0
      %3876 = vmatmul.mubr.f32.gmra.mrb[0].mxu0 %v1366
      %v3877 = vpop.f32.mrb[0].mxu0
      %v3878 = vadd.f32 %v3669, %v3877
      %v3879 = vpop.f32.mrb[0].mxu0
      %3880 = vmatprep.mubr.f32.mxu0 0.0
      %3881 = vmatmul.mubr.f32.gmra.mrb[0].mxu0 %v1369
      %v3882 = vpop.f32.mrb[0].mxu0
      %v3883 = vadd.f32 %v3669, %v3882
      %v3884 = vpop.f32.mrb[0].mxu0
      %3885 = vmatprep.mubr.f32.mxu0 0.0
      %3886 = vmatmul.mubr.f32.gmra.mrb[0].mxu0 %v1372
      %v3887 = vpop.f32.mrb[0].mxu0
      %v3888 = vadd.f32 %v3669, %v3887
      %v3889 = vpop.f32.mrb[0].mxu0
      %3890 = vmatprep.mubr.f32.mxu0 0.0
      %3891 = vmatmul.mubr.f32.gmra.mrb[0].mxu0 %v1375
      %v3892 = vpop.f32.mrb[0].mxu0
      %v3893 = vadd.f32 %v3669, %v3892
      %v3894 = vpop.f32.mrb[0].mxu0
      %3895 = vdwg.mxu0
      %v3896 = vadd.f32 %v3738, %v3198
      %v3897 = vadd.f32 %v3743, %v3203
      %v3898 = vadd.f32 %v3748, %v3208
      %v3899 = vadd.f32 %v3753, %v3213
      %v3900 = vadd.f32 %v3758, %v3218
      %v3901 = vadd.f32 %v3763, %v3223
      %v3902 = vadd.f32 %v3768, %v3228
      %v3903 = vadd.f32 %v3773, %v3233
      %v3904 = vadd.f32 %v3778, %v3238
      %v3905 = vadd.f32 %v3783, %v3243
      %v3906 = vadd.f32 %v3788, %v3248
      %v3907 = vadd.f32 %v3793, %v3253
      %v3908 = vadd.f32 %v3798, %v3258
      %v3909 = vadd.f32 %v3803, %v3263
      %v3910 = vadd.f32 %v3808, %v3268
      %v3911 = vadd.f32 %v3813, %v3273
      %v3912 = vadd.f32 %v3818, %v3278
      %v3913 = vadd.f32 %v3823, %v3283
      %v3914 = vadd.f32 %v3828, %v3288
      %v3915 = vadd.f32 %v3833, %v3293
      %v3916 = vadd.f32 %v3838, %v3298
      %v3917 = vadd.f32 %v3843, %v3303
      %v3918 = vadd.f32 %v3848, %v3308
      %v3919 = vadd.f32 %v3853, %v3313
      %v3920 = vadd.f32 %v3858, %v3318
      %v3921 = vadd.f32 %v3863, %v3323
      %v3922 = vadd.f32 %v3868, %v3328
      %v3923 = vadd.f32 %v3873, %v3333
      %v3924 = vadd.f32 %v3878, %v3338
      %v3925 = vadd.f32 %v3883, %v3343
      %v3926 = vadd.f32 %v3888, %v3348
      %v3927 = vadd.f32 %v3893, %v3353
      %v3929 = vsel %vm1634, %v3626, 0
      %v3932 = vsel %vm1634, %v3627, 0
      %v3935 = vsel %vm1634, %v3628, 0
      %v3938 = vsel %vm1634, %v3629, 0
      %v3941 = vsel %vm1634, %v3630, 0
      %v3944 = vsel %vm1634, %v3631, 0
      %v3947 = vsel %vm1634, %v3632, 0
      %v3950 = vsel %vm1634, %v3633, 0
      %v3953 = vsel %vm1634, %v3896, 0
      %v3956 = vsel %vm1634, %v3897, 0
      %v3959 = vsel %vm1634, %v3898, 0
      %v3962 = vsel %vm1634, %v3899, 0
      %v3965 = vsel %vm1634, %v3900, 0
      %v3968 = vsel %vm1634, %v3901, 0
      %v3971 = vsel %vm1634, %v3902, 0
      %v3974 = vsel %vm1634, %v3903, 0
      %3976 = vmatprep.subr.mxu0 0.0
      %3977 = vmatpush1.xpose.msra.mxu0 %v3953
      %3978 = vmatprep.subr.mxu0 0.0
      %3979 = vmatpush1.xpose.msra.mxu0 %v3956
      %3980 = vmatprep.subr.mxu0 0.0
      %3981 = vmatpush1.xpose.msra.mxu0 %v3959
      %3982 = vmatprep.subr.mxu0 0.0
      %3983 = vmatpush1.xpose.msra.mxu0 %v3962
      %3984 = vmatprep.subr.mxu0 0.0
      %3985 = vmatpush1.xpose.msra.mxu0 %v3965
      %3986 = vmatprep.subr.mxu0 0.0
      %3987 = vmatpush1.xpose.msra.mxu0 %v3968
      %3988 = vmatprep.subr.mxu0 0.0
      %3989 = vmatpush1.xpose.msra.mxu0 %v3971
      %3990 = vmatprep.subr.mxu0 0.0
      %3991 = vmatpush1.xpose.msra.mxu0 %v3974
      %3992 = vmatprep.subr.mxu0 0.0
      %3993 = vmatpush1.xpose.msra.mxu0 0.0
      %3994 = vmatprep.subr.mxu0 0.0
      %3995 = vmatpush1.xpose.msra.mxu0 0.0
      %3996 = vmatprep.subr.mxu0 0.0
      %3997 = vmatpush1.xpose.msra.mxu0 0.0
      %3998 = vmatprep.subr.mxu0 0.0
      %3999 = vmatpush1.xpose.msra.mxu0 0.0
      %4000 = vmatprep.subr.mxu0 0.0
      %4001 = vmatpush1.xpose.msra.mxu0 0.0
      %4002 = vmatprep.subr.mxu0 0.0
      %4003 = vmatpush1.xpose.msra.mxu0 0.0
      %4004 = vmatprep.subr.mxu0 0.0
      %4005 = vmatpush1.xpose.msra.mxu0 0.0
      %4006 = vmatprep.subr.mxu0 0.0
      %4007 = vmatpush1.xpose.msra.mxu0 0.0
      %4008 = vmatprep.subr.mxu0 0.0
      %4009 = vmatpush1.xpose.msra.mxu0 0.0
      %4010 = vmatprep.subr.mxu0 0.0
      %4011 = vmatpush1.xpose.msra.mxu0 0.0
      %4012 = vmatprep.subr.mxu0 0.0
      %4013 = vmatpush1.xpose.msra.mxu0 0.0
      %4014 = vmatprep.subr.mxu0 0.0
      %4015 = vmatpush1.xpose.msra.mxu0 0.0
      %4016 = vmatprep.subr.mxu0 0.0
      %4017 = vmatpush1.xpose.msra.mxu0 0.0
      %4018 = vmatprep.subr.mxu0 0.0
      %4019 = vmatpush1.xpose.msra.mxu0 0.0
      %4020 = vmatprep.subr.mxu0 0.0
      %4021 = vmatpush1.xpose.msra.mxu0 0.0
      %4022 = vmatprep.subr.mxu0 0.0
      %4023 = vmatpush1.xpose.msra.mxu0 0.0
      %4024 = vmatprep.subr.mxu0 0.0
      %4025 = vmatpush1.xpose.msra.mxu0 0.0
      %4026 = vmatprep.subr.mxu0 0.0
      %4027 = vmatpush1.xpose.msra.mxu0 0.0
      %4028 = vmatprep.subr.mxu0 0.0
      %4029 = vmatpush1.xpose.msra.mxu0 0.0
      %4030 = vmatprep.subr.mxu0 0.0
      %4031 = vmatpush1.xpose.msra.mxu0 0.0
      %4032 = vmatprep.subr.mxu0 0.0
      %4033 = vmatpush1.xpose.msra.mxu0 0.0
      %4034 = vmatprep.subr.mxu0 0.0
      %4035 = vmatpush1.xpose.msra.mxu0 0.0
      %4036 = vmatprep.subr.mxu0 0.0
      %4037 = vmatpush1.xpose.msra.mxu0 0.0
      %4038 = vmatprep.subr.mxu0 0.0
      %4039 = vmatpush1.xpose.msra.mxu0 0.0
      %4040 = vmatprep.mubr.f32.mxu0 0.0
      %4041 = vmatmul.mubr.f32.gmra.mrb[0].mxu0 %v3929
      %v4042 = vpop.f32.mrb[0].mxu0
      %v4043 = vadd.f32 0.0, %v4042
      %v4044 = vpop.f32.mrb[0].mxu0
      %4045 = vmatprep.mubr.f32.mxu0 0.0
      %4046 = vmatmul.mubr.f32.gmra.mrb[0].mxu0 %v3932
      %v4047 = vpop.f32.mrb[0].mxu0
      %v4048 = vadd.f32 0.0, %v4047
      %v4049 = vpop.f32.mrb[0].mxu0
      %4050 = vmatprep.mubr.f32.mxu0 0.0
      %4051 = vmatmul.mubr.f32.gmra.mrb[0].mxu0 %v3935
      %v4052 = vpop.f32.mrb[0].mxu0
      %v4053 = vadd.f32 0.0, %v4052
      %v4054 = vpop.f32.mrb[0].mxu0
      %4055 = vmatprep.mubr.f32.mxu0 0.0
      %4056 = vmatmul.mubr.f32.gmra.mrb[0].mxu0 %v3938
      %v4057 = vpop.f32.mrb[0].mxu0
      %v4058 = vadd.f32 0.0, %v4057
      %v4059 = vpop.f32.mrb[0].mxu0
      %4060 = vmatprep.mubr.f32.mxu0 0.0
      %4061 = vmatmul.mubr.f32.gmra.mrb[0].mxu0 %v3941
      %v4062 = vpop.f32.mrb[0].mxu0
      %v4063 = vadd.f32 0.0, %v4062
      %v4064 = vpop.f32.mrb[0].mxu0
      %4065 = vmatprep.mubr.f32.mxu0 0.0
      %4066 = vmatmul.mubr.f32.gmra.mrb[0].mxu0 %v3944
      %v4067 = vpop.f32.mrb[0].mxu0
      %v4068 = vadd.f32 0.0, %v4067
      %v4069 = vpop.f32.mrb[0].mxu0
      %4070 = vmatprep.mubr.f32.mxu0 0.0
      %4071 = vmatmul.mubr.f32.gmra.mrb[0].mxu0 %v3947
      %v4072 = vpop.f32.mrb[0].mxu0
      %v4073 = vadd.f32 0.0, %v4072
      %v4074 = vpop.f32.mrb[0].mxu0
      %4075 = vmatprep.mubr.f32.mxu0 0.0
      %4076 = vmatmul.mubr.f32.gmra.mrb[0].mxu0 %v3950
      %v4077 = vpop.f32.mrb[0].mxu0
      %v4078 = vadd.f32 0.0, %v4077
      %v4079 = vpop.f32.mrb[0].mxu0
      %4080 = vdwg.mxu0
      %v4082 = vsel %vm1634, %v3634, 0
      %v4085 = vsel %vm1634, %v3635, 0
      %v4088 = vsel %vm1634, %v3636, 0
      %v4091 = vsel %vm1634, %v3637, 0
      %v4094 = vsel %vm1634, %v3638, 0
      %v4097 = vsel %vm1634, %v3639, 0
      %v4100 = vsel %vm1634, %v3640, 0
      %v4103 = vsel %vm1634, %v3641, 0
      %v4106 = vsel %vm1634, %v3904, 0
      %v4109 = vsel %vm1634, %v3905, 0
      %v4112 = vsel %vm1634, %v3906, 0
      %v4115 = vsel %vm1634, %v3907, 0
      %v4118 = vsel %vm1634, %v3908, 0
      %v4121 = vsel %vm1634, %v3909, 0
      %v4124 = vsel %vm1634, %v3910, 0
      %v4127 = vsel %vm1634, %v3911, 0
      %4129 = vmatprep.subr.mxu0 0.0
      %4130 = vmatpush1.xpose.msra.mxu0 %v4106
      %4131 = vmatprep.subr.mxu0 0.0
      %4132 = vmatpush1.xpose.msra.mxu0 %v4109
      %4133 = vmatprep.subr.mxu0 0.0
      %4134 = vmatpush1.xpose.msra.mxu0 %v4112
      %4135 = vmatprep.subr.mxu0 0.0
      %4136 = vmatpush1.xpose.msra.mxu0 %v4115
      %4137 = vmatprep.subr.mxu0 0.0
      %4138 = vmatpush1.xpose.msra.mxu0 %v4118
      %4139 = vmatprep.subr.mxu0 0.0
      %4140 = vmatpush1.xpose.msra.mxu0 %v4121
      %4141 = vmatprep.subr.mxu0 0.0
      %4142 = vmatpush1.xpose.msra.mxu0 %v4124
      %4143 = vmatprep.subr.mxu0 0.0
      %4144 = vmatpush1.xpose.msra.mxu0 %v4127
      %4145 = vmatprep.subr.mxu0 0.0
      %4146 = vmatpush1.xpose.msra.mxu0 0.0
      %4147 = vmatprep.subr.mxu0 0.0
      %4148 = vmatpush1.xpose.msra.mxu0 0.0
      %4149 = vmatprep.subr.mxu0 0.0
      %4150 = vmatpush1.xpose.msra.mxu0 0.0
      %4151 = vmatprep.subr.mxu0 0.0
      %4152 = vmatpush1.xpose.msra.mxu0 0.0
      %4153 = vmatprep.subr.mxu0 0.0
      %4154 = vmatpush1.xpose.msra.mxu0 0.0
      %4155 = vmatprep.subr.mxu0 0.0
      %4156 = vmatpush1.xpose.msra.mxu0 0.0
      %4157 = vmatprep.subr.mxu0 0.0
      %4158 = vmatpush1.xpose.msra.mxu0 0.0
      %4159 = vmatprep.subr.mxu0 0.0
      %4160 = vmatpush1.xpose.msra.mxu0 0.0
      %4161 = vmatprep.subr.mxu0 0.0
      %4162 = vmatpush1.xpose.msra.mxu0 0.0
      %4163 = vmatprep.subr.mxu0 0.0
      %4164 = vmatpush1.xpose.msra.mxu0 0.0
      %4165 = vmatprep.subr.mxu0 0.0
      %4166 = vmatpush1.xpose.msra.mxu0 0.0
      %4167 = vmatprep.subr.mxu0 0.0
      %4168 = vmatpush1.xpose.msra.mxu0 0.0
      %4169 = vmatprep.subr.mxu0 0.0
      %4170 = vmatpush1.xpose.msra.mxu0 0.0
      %4171 = vmatprep.subr.mxu0 0.0
      %4172 = vmatpush1.xpose.msra.mxu0 0.0
      %4173 = vmatprep.subr.mxu0 0.0
      %4174 = vmatpush1.xpose.msra.mxu0 0.0
      %4175 = vmatprep.subr.mxu0 0.0
      %4176 = vmatpush1.xpose.msra.mxu0 0.0
      %4177 = vmatprep.subr.mxu0 0.0
      %4178 = vmatpush1.xpose.msra.mxu0 0.0
      %4179 = vmatprep.subr.mxu0 0.0
      %4180 = vmatpush1.xpose.msra.mxu0 0.0
      %4181 = vmatprep.subr.mxu0 0.0
      %4182 = vmatpush1.xpose.msra.mxu0 0.0
      %4183 = vmatprep.subr.mxu0 0.0
      %4184 = vmatpush1.xpose.msra.mxu0 0.0
      %4185 = vmatprep.subr.mxu0 0.0
      %4186 = vmatpush1.xpose.msra.mxu0 0.0
      %4187 = vmatprep.subr.mxu0 0.0
      %4188 = vmatpush1.xpose.msra.mxu0 0.0
      %4189 = vmatprep.subr.mxu0 0.0
      %4190 = vmatpush1.xpose.msra.mxu0 0.0
      %4191 = vmatprep.subr.mxu0 0.0
      %4192 = vmatpush1.xpose.msra.mxu0 0.0
      %4193 = vmatprep.mubr.f32.mxu0 0.0
      %4194 = vmatmul.mubr.f32.gmra.mrb[0].mxu0 %v4082
      %v4195 = vpop.f32.mrb[0].mxu0
      %v4196 = vadd.f32 0.0, %v4195
      %v4197 = vpop.f32.mrb[0].mxu0
      %4198 = vmatprep.mubr.f32.mxu0 0.0
      %4199 = vmatmul.mubr.f32.gmra.mrb[0].mxu0 %v4085
      %v4200 = vpop.f32.mrb[0].mxu0
      %v4201 = vadd.f32 0.0, %v4200
      %v4202 = vpop.f32.mrb[0].mxu0
      %4203 = vmatprep.mubr.f32.mxu0 0.0
      %4204 = vmatmul.mubr.f32.gmra.mrb[0].mxu0 %v4088
      %v4205 = vpop.f32.mrb[0].mxu0
      %v4206 = vadd.f32 0.0, %v4205
      %v4207 = vpop.f32.mrb[0].mxu0
      %4208 = vmatprep.mubr.f32.mxu0 0.0
      %4209 = vmatmul.mubr.f32.gmra.mrb[0].mxu0 %v4091
      %v4210 = vpop.f32.mrb[0].mxu0
      %v4211 = vadd.f32 0.0, %v4210
      %v4212 = vpop.f32.mrb[0].mxu0
      %4213 = vmatprep.mubr.f32.mxu0 0.0
      %4214 = vmatmul.mubr.f32.gmra.mrb[0].mxu0 %v4094
      %v4215 = vpop.f32.mrb[0].mxu0
      %v4216 = vadd.f32 0.0, %v4215
      %v4217 = vpop.f32.mrb[0].mxu0
      %4218 = vmatprep.mubr.f32.mxu0 0.0
      %4219 = vmatmul.mubr.f32.gmra.mrb[0].mxu0 %v4097
      %v4220 = vpop.f32.mrb[0].mxu0
      %v4221 = vadd.f32 0.0, %v4220
      %v4222 = vpop.f32.mrb[0].mxu0
      %4223 = vmatprep.mubr.f32.mxu0 0.0
      %4224 = vmatmul.mubr.f32.gmra.mrb[0].mxu0 %v4100
      %v4225 = vpop.f32.mrb[0].mxu0
      %v4226 = vadd.f32 0.0, %v4225
      %v4227 = vpop.f32.mrb[0].mxu0
      %4228 = vmatprep.mubr.f32.mxu0 0.0
      %4229 = vmatmul.mubr.f32.gmra.mrb[0].mxu0 %v4103
      %v4230 = vpop.f32.mrb[0].mxu0
      %v4231 = vadd.f32 0.0, %v4230
      %v4232 = vpop.f32.mrb[0].mxu0
      %4233 = vdwg.mxu0
      %v4235 = vsel %vm1634, %v3642, 0
      %v4238 = vsel %vm1634, %v3643, 0
      %v4241 = vsel %vm1634, %v3644, 0
      %v4244 = vsel %vm1634, %v3645, 0
      %v4247 = vsel %vm1634, %v3646, 0
      %v4250 = vsel %vm1634, %v3647, 0
      %v4253 = vsel %vm1634, %v3648, 0
      %v4256 = vsel %vm1634, %v3649, 0
      %v4259 = vsel %vm1634, %v3912, 0
      %v4262 = vsel %vm1634, %v3913, 0
      %v4265 = vsel %vm1634, %v3914, 0
      %v4268 = vsel %vm1634, %v3915, 0
      %v4271 = vsel %vm1634, %v3916, 0
      %v4274 = vsel %vm1634, %v3917, 0
      %v4277 = vsel %vm1634, %v3918, 0
      %v4280 = vsel %vm1634, %v3919, 0
      %4282 = vmatprep.subr.mxu0 0.0
      %4283 = vmatpush1.xpose.msra.mxu0 %v4259
      %4284 = vmatprep.subr.mxu0 0.0
      %4285 = vmatpush1.xpose.msra.mxu0 %v4262
      %4286 = vmatprep.subr.mxu0 0.0
      %4287 = vmatpush1.xpose.msra.mxu0 %v4265
      %4288 = vmatprep.subr.mxu0 0.0
      %4289 = vmatpush1.xpose.msra.mxu0 %v4268
      %4290 = vmatprep.subr.mxu0 0.0
      %4291 = vmatpush1.xpose.msra.mxu0 %v4271
      %4292 = vmatprep.subr.mxu0 0.0
      %4293 = vmatpush1.xpose.msra.mxu0 %v4274
      %4294 = vmatprep.subr.mxu0 0.0
      %4295 = vmatpush1.xpose.msra.mxu0 %v4277
      %4296 = vmatprep.subr.mxu0 0.0
      %4297 = vmatpush1.xpose.msra.mxu0 %v4280
      %4298 = vmatprep.subr.mxu0 0.0
      %4299 = vmatpush1.xpose.msra.mxu0 0.0
      %4300 = vmatprep.subr.mxu0 0.0
      %4301 = vmatpush1.xpose.msra.mxu0 0.0
      %4302 = vmatprep.subr.mxu0 0.0
      %4303 = vmatpush1.xpose.msra.mxu0 0.0
      %4304 = vmatprep.subr.mxu0 0.0
      %4305 = vmatpush1.xpose.msra.mxu0 0.0
      %4306 = vmatprep.subr.mxu0 0.0
      %4307 = vmatpush1.xpose.msra.mxu0 0.0
      %4308 = vmatprep.subr.mxu0 0.0
      %4309 = vmatpush1.xpose.msra.mxu0 0.0
      %4310 = vmatprep.subr.mxu0 0.0
      %4311 = vmatpush1.xpose.msra.mxu0 0.0
      %4312 = vmatprep.subr.mxu0 0.0
      %4313 = vmatpush1.xpose.msra.mxu0 0.0
      %4314 = vmatprep.subr.mxu0 0.0
      %4315 = vmatpush1.xpose.msra.mxu0 0.0
      %4316 = vmatprep.subr.mxu0 0.0
      %4317 = vmatpush1.xpose.msra.mxu0 0.0
      %4318 = vmatprep.subr.mxu0 0.0
      %4319 = vmatpush1.xpose.msra.mxu0 0.0
      %4320 = vmatprep.subr.mxu0 0.0
      %4321 = vmatpush1.xpose.msra.mxu0 0.0
      %4322 = vmatprep.subr.mxu0 0.0
      %4323 = vmatpush1.xpose.msra.mxu0 0.0
      %4324 = vmatprep.subr.mxu0 0.0
      %4325 = vmatpush1.xpose.msra.mxu0 0.0
      %4326 = vmatprep.subr.mxu0 0.0
      %4327 = vmatpush1.xpose.msra.mxu0 0.0
      %4328 = vmatprep.subr.mxu0 0.0
      %4329 = vmatpush1.xpose.msra.mxu0 0.0
      %4330 = vmatprep.subr.mxu0 0.0
      %4331 = vmatpush1.xpose.msra.mxu0 0.0
      %4332 = vmatprep.subr.mxu0 0.0
      %4333 = vmatpush1.xpose.msra.mxu0 0.0
      %4334 = vmatprep.subr.mxu0 0.0
      %4335 = vmatpush1.xpose.msra.mxu0 0.0
      %4336 = vmatprep.subr.mxu0 0.0
      %4337 = vmatpush1.xpose.msra.mxu0 0.0
      %4338 = vmatprep.subr.mxu0 0.0
      %4339 = vmatpush1.xpose.msra.mxu0 0.0
      %4340 = vmatprep.subr.mxu0 0.0
      %4341 = vmatpush1.xpose.msra.mxu0 0.0
      %4342 = vmatprep.subr.mxu0 0.0
      %4343 = vmatpush1.xpose.msra.mxu0 0.0
      %4344 = vmatprep.subr.mxu0 0.0
      %4345 = vmatpush1.xpose.msra.mxu0 0.0
      %4346 = vmatprep.mubr.f32.mxu0 0.0
      %4347 = vmatmul.mubr.f32.gmra.mrb[0].mxu0 %v4235
      %v4348 = vpop.f32.mrb[0].mxu0
      %v4349 = vadd.f32 0.0, %v4348
      %v4350 = vpop.f32.mrb[0].mxu0
      %4351 = vmatprep.mubr.f32.mxu0 0.0
      %4352 = vmatmul.mubr.f32.gmra.mrb[0].mxu0 %v4238
      %v4353 = vpop.f32.mrb[0].mxu0
      %v4354 = vadd.f32 0.0, %v4353
      %v4355 = vpop.f32.mrb[0].mxu0
      %4356 = vmatprep.mubr.f32.mxu0 0.0
      %4357 = vmatmul.mubr.f32.gmra.mrb[0].mxu0 %v4241
      %v4358 = vpop.f32.mrb[0].mxu0
      %v4359 = vadd.f32 0.0, %v4358
      %v4360 = vpop.f32.mrb[0].mxu0
      %4361 = vmatprep.mubr.f32.mxu0 0.0
      %4362 = vmatmul.mubr.f32.gmra.mrb[0].mxu0 %v4244
      %v4363 = vpop.f32.mrb[0].mxu0
      %v4364 = vadd.f32 0.0, %v4363
      %v4365 = vpop.f32.mrb[0].mxu0
      %4366 = vmatprep.mubr.f32.mxu0 0.0
      %4367 = vmatmul.mubr.f32.gmra.mrb[0].mxu0 %v4247
      %v4368 = vpop.f32.mrb[0].mxu0
      %v4369 = vadd.f32 0.0, %v4368
      %v4370 = vpop.f32.mrb[0].mxu0
      %4371 = vmatprep.mubr.f32.mxu0 0.0
      %4372 = vmatmul.mubr.f32.gmra.mrb[0].mxu0 %v4250
      %v4373 = vpop.f32.mrb[0].mxu0
      %v4374 = vadd.f32 0.0, %v4373
      %v4375 = vpop.f32.mrb[0].mxu0
      %4376 = vmatprep.mubr.f32.mxu0 0.0
      %4377 = vmatmul.mubr.f32.gmra.mrb[0].mxu0 %v4253
      %v4378 = vpop.f32.mrb[0].mxu0
      %v4379 = vadd.f32 0.0, %v4378
      %v4380 = vpop.f32.mrb[0].mxu0
      %4381 = vmatprep.mubr.f32.mxu0 0.0
      %4382 = vmatmul.mubr.f32.gmra.mrb[0].mxu0 %v4256
      %v4383 = vpop.f32.mrb[0].mxu0
      %v4384 = vadd.f32 0.0, %v4383
      %v4385 = vpop.f32.mrb[0].mxu0
      %4386 = vdwg.mxu0
      %v4388 = vsel %vm1634, %v3650, 0
      %v4391 = vsel %vm1634, %v3651, 0
      %v4394 = vsel %vm1634, %v3652, 0
      %v4397 = vsel %vm1634, %v3653, 0
      %v4400 = vsel %vm1634, %v3654, 0
      %v4403 = vsel %vm1634, %v3655, 0
      %v4406 = vsel %vm1634, %v3656, 0
      %v4409 = vsel %vm1634, %v3657, 0
      %v4412 = vsel %vm1634, %v3920, 0
      %v4415 = vsel %vm1634, %v3921, 0
      %v4418 = vsel %vm1634, %v3922, 0
      %v4421 = vsel %vm1634, %v3923, 0
      %v4424 = vsel %vm1634, %v3924, 0
      %v4427 = vsel %vm1634, %v3925, 0
      %v4430 = vsel %vm1634, %v3926, 0
      %v4433 = vsel %vm1634, %v3927, 0
      %4435 = vmatprep.subr.mxu0 0.0
      %4436 = vmatpush1.xpose.msra.mxu0 %v4412
      %4437 = vmatprep.subr.mxu0 0.0
      %4438 = vmatpush1.xpose.msra.mxu0 %v4415
      %4439 = vmatprep.subr.mxu0 0.0
      %4440 = vmatpush1.xpose.msra.mxu0 %v4418
      %4441 = vmatprep.subr.mxu0 0.0
      %4442 = vmatpush1.xpose.msra.mxu0 %v4421
      %4443 = vmatprep.subr.mxu0 0.0
      %4444 = vmatpush1.xpose.msra.mxu0 %v4424
      %4445 = vmatprep.subr.mxu0 0.0
      %4446 = vmatpush1.xpose.msra.mxu0 %v4427
      %4447 = vmatprep.subr.mxu0 0.0
      %4448 = vmatpush1.xpose.msra.mxu0 %v4430
      %4449 = vmatprep.subr.mxu0 0.0
      %4450 = vmatpush1.xpose.msra.mxu0 %v4433
      %4451 = vmatprep.subr.mxu0 0.0
      %4452 = vmatpush1.xpose.msra.mxu0 0.0
      %4453 = vmatprep.subr.mxu0 0.0
      %4454 = vmatpush1.xpose.msra.mxu0 0.0
      %4455 = vmatprep.subr.mxu0 0.0
      %4456 = vmatpush1.xpose.msra.mxu0 0.0
      %4457 = vmatprep.subr.mxu0 0.0
      %4458 = vmatpush1.xpose.msra.mxu0 0.0
      %4459 = vmatprep.subr.mxu0 0.0
      %4460 = vmatpush1.xpose.msra.mxu0 0.0
      %4461 = vmatprep.subr.mxu0 0.0
      %4462 = vmatpush1.xpose.msra.mxu0 0.0
      %4463 = vmatprep.subr.mxu0 0.0
      %4464 = vmatpush1.xpose.msra.mxu0 0.0
      %4465 = vmatprep.subr.mxu0 0.0
      %4466 = vmatpush1.xpose.msra.mxu0 0.0
      %4467 = vmatprep.subr.mxu0 0.0
      %4468 = vmatpush1.xpose.msra.mxu0 0.0
      %4469 = vmatprep.subr.mxu0 0.0
      %4470 = vmatpush1.xpose.msra.mxu0 0.0
      %4471 = vmatprep.subr.mxu0 0.0
      %4472 = vmatpush1.xpose.msra.mxu0 0.0
      %4473 = vmatprep.subr.mxu0 0.0
      %4474 = vmatpush1.xpose.msra.mxu0 0.0
      %4475 = vmatprep.subr.mxu0 0.0
      %4476 = vmatpush1.xpose.msra.mxu0 0.0
      %4477 = vmatprep.subr.mxu0 0.0
      %4478 = vmatpush1.xpose.msra.mxu0 0.0
      %4479 = vmatprep.subr.mxu0 0.0
      %4480 = vmatpush1.xpose.msra.mxu0 0.0
      %4481 = vmatprep.subr.mxu0 0.0
      %4482 = vmatpush1.xpose.msra.mxu0 0.0
      %4483 = vmatprep.subr.mxu0 0.0
      %4484 = vmatpush1.xpose.msra.mxu0 0.0
      %4485 = vmatprep.subr.mxu0 0.0
      %4486 = vmatpush1.xpose.msra.mxu0 0.0
      %4487 = vmatprep.subr.mxu0 0.0
      %4488 = vmatpush1.xpose.msra.mxu0 0.0
      %4489 = vmatprep.subr.mxu0 0.0
      %4490 = vmatpush1.xpose.msra.mxu0 0.0
      %4491 = vmatprep.subr.mxu0 0.0
      %4492 = vmatpush1.xpose.msra.mxu0 0.0
      %4493 = vmatprep.subr.mxu0 0.0
      %4494 = vmatpush1.xpose.msra.mxu0 0.0
      %4495 = vmatprep.subr.mxu0 0.0
      %4496 = vmatpush1.xpose.msra.mxu0 0.0
      %4497 = vmatprep.subr.mxu0 0.0
      %4498 = vmatpush1.xpose.msra.mxu0 0.0
      %4499 = vmatprep.mubr.f32.mxu0 0.0
      %4500 = vmatmul.mubr.f32.gmra.mrb[0].mxu0 %v4388
      %v4501 = vpop.f32.mrb[0].mxu0
      %v4502 = vadd.f32 0.0, %v4501
      %v4503 = vpop.f32.mrb[0].mxu0
      %4504 = vmatprep.mubr.f32.mxu0 0.0
      %4505 = vmatmul.mubr.f32.gmra.mrb[0].mxu0 %v4391
      %v4506 = vpop.f32.mrb[0].mxu0
      %v4507 = vadd.f32 0.0, %v4506
      %v4508 = vpop.f32.mrb[0].mxu0
      %4509 = vmatprep.mubr.f32.mxu0 0.0
      %4510 = vmatmul.mubr.f32.gmra.mrb[0].mxu0 %v4394
      %v4511 = vpop.f32.mrb[0].mxu0
      %v4512 = vadd.f32 0.0, %v4511
      %v4513 = vpop.f32.mrb[0].mxu0
      %4514 = vmatprep.mubr.f32.mxu0 0.0
      %4515 = vmatmul.mubr.f32.gmra.mrb[0].mxu0 %v4397
      %v4516 = vpop.f32.mrb[0].mxu0
      %v4517 = vadd.f32 0.0, %v4516
      %v4518 = vpop.f32.mrb[0].mxu0
      %4519 = vmatprep.mubr.f32.mxu0 0.0
      %4520 = vmatmul.mubr.f32.gmra.mrb[0].mxu0 %v4400
      %v4521 = vpop.f32.mrb[0].mxu0
      %v4522 = vadd.f32 0.0, %v4521
      %v4523 = vpop.f32.mrb[0].mxu0
      %4524 = vmatprep.mubr.f32.mxu0 0.0
      %4525 = vmatmul.mubr.f32.gmra.mrb[0].mxu0 %v4403
      %v4526 = vpop.f32.mrb[0].mxu0
      %v4527 = vadd.f32 0.0, %v4526
      %v4528 = vpop.f32.mrb[0].mxu0
      %4529 = vmatprep.mubr.f32.mxu0 0.0
      %4530 = vmatmul.mubr.f32.gmra.mrb[0].mxu0 %v4406
      %v4531 = vpop.f32.mrb[0].mxu0
      %v4532 = vadd.f32 0.0, %v4531
      %v4533 = vpop.f32.mrb[0].mxu0
      %4534 = vmatprep.mubr.f32.mxu0 0.0
      %4535 = vmatmul.mubr.f32.gmra.mrb[0].mxu0 %v4409
      %v4536 = vpop.f32.mrb[0].mxu0
      %v4537 = vadd.f32 0.0, %v4536
      %v4538 = vpop.f32.mrb[0].mxu0
      %4539 = vdwg.mxu0
      %v4540 = vsel %vm2247, %v4043, -inf
      %4541 = vmax.xlane.f32.xlu0 %v4540
      %v4542 = vpop.xlane.xlu0 %4541
      %v4543 = vsel %vm2247, %v4048, -inf
      %4544 = vmax.xlane.f32.xlu0 %v4543
      %v4545 = vpop.xlane.xlu0 %4544
      %v4546 = vsel %vm2247, %v4053, -inf
      %4547 = vmax.xlane.f32.xlu0 %v4546
      %v4548 = vpop.xlane.xlu0 %4547
      %v4549 = vsel %vm2247, %v4058, -inf
      %4550 = vmax.xlane.f32.xlu0 %v4549
      %v4551 = vpop.xlane.xlu0 %4550
      %v4552 = vsel %vm2247, %v4063, -inf
      %4553 = vmax.xlane.f32.xlu0 %v4552
      %v4554 = vpop.xlane.xlu0 %4553
      %v4555 = vsel %vm2247, %v4068, -inf
      %4556 = vmax.xlane.f32.xlu0 %v4555
      %v4557 = vpop.xlane.xlu0 %4556
      %v4558 = vsel %vm2247, %v4073, -inf
      %4559 = vmax.xlane.f32.xlu0 %v4558
      %v4560 = vpop.xlane.xlu0 %4559
      %v4561 = vsel %vm2247, %v4078, -inf
      %4562 = vmax.xlane.f32.xlu0 %v4561
      %v4563 = vpop.xlane.xlu0 %4562
      %v4564 = vsel %vm2247, %v4196, -inf
      %4565 = vmax.xlane.f32.xlu0 %v4564
      %v4566 = vpop.xlane.xlu0 %4565
      %v4567 = vsel %vm2247, %v4201, -inf
      %4568 = vmax.xlane.f32.xlu0 %v4567
      %v4569 = vpop.xlane.xlu0 %4568
      %v4570 = vsel %vm2247, %v4206, -inf
      %4571 = vmax.xlane.f32.xlu0 %v4570
      %v4572 = vpop.xlane.xlu0 %4571
      %v4573 = vsel %vm2247, %v4211, -inf
      %4574 = vmax.xlane.f32.xlu0 %v4573
      %v4575 = vpop.xlane.xlu0 %4574
      %v4576 = vsel %vm2247, %v4216, -inf
      %4577 = vmax.xlane.f32.xlu0 %v4576
      %v4578 = vpop.xlane.xlu0 %4577
      %v4579 = vsel %vm2247, %v4221, -inf
      %4580 = vmax.xlane.f32.xlu0 %v4579
      %v4581 = vpop.xlane.xlu0 %4580
      %v4582 = vsel %vm2247, %v4226, -inf
      %4583 = vmax.xlane.f32.xlu0 %v4582
      %v4584 = vpop.xlane.xlu0 %4583
      %v4585 = vsel %vm2247, %v4231, -inf
      %4586 = vmax.xlane.f32.xlu0 %v4585
      %v4587 = vpop.xlane.xlu0 %4586
      %v4588 = vsel %vm2247, %v4349, -inf
      %4589 = vmax.xlane.f32.xlu0 %v4588
      %v4590 = vpop.xlane.xlu0 %4589
      %v4591 = vsel %vm2247, %v4354, -inf
      %4592 = vmax.xlane.f32.xlu0 %v4591
      %v4593 = vpop.xlane.xlu0 %4592
      %v4594 = vsel %vm2247, %v4359, -inf
      %4595 = vmax.xlane.f32.xlu0 %v4594
      %v4596 = vpop.xlane.xlu0 %4595
      %v4597 = vsel %vm2247, %v4364, -inf
      %4598 = vmax.xlane.f32.xlu0 %v4597
      %v4599 = vpop.xlane.xlu0 %4598
      %v4600 = vsel %vm2247, %v4369, -inf
      %4601 = vmax.xlane.f32.xlu0 %v4600
      %v4602 = vpop.xlane.xlu0 %4601
      %v4603 = vsel %vm2247, %v4374, -inf
      %4604 = vmax.xlane.f32.xlu0 %v4603
      %v4605 = vpop.xlane.xlu0 %4604
      %v4606 = vsel %vm2247, %v4379, -inf
      %4607 = vmax.xlane.f32.xlu0 %v4606
      %v4608 = vpop.xlane.xlu0 %4607
      %v4609 = vsel %vm2247, %v4384, -inf
      %4610 = vmax.xlane.f32.xlu0 %v4609
      %v4611 = vpop.xlane.xlu0 %4610
      %v4612 = vsel %vm2247, %v4502, -inf
      %4613 = vmax.xlane.f32.xlu0 %v4612
      %v4614 = vpop.xlane.xlu0 %4613
      %v4615 = vsel %vm2247, %v4507, -inf
      %4616 = vmax.xlane.f32.xlu0 %v4615
      %v4617 = vpop.xlane.xlu0 %4616
      %v4618 = vsel %vm2247, %v4512, -inf
      %4619 = vmax.xlane.f32.xlu0 %v4618
      %v4620 = vpop.xlane.xlu0 %4619
      %v4621 = vsel %vm2247, %v4517, -inf
      %4622 = vmax.xlane.f32.xlu0 %v4621
      %v4623 = vpop.xlane.xlu0 %4622
      %v4624 = vsel %vm2247, %v4522, -inf
      %4625 = vmax.xlane.f32.xlu0 %v4624
      %v4626 = vpop.xlane.xlu0 %4625
      %v4627 = vsel %vm2247, %v4527, -inf
      %4628 = vmax.xlane.f32.xlu0 %v4627
      %v4629 = vpop.xlane.xlu0 %4628
      %v4630 = vsel %vm2247, %v4532, -inf
      %4631 = vmax.xlane.f32.xlu0 %v4630
      %v4632 = vpop.xlane.xlu0 %4631
      %v4633 = vsel %vm2247, %v4537, -inf
      %4634 = vmax.xlane.f32.xlu0 %v4633
      %v4635 = vpop.xlane.xlu0 %4634
      %v4636 = vsub.f32 %v4043, %v4542
      %v4637 = vsub.f32 %v4048, %v4545
      %v4638 = vsub.f32 %v4053, %v4548
      %v4639 = vsub.f32 %v4058, %v4551
      %v4640 = vsub.f32 %v4063, %v4554
      %v4641 = vsub.f32 %v4068, %v4557
      %v4642 = vsub.f32 %v4073, %v4560
      %v4643 = vsub.f32 %v4078, %v4563
      %v4644 = vsub.f32 %v4196, %v4566
      %v4645 = vsub.f32 %v4201, %v4569
      %v4646 = vsub.f32 %v4206, %v4572
      %v4647 = vsub.f32 %v4211, %v4575
      %v4648 = vsub.f32 %v4216, %v4578
      %v4649 = vsub.f32 %v4221, %v4581
      %v4650 = vsub.f32 %v4226, %v4584
      %v4651 = vsub.f32 %v4231, %v4587
      %v4652 = vsub.f32 %v4349, %v4590
      %v4653 = vsub.f32 %v4354, %v4593
      %v4654 = vsub.f32 %v4359, %v4596
      %v4655 = vsub.f32 %v4364, %v4599
      %v4656 = vsub.f32 %v4369, %v4602
      %v4657 = vsub.f32 %v4374, %v4605
      %v4658 = vsub.f32 %v4379, %v4608
      %v4659 = vsub.f32 %v4384, %v4611
      %v4660 = vsub.f32 %v4502, %v4614
      %v4661 = vsub.f32 %v4507, %v4617
      %v4662 = vsub.f32 %v4512, %v4620
      %v4663 = vsub.f32 %v4517, %v4623
      %v4664 = vsub.f32 %v4522, %v4626
      %v4665 = vsub.f32 %v4527, %v4629
      %v4666 = vsub.f32 %v4532, %v4632
      %v4667 = vsub.f32 %v4537, %v4635
      %v4668 = vmul.f32 %v4636, 1.442695
      %v4669 = vpow.pop %v4668
      %v4670 = vmul.f32 %v4637, 1.442695
      %v4671 = vpow.pop %v4670
      %v4672 = vmul.f32 %v4638, 1.442695
      %v4673 = vpow.pop %v4672
      %v4674 = vmul.f32 %v4639, 1.442695
      %v4675 = vpow.pop %v4674
      %v4676 = vmul.f32 %v4640, 1.442695
      %v4677 = vpow.pop %v4676
      %v4678 = vmul.f32 %v4641, 1.442695
      %v4679 = vpow.pop %v4678
      %v4680 = vmul.f32 %v4642, 1.442695
      %v4681 = vpow.pop %v4680
      %v4682 = vmul.f32 %v4643, 1.442695
      %v4683 = vpow.pop %v4682
      %v4684 = vmul.f32 %v4644, 1.442695
      %v4685 = vpow.pop %v4684
      %v4686 = vmul.f32 %v4645, 1.442695
      %v4687 = vpow.pop %v4686
      %v4688 = vmul.f32 %v4646, 1.442695
      %v4689 = vpow.pop %v4688
      %v4690 = vmul.f32 %v4647, 1.442695
      %v4691 = vpow.pop %v4690
      %v4692 = vmul.f32 %v4648, 1.442695
      %v4693 = vpow.pop %v4692
      %v4694 = vmul.f32 %v4649, 1.442695
      %v4695 = vpow.pop %v4694
      %v4696 = vmul.f32 %v4650, 1.442695
      %v4697 = vpow.pop %v4696
      %v4698 = vmul.f32 %v4651, 1.442695
      %v4699 = vpow.pop %v4698
      %v4700 = vmul.f32 %v4652, 1.442695
      %v4701 = vpow.pop %v4700
      %v4702 = vmul.f32 %v4653, 1.442695
      %v4703 = vpow.pop %v4702
      %v4704 = vmul.f32 %v4654, 1.442695
      %v4705 = vpow.pop %v4704
      %v4706 = vmul.f32 %v4655, 1.442695
      %v4707 = vpow.pop %v4706
      %v4708 = vmul.f32 %v4656, 1.442695
      %v4709 = vpow.pop %v4708
      %v4710 = vmul.f32 %v4657, 1.442695
      %v4711 = vpow.pop %v4710
      %v4712 = vmul.f32 %v4658, 1.442695
      %v4713 = vpow.pop %v4712
      %v4714 = vmul.f32 %v4659, 1.442695
      %v4715 = vpow.pop %v4714
      %v4716 = vmul.f32 %v4660, 1.442695
      %v4717 = vpow.pop %v4716
      %v4718 = vmul.f32 %v4661, 1.442695
      %v4719 = vpow.pop %v4718
      %v4720 = vmul.f32 %v4662, 1.442695
      %v4721 = vpow.pop %v4720
      %v4722 = vmul.f32 %v4663, 1.442695
      %v4723 = vpow.pop %v4722
      %v4724 = vmul.f32 %v4664, 1.442695
      %v4725 = vpow.pop %v4724
      %v4726 = vmul.f32 %v4665, 1.442695
      %v4727 = vpow.pop %v4726
      %v4728 = vmul.f32 %v4666, 1.442695
      %v4729 = vpow.pop %v4728
      %v4730 = vmul.f32 %v4667, 1.442695
      %v4731 = vpow.pop %v4730
      %v4732 = vsel %vm2247, %v4669, 0.0
      %4733 = vadd.xlane.f32.xlu0 %v4732
      %v4734 = vpop.xlane.xlu0 %4733
      %v4735 = vsel %vm2247, %v4671, 0.0
      %4736 = vadd.xlane.f32.xlu0 %v4735
      %v4737 = vpop.xlane.xlu0 %4736
      %v4738 = vsel %vm2247, %v4673, 0.0
      %4739 = vadd.xlane.f32.xlu0 %v4738
      %v4740 = vpop.xlane.xlu0 %4739
      %v4741 = vsel %vm2247, %v4675, 0.0
      %4742 = vadd.xlane.f32.xlu0 %v4741
      %v4743 = vpop.xlane.xlu0 %4742
      %v4744 = vsel %vm2247, %v4677, 0.0
      %4745 = vadd.xlane.f32.xlu0 %v4744
      %v4746 = vpop.xlane.xlu0 %4745
      %v4747 = vsel %vm2247, %v4679, 0.0
      %4748 = vadd.xlane.f32.xlu0 %v4747
      %v4749 = vpop.xlane.xlu0 %4748
      %v4750 = vsel %vm2247, %v4681, 0.0
      %4751 = vadd.xlane.f32.xlu0 %v4750
      %v4752 = vpop.xlane.xlu0 %4751
      %v4753 = vsel %vm2247, %v4683, 0.0
      %4754 = vadd.xlane.f32.xlu0 %v4753
      %v4755 = vpop.xlane.xlu0 %4754
      %v4756 = vsel %vm2247, %v4685, 0.0
      %4757 = vadd.xlane.f32.xlu0 %v4756
      %v4758 = vpop.xlane.xlu0 %4757
      %v4759 = vsel %vm2247, %v4687, 0.0
      %4760 = vadd.xlane.f32.xlu0 %v4759
      %v4761 = vpop.xlane.xlu0 %4760
      %v4762 = vsel %vm2247, %v4689, 0.0
      %4763 = vadd.xlane.f32.xlu0 %v4762
      %v4764 = vpop.xlane.xlu0 %4763
      %v4765 = vsel %vm2247, %v4691, 0.0
      %4766 = vadd.xlane.f32.xlu0 %v4765
      %v4767 = vpop.xlane.xlu0 %4766
      %v4768 = vsel %vm2247, %v4693, 0.0
      %4769 = vadd.xlane.f32.xlu0 %v4768
      %v4770 = vpop.xlane.xlu0 %4769
      %v4771 = vsel %vm2247, %v4695, 0.0
      %4772 = vadd.xlane.f32.xlu0 %v4771
      %v4773 = vpop.xlane.xlu0 %4772
      %v4774 = vsel %vm2247, %v4697, 0.0
      %4775 = vadd.xlane.f32.xlu0 %v4774
      %v4776 = vpop.xlane.xlu0 %4775
      %v4777 = vsel %vm2247, %v4699, 0.0
      %4778 = vadd.xlane.f32.xlu0 %v4777
      %v4779 = vpop.xlane.xlu0 %4778
      %v4780 = vsel %vm2247, %v4701, 0.0
      %4781 = vadd.xlane.f32.xlu0 %v4780
      %v4782 = vpop.xlane.xlu0 %4781
      %v4783 = vsel %vm2247, %v4703, 0.0
      %4784 = vadd.xlane.f32.xlu0 %v4783
      %v4785 = vpop.xlane.xlu0 %4784
      %v4786 = vsel %vm2247, %v4705, 0.0
      %4787 = vadd.xlane.f32.xlu0 %v4786
      %v4788 = vpop.xlane.xlu0 %4787
      %v4789 = vsel %vm2247, %v4707, 0.0
      %4790 = vadd.xlane.f32.xlu0 %v4789
      %v4791 = vpop.xlane.xlu0 %4790
      %v4792 = vsel %vm2247, %v4709, 0.0
      %4793 = vadd.xlane.f32.xlu0 %v4792
      %v4794 = vpop.xlane.xlu0 %4793
      %v4795 = vsel %vm2247, %v4711, 0.0
      %4796 = vadd.xlane.f32.xlu0 %v4795
      %v4797 = vpop.xlane.xlu0 %4796
      %v4798 = vsel %vm2247, %v4713, 0.0
      %4799 = vadd.xlane.f32.xlu0 %v4798
      %v4800 = vpop.xlane.xlu0 %4799
      %v4801 = vsel %vm2247, %v4715, 0.0
      %4802 = vadd.xlane.f32.xlu0 %v4801
      %v4803 = vpop.xlane.xlu0 %4802
      %v4804 = vsel %vm2247, %v4717, 0.0
      %4805 = vadd.xlane.f32.xlu0 %v4804
      %v4806 = vpop.xlane.xlu0 %4805
      %v4807 = vsel %vm2247, %v4719, 0.0
      %4808 = vadd.xlane.f32.xlu0 %v4807
      %v4809 = vpop.xlane.xlu0 %4808
      %v4810 = vsel %vm2247, %v4721, 0.0
      %4811 = vadd.xlane.f32.xlu0 %v4810
      %v4812 = vpop.xlane.xlu0 %4811
      %v4813 = vsel %vm2247, %v4723, 0.0
      %4814 = vadd.xlane.f32.xlu0 %v4813
      %v4815 = vpop.xlane.xlu0 %4814
      %v4816 = vsel %vm2247, %v4725, 0.0
      %4817 = vadd.xlane.f32.xlu0 %v4816
      %v4818 = vpop.xlane.xlu0 %4817
      %v4819 = vsel %vm2247, %v4727, 0.0
      %4820 = vadd.xlane.f32.xlu0 %v4819
      %v4821 = vpop.xlane.xlu0 %4820
      %v4822 = vsel %vm2247, %v4729, 0.0
      %4823 = vadd.xlane.f32.xlu0 %v4822
      %v4824 = vpop.xlane.xlu0 %4823
      %v4825 = vsel %vm2247, %v4731, 0.0
      %4826 = vadd.xlane.f32.xlu0 %v4825
      %v4827 = vpop.xlane.xlu0 %4826
      %v4829 = vsel %vm2247, %v4669, 0
      %v4832 = vsel %vm2247, %v4671, 0
      %v4835 = vsel %vm2247, %v4673, 0
      %v4838 = vsel %vm2247, %v4675, 0
      %v4841 = vsel %vm2247, %v4677, 0
      %v4844 = vsel %vm2247, %v4679, 0
      %v4847 = vsel %vm2247, %v4681, 0
      %v4850 = vsel %vm2247, %v4683, 0
      %4852 = vmatprep.subr.mxu0 0.0
      %4853 = vmatpush1.msra.mxu0 %v3198
      %4854 = vmatprep.subr.mxu0 0.0
      %4855 = vmatpush1.msra.mxu0 %v3203
      %4856 = vmatprep.subr.mxu0 0.0
      %4857 = vmatpush1.msra.mxu0 %v3208
      %4858 = vmatprep.subr.mxu0 0.0
      %4859 = vmatpush1.msra.mxu0 %v3213
      %4860 = vmatprep.subr.mxu0 0.0
      %4861 = vmatpush1.msra.mxu0 %v3218
      %4862 = vmatprep.subr.mxu0 0.0
      %4863 = vmatpush1.msra.mxu0 %v3223
      %4864 = vmatprep.subr.mxu0 0.0
      %4865 = vmatpush1.msra.mxu0 %v3228
      %4866 = vmatprep.subr.mxu0 0.0
      %4867 = vmatpush1.msra.mxu0 %v3233
      %4868 = vmatprep.subr.mxu0 0.0
      %4869 = vmatpush1.msra.mxu0 0.0
      %4870 = vmatprep.subr.mxu0 0.0
      %4871 = vmatpush1.msra.mxu0 0.0
      %4872 = vmatprep.subr.mxu0 0.0
      %4873 = vmatpush1.msra.mxu0 0.0
      %4874 = vmatprep.subr.mxu0 0.0
      %4875 = vmatpush1.msra.mxu0 0.0
      %4876 = vmatprep.subr.mxu0 0.0
      %4877 = vmatpush1.msra.mxu0 0.0
      %4878 = vmatprep.subr.mxu0 0.0
      %4879 = vmatpush1.msra.mxu0 0.0
      %4880 = vmatprep.subr.mxu0 0.0
      %4881 = vmatpush1.msra.mxu0 0.0
      %4882 = vmatprep.subr.mxu0 0.0
      %4883 = vmatpush1.msra.mxu0 0.0
      %4884 = vmatprep.subr.mxu0 0.0
      %4885 = vmatpush1.msra.mxu0 0.0
      %4886 = vmatprep.subr.mxu0 0.0
      %4887 = vmatpush1.msra.mxu0 0.0
      %4888 = vmatprep.subr.mxu0 0.0
      %4889 = vmatpush1.msra.mxu0 0.0
      %4890 = vmatprep.subr.mxu0 0.0
      %4891 = vmatpush1.msra.mxu0 0.0
      %4892 = vmatprep.subr.mxu0 0.0
      %4893 = vmatpush1.msra.mxu0 0.0
      %4894 = vmatprep.subr.mxu0 0.0
      %4895 = vmatpush1.msra.mxu0 0.0
      %4896 = vmatprep.subr.mxu0 0.0
      %4897 = vmatpush1.msra.mxu0 0.0
      %4898 = vmatprep.subr.mxu0 0.0
      %4899 = vmatpush1.msra.mxu0 0.0
      %4900 = vmatprep.subr.mxu0 0.0
      %4901 = vmatpush1.msra.mxu0 0.0
      %4902 = vmatprep.subr.mxu0 0.0
      %4903 = vmatpush1.msra.mxu0 0.0
      %4904 = vmatprep.subr.mxu0 0.0
      %4905 = vmatpush1.msra.mxu0 0.0
      %4906 = vmatprep.subr.mxu0 0.0
      %4907 = vmatpush1.msra.mxu0 0.0
      %4908 = vmatprep.subr.mxu0 0.0
      %4909 = vmatpush1.msra.mxu0 0.0
      %4910 = vmatprep.subr.mxu0 0.0
      %4911 = vmatpush1.msra.mxu0 0.0
      %4912 = vmatprep.subr.mxu0 0.0
      %4913 = vmatpush1.msra.mxu0 0.0
      %4914 = vmatprep.subr.mxu0 0.0
      %4915 = vmatpush1.msra.mxu0 0.0
      %4916 = vmatprep.mubr.f32.mxu0 0.0
      %4917 = vmatmul.mubr.f32.gmra.mrb[0].mxu0 %v4829
      %v4918 = vpop.f32.mrb[0].mxu0
      %v4919 = vadd.f32 0.0, %v4918
      %v4920 = vpop.f32.mrb[0].mxu0
      %4921 = vmatprep.mubr.f32.mxu0 0.0
      %4922 = vmatmul.mubr.f32.gmra.mrb[0].mxu0 %v4832
      %v4923 = vpop.f32.mrb[0].mxu0
      %v4924 = vadd.f32 0.0, %v4923
      %v4925 = vpop.f32.mrb[0].mxu0
      %4926 = vmatprep.mubr.f32.mxu0 0.0
      %4927 = vmatmul.mubr.f32.gmra.mrb[0].mxu0 %v4835
      %v4928 = vpop.f32.mrb[0].mxu0
      %v4929 = vadd.f32 0.0, %v4928
      %v4930 = vpop.f32.mrb[0].mxu0
      %4931 = vmatprep.mubr.f32.mxu0 0.0
      %4932 = vmatmul.mubr.f32.gmra.mrb[0].mxu0 %v4838
      %v4933 = vpop.f32.mrb[0].mxu0
      %v4934 = vadd.f32 0.0, %v4933
      %v4935 = vpop.f32.mrb[0].mxu0
      %4936 = vmatprep.mubr.f32.mxu0 0.0
      %4937 = vmatmul.mubr.f32.gmra.mrb[0].mxu0 %v4841
      %v4938 = vpop.f32.mrb[0].mxu0
      %v4939 = vadd.f32 0.0, %v4938
      %v4940 = vpop.f32.mrb[0].mxu0
      %4941 = vmatprep.mubr.f32.mxu0 0.0
      %4942 = vmatmul.mubr.f32.gmra.mrb[0].mxu0 %v4844
      %v4943 = vpop.f32.mrb[0].mxu0
      %v4944 = vadd.f32 0.0, %v4943
      %v4945 = vpop.f32.mrb[0].mxu0
      %4946 = vmatprep.mubr.f32.mxu0 0.0
      %4947 = vmatmul.mubr.f32.gmra.mrb[0].mxu0 %v4847
      %v4948 = vpop.f32.mrb[0].mxu0
      %v4949 = vadd.f32 0.0, %v4948
      %v4950 = vpop.f32.mrb[0].mxu0
      %4951 = vmatprep.mubr.f32.mxu0 0.0
      %4952 = vmatmul.mubr.f32.gmra.mrb[0].mxu0 %v4850
      %v4953 = vpop.f32.mrb[0].mxu0
      %v4954 = vadd.f32 0.0, %v4953
      %v4955 = vpop.f32.mrb[0].mxu0
      %4956 = vdwg.mxu0
      %v4958 = vsel %vm2247, %v4685, 0
      %v4961 = vsel %vm2247, %v4687, 0
      %v4964 = vsel %vm2247, %v4689, 0
      %v4967 = vsel %vm2247, %v4691, 0
      %v4970 = vsel %vm2247, %v4693, 0
      %v4973 = vsel %vm2247, %v4695, 0
      %v4976 = vsel %vm2247, %v4697, 0
      %v4979 = vsel %vm2247, %v4699, 0
      %4981 = vmatprep.subr.mxu0 0.0
      %4982 = vmatpush1.msra.mxu0 %v3238
      %4983 = vmatprep.subr.mxu0 0.0
      %4984 = vmatpush1.msra.mxu0 %v3243
      %4985 = vmatprep.subr.mxu0 0.0
      %4986 = vmatpush1.msra.mxu0 %v3248
      %4987 = vmatprep.subr.mxu0 0.0
      %4988 = vmatpush1.msra.mxu0 %v3253
      %4989 = vmatprep.subr.mxu0 0.0
      %4990 = vmatpush1.msra.mxu0 %v3258
      %4991 = vmatprep.subr.mxu0 0.0
      %4992 = vmatpush1.msra.mxu0 %v3263
      %4993 = vmatprep.subr.mxu0 0.0
      %4994 = vmatpush1.msra.mxu0 %v3268
      %4995 = vmatprep.subr.mxu0 0.0
      %4996 = vmatpush1.msra.mxu0 %v3273
      %4997 = vmatprep.subr.mxu0 0.0
      %4998 = vmatpush1.msra.mxu0 0.0
      %4999 = vmatprep.subr.mxu0 0.0
      %5000 = vmatpush1.msra.mxu0 0.0
      %5001 = vmatprep.subr.mxu0 0.0
      %5002 = vmatpush1.msra.mxu0 0.0
      %5003 = vmatprep.subr.mxu0 0.0
      %5004 = vmatpush1.msra.mxu0 0.0
      %5005 = vmatprep.subr.mxu0 0.0
      %5006 = vmatpush1.msra.mxu0 0.0
      %5007 = vmatprep.subr.mxu0 0.0
      %5008 = vmatpush1.msra.mxu0 0.0
      %5009 = vmatprep.subr.mxu0 0.0
      %5010 = vmatpush1.msra.mxu0 0.0
      %5011 = vmatprep.subr.mxu0 0.0
      %5012 = vmatpush1.msra.mxu0 0.0
      %5013 = vmatprep.subr.mxu0 0.0
      %5014 = vmatpush1.msra.mxu0 0.0
      %5015 = vmatprep.subr.mxu0 0.0
      %5016 = vmatpush1.msra.mxu0 0.0
      %5017 = vmatprep.subr.mxu0 0.0
      %5018 = vmatpush1.msra.mxu0 0.0
      %5019 = vmatprep.subr.mxu0 0.0
      %5020 = vmatpush1.msra.mxu0 0.0
      %5021 = vmatprep.subr.mxu0 0.0
      %5022 = vmatpush1.msra.mxu0 0.0
      %5023 = vmatprep.subr.mxu0 0.0
      %5024 = vmatpush1.msra.mxu0 0.0
      %5025 = vmatprep.subr.mxu0 0.0
      %5026 = vmatpush1.msra.mxu0 0.0
      %5027 = vmatprep.subr.mxu0 0.0
      %5028 = vmatpush1.msra.mxu0 0.0
      %5029 = vmatprep.subr.mxu0 0.0
      %5030 = vmatpush1.msra.mxu0 0.0
      %5031 = vmatprep.subr.mxu0 0.0
      %5032 = vmatpush1.msra.mxu0 0.0
      %5033 = vmatprep.subr.mxu0 0.0
      %5034 = vmatpush1.msra.mxu0 0.0
      %5035 = vmatprep.subr.mxu0 0.0
      %5036 = vmatpush1.msra.mxu0 0.0
      %5037 = vmatprep.subr.mxu0 0.0
      %5038 = vmatpush1.msra.mxu0 0.0
      %5039 = vmatprep.subr.mxu0 0.0
      %5040 = vmatpush1.msra.mxu0 0.0
      %5041 = vmatprep.subr.mxu0 0.0
      %5042 = vmatpush1.msra.mxu0 0.0
      %5043 = vmatprep.subr.mxu0 0.0
      %5044 = vmatpush1.msra.mxu0 0.0
      %5045 = vmatprep.mubr.f32.mxu0 0.0
      %5046 = vmatmul.mubr.f32.gmra.mrb[0].mxu0 %v4958
      %v5047 = vpop.f32.mrb[0].mxu0
      %v5048 = vadd.f32 0.0, %v5047
      %v5049 = vpop.f32.mrb[0].mxu0
      %5050 = vmatprep.mubr.f32.mxu0 0.0
      %5051 = vmatmul.mubr.f32.gmra.mrb[0].mxu0 %v4961
      %v5052 = vpop.f32.mrb[0].mxu0
      %v5053 = vadd.f32 0.0, %v5052
      %v5054 = vpop.f32.mrb[0].mxu0
      %5055 = vmatprep.mubr.f32.mxu0 0.0
      %5056 = vmatmul.mubr.f32.gmra.mrb[0].mxu0 %v4964
      %v5057 = vpop.f32.mrb[0].mxu0
      %v5058 = vadd.f32 0.0, %v5057
      %v5059 = vpop.f32.mrb[0].mxu0
      %5060 = vmatprep.mubr.f32.mxu0 0.0
      %5061 = vmatmul.mubr.f32.gmra.mrb[0].mxu0 %v4967
      %v5062 = vpop.f32.mrb[0].mxu0
      %v5063 = vadd.f32 0.0, %v5062
      %v5064 = vpop.f32.mrb[0].mxu0
      %5065 = vmatprep.mubr.f32.mxu0 0.0
      %5066 = vmatmul.mubr.f32.gmra.mrb[0].mxu0 %v4970
      %v5067 = vpop.f32.mrb[0].mxu0
      %v5068 = vadd.f32 0.0, %v5067
      %v5069 = vpop.f32.mrb[0].mxu0
      %5070 = vmatprep.mubr.f32.mxu0 0.0
      %5071 = vmatmul.mubr.f32.gmra.mrb[0].mxu0 %v4973
      %v5072 = vpop.f32.mrb[0].mxu0
      %v5073 = vadd.f32 0.0, %v5072
      %v5074 = vpop.f32.mrb[0].mxu0
      %5075 = vmatprep.mubr.f32.mxu0 0.0
      %5076 = vmatmul.mubr.f32.gmra.mrb[0].mxu0 %v4976
      %v5077 = vpop.f32.mrb[0].mxu0
      %v5078 = vadd.f32 0.0, %v5077
      %v5079 = vpop.f32.mrb[0].mxu0
      %5080 = vmatprep.mubr.f32.mxu0 0.0
      %5081 = vmatmul.mubr.f32.gmra.mrb[0].mxu0 %v4979
      %v5082 = vpop.f32.mrb[0].mxu0
      %v5083 = vadd.f32 0.0, %v5082
      %v5084 = vpop.f32.mrb[0].mxu0
      %5085 = vdwg.mxu0
      %v5087 = vsel %vm2247, %v4701, 0
      %v5090 = vsel %vm2247, %v4703, 0
      %v5093 = vsel %vm2247, %v4705, 0
      %v5096 = vsel %vm2247, %v4707, 0
      %v5099 = vsel %vm2247, %v4709, 0
      %v5102 = vsel %vm2247, %v4711, 0
      %v5105 = vsel %vm2247, %v4713, 0
      %v5108 = vsel %vm2247, %v4715, 0
      %5110 = vmatprep.subr.mxu0 0.0
      %5111 = vmatpush1.msra.mxu0 %v3278
      %5112 = vmatprep.subr.mxu0 0.0
      %5113 = vmatpush1.msra.mxu0 %v3283
      %5114 = vmatprep.subr.mxu0 0.0
      %5115 = vmatpush1.msra.mxu0 %v3288
      %5116 = vmatprep.subr.mxu0 0.0
      %5117 = vmatpush1.msra.mxu0 %v3293
      %5118 = vmatprep.subr.mxu0 0.0
      %5119 = vmatpush1.msra.mxu0 %v3298
      %5120 = vmatprep.subr.mxu0 0.0
      %5121 = vmatpush1.msra.mxu0 %v3303
      %5122 = vmatprep.subr.mxu0 0.0
      %5123 = vmatpush1.msra.mxu0 %v3308
      %5124 = vmatprep.subr.mxu0 0.0
      %5125 = vmatpush1.msra.mxu0 %v3313
      %5126 = vmatprep.subr.mxu0 0.0
      %5127 = vmatpush1.msra.mxu0 0.0
      %5128 = vmatprep.subr.mxu0 0.0
      %5129 = vmatpush1.msra.mxu0 0.0
      %5130 = vmatprep.subr.mxu0 0.0
      %5131 = vmatpush1.msra.mxu0 0.0
      %5132 = vmatprep.subr.mxu0 0.0
      %5133 = vmatpush1.msra.mxu0 0.0
      %5134 = vmatprep.subr.mxu0 0.0
      %5135 = vmatpush1.msra.mxu0 0.0
      %5136 = vmatprep.subr.mxu0 0.0
      %5137 = vmatpush1.msra.mxu0 0.0
      %5138 = vmatprep.subr.mxu0 0.0
      %5139 = vmatpush1.msra.mxu0 0.0
      %5140 = vmatprep.subr.mxu0 0.0
      %5141 = vmatpush1.msra.mxu0 0.0
      %5142 = vmatprep.subr.mxu0 0.0
      %5143 = vmatpush1.msra.mxu0 0.0
      %5144 = vmatprep.subr.mxu0 0.0
      %5145 = vmatpush1.msra.mxu0 0.0
      %5146 = vmatprep.subr.mxu0 0.0
      %5147 = vmatpush1.msra.mxu0 0.0
      %5148 = vmatprep.subr.mxu0 0.0
      %5149 = vmatpush1.msra.mxu0 0.0
      %5150 = vmatprep.subr.mxu0 0.0
      %5151 = vmatpush1.msra.mxu0 0.0
      %5152 = vmatprep.subr.mxu0 0.0
      %5153 = vmatpush1.msra.mxu0 0.0
      %5154 = vmatprep.subr.mxu0 0.0
      %5155 = vmatpush1.msra.mxu0 0.0
      %5156 = vmatprep.subr.mxu0 0.0
      %5157 = vmatpush1.msra.mxu0 0.0
      %5158 = vmatprep.subr.mxu0 0.0
      %5159 = vmatpush1.msra.mxu0 0.0
      %5160 = vmatprep.subr.mxu0 0.0
      %5161 = vmatpush1.msra.mxu0 0.0
      %5162 = vmatprep.subr.mxu0 0.0
      %5163 = vmatpush1.msra.mxu0 0.0
      %5164 = vmatprep.subr.mxu0 0.0
      %5165 = vmatpush1.msra.mxu0 0.0
      %5166 = vmatprep.subr.mxu0 0.0
      %5167 = vmatpush1.msra.mxu0 0.0
      %5168 = vmatprep.subr.mxu0 0.0
      %5169 = vmatpush1.msra.mxu0 0.0
      %5170 = vmatprep.subr.mxu0 0.0
      %5171 = vmatpush1.msra.mxu0 0.0
      %5172 = vmatprep.subr.mxu0 0.0
      %5173 = vmatpush1.msra.mxu0 0.0
      %5174 = vmatprep.mubr.f32.mxu0 0.0
      %5175 = vmatmul.mubr.f32.gmra.mrb[0].mxu0 %v5087
      %v5176 = vpop.f32.mrb[0].mxu0
      %v5177 = vadd.f32 0.0, %v5176
      %v5178 = vpop.f32.mrb[0].mxu0
      %5179 = vmatprep.mubr.f32.mxu0 0.0
      %5180 = vmatmul.mubr.f32.gmra.mrb[0].mxu0 %v5090
      %v5181 = vpop.f32.mrb[0].mxu0
      %v5182 = vadd.f32 0.0, %v5181
      %v5183 = vpop.f32.mrb[0].mxu0
      %5184 = vmatprep.mubr.f32.mxu0 0.0
      %5185 = vmatmul.mubr.f32.gmra.mrb[0].mxu0 %v5093
      %v5186 = vpop.f32.mrb[0].mxu0
      %v5187 = vadd.f32 0.0, %v5186
      %v5188 = vpop.f32.mrb[0].mxu0
      %5189 = vmatprep.mubr.f32.mxu0 0.0
      %5190 = vmatmul.mubr.f32.gmra.mrb[0].mxu0 %v5096
      %v5191 = vpop.f32.mrb[0].mxu0
      %v5192 = vadd.f32 0.0, %v5191
      %v5193 = vpop.f32.mrb[0].mxu0
      %5194 = vmatprep.mubr.f32.mxu0 0.0
      %5195 = vmatmul.mubr.f32.gmra.mrb[0].mxu0 %v5099
      %v5196 = vpop.f32.mrb[0].mxu0
      %v5197 = vadd.f32 0.0, %v5196
      %v5198 = vpop.f32.mrb[0].mxu0
      %5199 = vmatprep.mubr.f32.mxu0 0.0
      %5200 = vmatmul.mubr.f32.gmra.mrb[0].mxu0 %v5102
      %v5201 = vpop.f32.mrb[0].mxu0
      %v5202 = vadd.f32 0.0, %v5201
      %v5203 = vpop.f32.mrb[0].mxu0
      %5204 = vmatprep.mubr.f32.mxu0 0.0
      %5205 = vmatmul.mubr.f32.gmra.mrb[0].mxu0 %v5105
      %v5206 = vpop.f32.mrb[0].mxu0
      %v5207 = vadd.f32 0.0, %v5206
      %v5208 = vpop.f32.mrb[0].mxu0
      %5209 = vmatprep.mubr.f32.mxu0 0.0
      %5210 = vmatmul.mubr.f32.gmra.mrb[0].mxu0 %v5108
      %v5211 = vpop.f32.mrb[0].mxu0
      %v5212 = vadd.f32 0.0, %v5211
      %v5213 = vpop.f32.mrb[0].mxu0
      %5214 = vdwg.mxu0
      %v5216 = vsel %vm2247, %v4717, 0
      %v5219 = vsel %vm2247, %v4719, 0
      %v5222 = vsel %vm2247, %v4721, 0
      %v5225 = vsel %vm2247, %v4723, 0
      %v5228 = vsel %vm2247, %v4725, 0
      %v5231 = vsel %vm2247, %v4727, 0
      %v5234 = vsel %vm2247, %v4729, 0
      %v5237 = vsel %vm2247, %v4731, 0
      %5239 = vmatprep.subr.mxu0 0.0
      %5240 = vmatpush1.msra.mxu0 %v3318
      %5241 = vmatprep.subr.mxu0 0.0
      %5242 = vmatpush1.msra.mxu0 %v3323
      %5243 = vmatprep.subr.mxu0 0.0
      %5244 = vmatpush1.msra.mxu0 %v3328
      %5245 = vmatprep.subr.mxu0 0.0
      %5246 = vmatpush1.msra.mxu0 %v3333
      %5247 = vmatprep.subr.mxu0 0.0
      %5248 = vmatpush1.msra.mxu0 %v3338
      %5249 = vmatprep.subr.mxu0 0.0
      %5250 = vmatpush1.msra.mxu0 %v3343
      %5251 = vmatprep.subr.mxu0 0.0
      %5252 = vmatpush1.msra.mxu0 %v3348
      %5253 = vmatprep.subr.mxu0 0.0
      %5254 = vmatpush1.msra.mxu0 %v3353
      %5255 = vmatprep.subr.mxu0 0.0
      %5256 = vmatpush1.msra.mxu0 0.0
      %5257 = vmatprep.subr.mxu0 0.0
      %5258 = vmatpush1.msra.mxu0 0.0
      %5259 = vmatprep.subr.mxu0 0.0
      %5260 = vmatpush1.msra.mxu0 0.0
      %5261 = vmatprep.subr.mxu0 0.0
      %5262 = vmatpush1.msra.mxu0 0.0
      %5263 = vmatprep.subr.mxu0 0.0
      %5264 = vmatpush1.msra.mxu0 0.0
      %5265 = vmatprep.subr.mxu0 0.0
      %5266 = vmatpush1.msra.mxu0 0.0
      %5267 = vmatprep.subr.mxu0 0.0
      %5268 = vmatpush1.msra.mxu0 0.0
      %5269 = vmatprep.subr.mxu0 0.0
      %5270 = vmatpush1.msra.mxu0 0.0
      %5271 = vmatprep.subr.mxu0 0.0
      %5272 = vmatpush1.msra.mxu0 0.0
      %5273 = vmatprep.subr.mxu0 0.0
      %5274 = vmatpush1.msra.mxu0 0.0
      %5275 = vmatprep.subr.mxu0 0.0
      %5276 = vmatpush1.msra.mxu0 0.0
      %5277 = vmatprep.subr.mxu0 0.0
      %5278 = vmatpush1.msra.mxu0 0.0
      %5279 = vmatprep.subr.mxu0 0.0
      %5280 = vmatpush1.msra.mxu0 0.0
      %5281 = vmatprep.subr.mxu0 0.0
      %5282 = vmatpush1.msra.mxu0 0.0
      %5283 = vmatprep.subr.mxu0 0.0
      %5284 = vmatpush1.msra.mxu0 0.0
      %5285 = vmatprep.subr.mxu0 0.0
      %5286 = vmatpush1.msra.mxu0 0.0
      %5287 = vmatprep.subr.mxu0 0.0
      %5288 = vmatpush1.msra.mxu0 0.0
      %5289 = vmatprep.subr.mxu0 0.0
      %5290 = vmatpush1.msra.mxu0 0.0
      %5291 = vmatprep.subr.mxu0 0.0
      %5292 = vmatpush1.msra.mxu0 0.0
      %5293 = vmatprep.subr.mxu0 0.0
      %5294 = vmatpush1.msra.mxu0 0.0
      %5295 = vmatprep.subr.mxu0 0.0
      %5296 = vmatpush1.msra.mxu0 0.0
      %5297 = vmatprep.subr.mxu0 0.0
      %5298 = vmatpush1.msra.mxu0 0.0
      %5299 = vmatprep.subr.mxu0 0.0
      %5300 = vmatpush1.msra.mxu0 0.0
      %5301 = vmatprep.subr.mxu0 0.0
      %5302 = vmatpush1.msra.mxu0 0.0
      %5303 = vmatprep.mubr.f32.mxu0 0.0
      %5304 = vmatmul.mubr.f32.gmra.mrb[0].mxu0 %v5216
      %v5305 = vpop.f32.mrb[0].mxu0
      %v5306 = vadd.f32 0.0, %v5305
      %v5307 = vpop.f32.mrb[0].mxu0
      %5308 = vmatprep.mubr.f32.mxu0 0.0
      %5309 = vmatmul.mubr.f32.gmra.mrb[0].mxu0 %v5219
      %v5310 = vpop.f32.mrb[0].mxu0
      %v5311 = vadd.f32 0.0, %v5310
      %v5312 = vpop.f32.mrb[0].mxu0
      %5313 = vmatprep.mubr.f32.mxu0 0.0
      %5314 = vmatmul.mubr.f32.gmra.mrb[0].mxu0 %v5222
      %v5315 = vpop.f32.mrb[0].mxu0
      %v5316 = vadd.f32 0.0, %v5315
      %v5317 = vpop.f32.mrb[0].mxu0
      %5318 = vmatprep.mubr.f32.mxu0 0.0
      %5319 = vmatmul.mubr.f32.gmra.mrb[0].mxu0 %v5225
      %v5320 = vpop.f32.mrb[0].mxu0
      %v5321 = vadd.f32 0.0, %v5320
      %v5322 = vpop.f32.mrb[0].mxu0
      %5323 = vmatprep.mubr.f32.mxu0 0.0
      %5324 = vmatmul.mubr.f32.gmra.mrb[0].mxu0 %v5228
      %v5325 = vpop.f32.mrb[0].mxu0
      %v5326 = vadd.f32 0.0, %v5325
      %v5327 = vpop.f32.mrb[0].mxu0
      %5328 = vmatprep.mubr.f32.mxu0 0.0
      %5329 = vmatmul.mubr.f32.gmra.mrb[0].mxu0 %v5231
      %v5330 = vpop.f32.mrb[0].mxu0
      %v5331 = vadd.f32 0.0, %v5330
      %v5332 = vpop.f32.mrb[0].mxu0
      %5333 = vmatprep.mubr.f32.mxu0 0.0
      %5334 = vmatmul.mubr.f32.gmra.mrb[0].mxu0 %v5234
      %v5335 = vpop.f32.mrb[0].mxu0
      %v5336 = vadd.f32 0.0, %v5335
      %v5337 = vpop.f32.mrb[0].mxu0
      %5338 = vmatprep.mubr.f32.mxu0 0.0
      %5339 = vmatmul.mubr.f32.gmra.mrb[0].mxu0 %v5237
      %v5340 = vpop.f32.mrb[0].mxu0
      %v5341 = vadd.f32 0.0, %v5340
      %v5342 = vpop.f32.mrb[0].mxu0
      %5343 = vdwg.mxu0
      %v5344 = vrcp.pop %v4734
      %v5345 = vrcp.pop %v4737
      %v5346 = vrcp.pop %v4740
      %v5347 = vrcp.pop %v4743
      %v5348 = vrcp.pop %v4746
      %v5349 = vrcp.pop %v4749
      %v5350 = vrcp.pop %v4752
      %v5351 = vrcp.pop %v4755
      %v5352 = vrcp.pop %v4758
      %v5353 = vrcp.pop %v4761
      %v5354 = vrcp.pop %v4764
      %v5355 = vrcp.pop %v4767
      %v5356 = vrcp.pop %v4770
      %v5357 = vrcp.pop %v4773
      %v5358 = vrcp.pop %v4776
      %v5359 = vrcp.pop %v4779
      %v5360 = vrcp.pop %v4782
      %v5361 = vrcp.pop %v4785
      %v5362 = vrcp.pop %v4788
      %v5363 = vrcp.pop %v4791
      %v5364 = vrcp.pop %v4794
      %v5365 = vrcp.pop %v4797
      %v5366 = vrcp.pop %v4800
      %v5367 = vrcp.pop %v4803
      %v5368 = vrcp.pop %v4806
      %v5369 = vrcp.pop %v4809
      %v5370 = vrcp.pop %v4812
      %v5371 = vrcp.pop %v4815
      %v5372 = vrcp.pop %v4818
      %v5373 = vrcp.pop %v4821
      %v5374 = vrcp.pop %v4824
      %v5375 = vrcp.pop %v4827
      %v5376 = vmul.f32 %v4919, %v5344
      %v5377 = vmul.f32 %v4924, %v5345
      %v5378 = vmul.f32 %v4929, %v5346
      %v5379 = vmul.f32 %v4934, %v5347
      %v5380 = vmul.f32 %v4939, %v5348
      %v5381 = vmul.f32 %v4944, %v5349
      %v5382 = vmul.f32 %v4949, %v5350
      %v5383 = vmul.f32 %v4954, %v5351
      %v5384 = vmul.f32 %v5048, %v5352
      %v5385 = vmul.f32 %v5053, %v5353
      %v5386 = vmul.f32 %v5058, %v5354
      %v5387 = vmul.f32 %v5063, %v5355
      %v5388 = vmul.f32 %v5068, %v5356
      %v5389 = vmul.f32 %v5073, %v5357
      %v5390 = vmul.f32 %v5078, %v5358
      %v5391 = vmul.f32 %v5083, %v5359
      %v5392 = vmul.f32 %v5177, %v5360
      %v5393 = vmul.f32 %v5182, %v5361
      %v5394 = vmul.f32 %v5187, %v5362
      %v5395 = vmul.f32 %v5192, %v5363
      %v5396 = vmul.f32 %v5197, %v5364
      %v5397 = vmul.f32 %v5202, %v5365
      %v5398 = vmul.f32 %v5207, %v5366
      %v5399 = vmul.f32 %v5212, %v5367
      %v5400 = vmul.f32 %v5306, %v5368
      %v5401 = vmul.f32 %v5311, %v5369
      %v5402 = vmul.f32 %v5316, %v5370
      %v5403 = vmul.f32 %v5321, %v5371
      %v5404 = vmul.f32 %v5326, %v5372
      %v5405 = vmul.f32 %v5331, %v5373
      %v5406 = vmul.f32 %v5336, %v5374
      %v5407 = vmul.f32 %v5341, %v5375
      %s5408 = scalar_lea.vmem %s6, 16
      %v5409 = vld [vmem:[%s5408] sm:$0xff]
      %v5410 = vld [vmem:[%s5408 + $0x8] sm:$0xff]
      %v5412 = vsel %vm1634, %v5376, 0
      %v5415 = vsel %vm1634, %v5377, 0
      %v5418 = vsel %vm1634, %v5378, 0
      %v5421 = vsel %vm1634, %v5379, 0
      %v5424 = vsel %vm1634, %v5380, 0
      %v5427 = vsel %vm1634, %v5381, 0
      %v5430 = vsel %vm1634, %v5382, 0
      %v5433 = vsel %vm1634, %v5383, 0
      %v5436 = vsel %vm1634, %v5384, 0
      %v5439 = vsel %vm1634, %v5385, 0
      %v5442 = vsel %vm1634, %v5386, 0
      %v5445 = vsel %vm1634, %v5387, 0
      %v5448 = vsel %vm1634, %v5388, 0
      %v5451 = vsel %vm1634, %v5389, 0
      %v5454 = vsel %vm1634, %v5390, 0
      %v5457 = vsel %vm1634, %v5391, 0
      %v5460 = vsel %vm1634, %v5392, 0
      %v5463 = vsel %vm1634, %v5393, 0
      %v5466 = vsel %vm1634, %v5394, 0
      %v5469 = vsel %vm1634, %v5395, 0
      %v5472 = vsel %vm1634, %v5396, 0
      %v5475 = vsel %vm1634, %v5397, 0
      %v5478 = vsel %vm1634, %v5398, 0
      %v5481 = vsel %vm1634, %v5399, 0
      %v5484 = vsel %vm1634, %v5400, 0
      %v5487 = vsel %vm1634, %v5401, 0
      %v5490 = vsel %vm1634, %v5402, 0
      %v5493 = vsel %vm1634, %v5403, 0
      %v5496 = vsel %vm1634, %v5404, 0
      %v5499 = vsel %vm1634, %v5405, 0
      %v5502 = vsel %vm1634, %v5406, 0
      %v5505 = vsel %vm1634, %v5407, 0
      %5507 = vmatprep.subr.mxu0 0.0
      %5508 = vmatpush1.msra.mxu0 %v5409
      %5509 = vmatprep.subr.mxu0 0.0
      %5510 = vmatpush1.msra.mxu0 %v5410
      %5511 = vmatprep.subr.mxu0 0.0
      %5512 = vmatpush1.msra.mxu0 0.0
      %5513 = vmatprep.subr.mxu0 0.0
      %5514 = vmatpush1.msra.mxu0 0.0
      %5515 = vmatprep.subr.mxu0 0.0
      %5516 = vmatpush1.msra.mxu0 0.0
      %5517 = vmatprep.subr.mxu0 0.0
      %5518 = vmatpush1.msra.mxu0 0.0
      %5519 = vmatprep.subr.mxu0 0.0
      %5520 = vmatpush1.msra.mxu0 0.0
      %5521 = vmatprep.subr.mxu0 0.0
      %5522 = vmatpush1.msra.mxu0 0.0
      %5523 = vmatprep.subr.mxu0 0.0
      %5524 = vmatpush1.msra.mxu0 0.0
      %5525 = vmatprep.subr.mxu0 0.0
      %5526 = vmatpush1.msra.mxu0 0.0
      %5527 = vmatprep.subr.mxu0 0.0
      %5528 = vmatpush1.msra.mxu0 0.0
      %5529 = vmatprep.subr.mxu0 0.0
      %5530 = vmatpush1.msra.mxu0 0.0
      %5531 = vmatprep.subr.mxu0 0.0
      %5532 = vmatpush1.msra.mxu0 0.0
      %5533 = vmatprep.subr.mxu0 0.0
      %5534 = vmatpush1.msra.mxu0 0.0
      %5535 = vmatprep.subr.mxu0 0.0
      %5536 = vmatpush1.msra.mxu0 0.0
      %5537 = vmatprep.subr.mxu0 0.0
      %5538 = vmatpush1.msra.mxu0 0.0
      %5539 = vmatprep.subr.mxu0 0.0
      %5540 = vmatpush1.msra.mxu0 0.0
      %5541 = vmatprep.subr.mxu0 0.0
      %5542 = vmatpush1.msra.mxu0 0.0
      %5543 = vmatprep.subr.mxu0 0.0
      %5544 = vmatpush1.msra.mxu0 0.0
      %5545 = vmatprep.subr.mxu0 0.0
      %5546 = vmatpush1.msra.mxu0 0.0
      %5547 = vmatprep.subr.mxu0 0.0
      %5548 = vmatpush1.msra.mxu0 0.0
      %5549 = vmatprep.subr.mxu0 0.0
      %5550 = vmatpush1.msra.mxu0 0.0
      %5551 = vmatprep.subr.mxu0 0.0
      %5552 = vmatpush1.msra.mxu0 0.0
      %5553 = vmatprep.subr.mxu0 0.0
      %5554 = vmatpush1.msra.mxu0 0.0
      %5555 = vmatprep.subr.mxu0 0.0
      %5556 = vmatpush1.msra.mxu0 0.0
      %5557 = vmatprep.subr.mxu0 0.0
      %5558 = vmatpush1.msra.mxu0 0.0
      %5559 = vmatprep.subr.mxu0 0.0
      %5560 = vmatpush1.msra.mxu0 0.0
      %5561 = vmatprep.subr.mxu0 0.0
      %5562 = vmatpush1.msra.mxu0 0.0
      %5563 = vmatprep.subr.mxu0 0.0
      %5564 = vmatpush1.msra.mxu0 0.0
      %5565 = vmatprep.subr.mxu0 0.0
      %5566 = vmatpush1.msra.mxu0 0.0
      %5567 = vmatprep.subr.mxu0 0.0
      %5568 = vmatpush1.msra.mxu0 0.0
      %5569 = vmatprep.subr.mxu0 0.0
      %5570 = vmatpush1.msra.mxu0 0.0
      %5571 = vmatprep.mubr.f32.mxu0 0.0
      %5572 = vmatmul.mubr.f32.gmra.mrb[0].mxu0 %v5412
      %v5573 = vpop.f32.mrb[0].mxu0
      %v5574 = vadd.f32 0.0, %v5573
      %v5575 = vpop.f32.mrb[0].mxu0
      %5576 = vmatprep.mubr.f32.mxu0 0.0
      %5577 = vmatmul.mubr.f32.gmra.mrb[0].mxu0 %v5415
      %v5578 = vpop.f32.mrb[0].mxu0
      %v5579 = vadd.f32 0.0, %v5578
      %v5580 = vpop.f32.mrb[0].mxu0
      %5581 = vmatprep.mubr.f32.mxu0 0.0
      %5582 = vmatmul.mubr.f32.gmra.mrb[0].mxu0 %v5418
      %v5583 = vpop.f32.mrb[0].mxu0
      %v5584 = vadd.f32 0.0, %v5583
      %v5585 = vpop.f32.mrb[0].mxu0
      %5586 = vmatprep.mubr.f32.mxu0 0.0
      %5587 = vmatmul.mubr.f32.gmra.mrb[0].mxu0 %v5421
      %v5588 = vpop.f32.mrb[0].mxu0
      %v5589 = vadd.f32 0.0, %v5588
      %v5590 = vpop.f32.mrb[0].mxu0
      %5591 = vmatprep.mubr.f32.mxu0 0.0
      %5592 = vmatmul.mubr.f32.gmra.mrb[0].mxu0 %v5424
      %v5593 = vpop.f32.mrb[0].mxu0
      %v5594 = vadd.f32 0.0, %v5593
      %v5595 = vpop.f32.mrb[0].mxu0
      %5596 = vmatprep.mubr.f32.mxu0 0.0
      %5597 = vmatmul.mubr.f32.gmra.mrb[0].mxu0 %v5427
      %v5598 = vpop.f32.mrb[0].mxu0
      %v5599 = vadd.f32 0.0, %v5598
      %v5600 = vpop.f32.mrb[0].mxu0
      %5601 = vmatprep.mubr.f32.mxu0 0.0
      %5602 = vmatmul.mubr.f32.gmra.mrb[0].mxu0 %v5430
      %v5603 = vpop.f32.mrb[0].mxu0
      %v5604 = vadd.f32 0.0, %v5603
      %v5605 = vpop.f32.mrb[0].mxu0
      %5606 = vmatprep.mubr.f32.mxu0 0.0
      %5607 = vmatmul.mubr.f32.gmra.mrb[0].mxu0 %v5433
      %v5608 = vpop.f32.mrb[0].mxu0
      %v5609 = vadd.f32 0.0, %v5608
      %v5610 = vpop.f32.mrb[0].mxu0
      %5611 = vmatprep.mubr.f32.mxu0 0.0
      %5612 = vmatmul.mubr.f32.gmra.mrb[0].mxu0 %v5436
      %v5613 = vpop.f32.mrb[0].mxu0
      %v5614 = vadd.f32 0.0, %v5613
      %v5615 = vpop.f32.mrb[0].mxu0
      %5616 = vmatprep.mubr.f32.mxu0 0.0
      %5617 = vmatmul.mubr.f32.gmra.mrb[0].mxu0 %v5439
      %v5618 = vpop.f32.mrb[0].mxu0
      %v5619 = vadd.f32 0.0, %v5618
      %v5620 = vpop.f32.mrb[0].mxu0
      %5621 = vmatprep.mubr.f32.mxu0 0.0
      %5622 = vmatmul.mubr.f32.gmra.mrb[0].mxu0 %v5442
      %v5623 = vpop.f32.mrb[0].mxu0
      %v5624 = vadd.f32 0.0, %v5623
      %v5625 = vpop.f32.mrb[0].mxu0
      %5626 = vmatprep.mubr.f32.mxu0 0.0
      %5627 = vmatmul.mubr.f32.gmra.mrb[0].mxu0 %v5445
      %v5628 = vpop.f32.mrb[0].mxu0
      %v5629 = vadd.f32 0.0, %v5628
      %v5630 = vpop.f32.mrb[0].mxu0
      %5631 = vmatprep.mubr.f32.mxu0 0.0
      %5632 = vmatmul.mubr.f32.gmra.mrb[0].mxu0 %v5448
      %v5633 = vpop.f32.mrb[0].mxu0
      %v5634 = vadd.f32 0.0, %v5633
      %v5635 = vpop.f32.mrb[0].mxu0
      %5636 = vmatprep.mubr.f32.mxu0 0.0
      %5637 = vmatmul.mubr.f32.gmra.mrb[0].mxu0 %v5451
      %v5638 = vpop.f32.mrb[0].mxu0
      %v5639 = vadd.f32 0.0, %v5638
      %v5640 = vpop.f32.mrb[0].mxu0
      %5641 = vmatprep.mubr.f32.mxu0 0.0
      %5642 = vmatmul.mubr.f32.gmra.mrb[0].mxu0 %v5454
      %v5643 = vpop.f32.mrb[0].mxu0
      %v5644 = vadd.f32 0.0, %v5643
      %v5645 = vpop.f32.mrb[0].mxu0
      %5646 = vmatprep.mubr.f32.mxu0 0.0
      %5647 = vmatmul.mubr.f32.gmra.mrb[0].mxu0 %v5457
      %v5648 = vpop.f32.mrb[0].mxu0
      %v5649 = vadd.f32 0.0, %v5648
      %v5650 = vpop.f32.mrb[0].mxu0
      %5651 = vmatprep.mubr.f32.mxu0 0.0
      %5652 = vmatmul.mubr.f32.gmra.mrb[0].mxu0 %v5460
      %v5653 = vpop.f32.mrb[0].mxu0
      %v5654 = vadd.f32 0.0, %v5653
      %v5655 = vpop.f32.mrb[0].mxu0
      %5656 = vmatprep.mubr.f32.mxu0 0.0
      %5657 = vmatmul.mubr.f32.gmra.mrb[0].mxu0 %v5463
      %v5658 = vpop.f32.mrb[0].mxu0
      %v5659 = vadd.f32 0.0, %v5658
      %v5660 = vpop.f32.mrb[0].mxu0
      %5661 = vmatprep.mubr.f32.mxu0 0.0
      %5662 = vmatmul.mubr.f32.gmra.mrb[0].mxu0 %v5466
      %v5663 = vpop.f32.mrb[0].mxu0
      %v5664 = vadd.f32 0.0, %v5663
      %v5665 = vpop.f32.mrb[0].mxu0
      %5666 = vmatprep.mubr.f32.mxu0 0.0
      %5667 = vmatmul.mubr.f32.gmra.mrb[0].mxu0 %v5469
      %v5668 = vpop.f32.mrb[0].mxu0
      %v5669 = vadd.f32 0.0, %v5668
      %v5670 = vpop.f32.mrb[0].mxu0
      %5671 = vmatprep.mubr.f32.mxu0 0.0
      %5672 = vmatmul.mubr.f32.gmra.mrb[0].mxu0 %v5472
      %v5673 = vpop.f32.mrb[0].mxu0
      %v5674 = vadd.f32 0.0, %v5673
      %v5675 = vpop.f32.mrb[0].mxu0
      %5676 = vmatprep.mubr.f32.mxu0 0.0
      %5677 = vmatmul.mubr.f32.gmra.mrb[0].mxu0 %v5475
      %v5678 = vpop.f32.mrb[0].mxu0
      %v5679 = vadd.f32 0.0, %v5678
      %v5680 = vpop.f32.mrb[0].mxu0
      %5681 = vmatprep.mubr.f32.mxu0 0.0
      %5682 = vmatmul.mubr.f32.gmra.mrb[0].mxu0 %v5478
      %v5683 = vpop.f32.mrb[0].mxu0
      %v5684 = vadd.f32 0.0, %v5683
      %v5685 = vpop.f32.mrb[0].mxu0
      %5686 = vmatprep.mubr.f32.mxu0 0.0
      %5687 = vmatmul.mubr.f32.gmra.mrb[0].mxu0 %v5481
      %v5688 = vpop.f32.mrb[0].mxu0
      %v5689 = vadd.f32 0.0, %v5688
      %v5690 = vpop.f32.mrb[0].mxu0
      %5691 = vmatprep.mubr.f32.mxu0 0.0
      %5692 = vmatmul.mubr.f32.gmra.mrb[0].mxu0 %v5484
      %v5693 = vpop.f32.mrb[0].mxu0
      %v5694 = vadd.f32 0.0, %v5693
      %v5695 = vpop.f32.mrb[0].mxu0
      %5696 = vmatprep.mubr.f32.mxu0 0.0
      %5697 = vmatmul.mubr.f32.gmra.mrb[0].mxu0 %v5487
      %v5698 = vpop.f32.mrb[0].mxu0
      %v5699 = vadd.f32 0.0, %v5698
      %v5700 = vpop.f32.mrb[0].mxu0
      %5701 = vmatprep.mubr.f32.mxu0 0.0
      %5702 = vmatmul.mubr.f32.gmra.mrb[0].mxu0 %v5490
      %v5703 = vpop.f32.mrb[0].mxu0
      %v5704 = vadd.f32 0.0, %v5703
      %v5705 = vpop.f32.mrb[0].mxu0
      %5706 = vmatprep.mubr.f32.mxu0 0.0
      %5707 = vmatmul.mubr.f32.gmra.mrb[0].mxu0 %v5493
      %v5708 = vpop.f32.mrb[0].mxu0
      %v5709 = vadd.f32 0.0, %v5708
      %v5710 = vpop.f32.mrb[0].mxu0
      %5711 = vmatprep.mubr.f32.mxu0 0.0
      %5712 = vmatmul.mubr.f32.gmra.mrb[0].mxu0 %v5496
      %v5713 = vpop.f32.mrb[0].mxu0
      %v5714 = vadd.f32 0.0, %v5713
      %v5715 = vpop.f32.mrb[0].mxu0
      %5716 = vmatprep.mubr.f32.mxu0 0.0
      %5717 = vmatmul.mubr.f32.gmra.mrb[0].mxu0 %v5499
      %v5718 = vpop.f32.mrb[0].mxu0
      %v5719 = vadd.f32 0.0, %v5718
      %v5720 = vpop.f32.mrb[0].mxu0
      %5721 = vmatprep.mubr.f32.mxu0 0.0
      %5722 = vmatmul.mubr.f32.gmra.mrb[0].mxu0 %v5502
      %v5723 = vpop.f32.mrb[0].mxu0
      %v5724 = vadd.f32 0.0, %v5723
      %v5725 = vpop.f32.mrb[0].mxu0
      %5726 = vmatprep.mubr.f32.mxu0 0.0
      %5727 = vmatmul.mubr.f32.gmra.mrb[0].mxu0 %v5505
      %v5728 = vpop.f32.mrb[0].mxu0
      %v5729 = vadd.f32 0.0, %v5728
      %v5730 = vpop.f32.mrb[0].mxu0
      %5731 = vdwg.mxu0
      %v5733 = vsel %vm1634, %v3084, 0
      %v5736 = vsel %vm1634, %v3085, 0
      %v5739 = vsel %vm1634, %v3086, 0
      %v5742 = vsel %vm1634, %v3087, 0
      %v5745 = vsel %vm1634, %v3088, 0
      %v5748 = vsel %vm1634, %v3089, 0
      %v5751 = vsel %vm1634, %v3090, 0
      %v5754 = vsel %vm1634, %v3091, 0
      %v5757 = vsel %vm1634, %v3092, 0
      %v5760 = vsel %vm1634, %v3093, 0
      %v5763 = vsel %vm1634, %v3094, 0
      %v5766 = vsel %vm1634, %v3095, 0
      %v5769 = vsel %vm1634, %v3096, 0
      %v5772 = vsel %vm1634, %v3097, 0
      %v5775 = vsel %vm1634, %v3098, 0
      %v5778 = vsel %vm1634, %v3099, 0
      %v5781 = vsel %vm1634, %v3100, 0
      %v5784 = vsel %vm1634, %v3101, 0
      %v5787 = vsel %vm1634, %v3102, 0
      %v5790 = vsel %vm1634, %v3103, 0
      %v5793 = vsel %vm1634, %v3104, 0
      %v5796 = vsel %vm1634, %v3105, 0
      %v5799 = vsel %vm1634, %v3106, 0
      %v5802 = vsel %vm1634, %v3107, 0
      %v5805 = vsel %vm1634, %v3108, 0
      %v5808 = vsel %vm1634, %v3109, 0
      %v5811 = vsel %vm1634, %v3110, 0
      %v5814 = vsel %vm1634, %v3111, 0
      %v5817 = vsel %vm1634, %v3112, 0
      %v5820 = vsel %vm1634, %v3113, 0
      %v5823 = vsel %vm1634, %v3114, 0
      %v5826 = vsel %vm1634, %v3115, 0
      %5828 = vmatprep.subr.mxu0 0.0
      %5829 = vmatpush1.msra.mxu0 %v3116
      %5830 = vmatprep.subr.mxu0 0.0
      %5831 = vmatpush1.msra.mxu0 %v3117
      %5832 = vmatprep.subr.mxu0 0.0
      %5833 = vmatpush1.msra.mxu0 0.0
      %5834 = vmatprep.subr.mxu0 0.0
      %5835 = vmatpush1.msra.mxu0 0.0
      %5836 = vmatprep.subr.mxu0 0.0
      %5837 = vmatpush1.msra.mxu0 0.0
      %5838 = vmatprep.subr.mxu0 0.0
      %5839 = vmatpush1.msra.mxu0 0.0
      %5840 = vmatprep.subr.mxu0 0.0
      %5841 = vmatpush1.msra.mxu0 0.0
      %5842 = vmatprep.subr.mxu0 0.0
      %5843 = vmatpush1.msra.mxu0 0.0
      %5844 = vmatprep.subr.mxu0 0.0
      %5845 = vmatpush1.msra.mxu0 0.0
      %5846 = vmatprep.subr.mxu0 0.0
      %5847 = vmatpush1.msra.mxu0 0.0
      %5848 = vmatprep.subr.mxu0 0.0
      %5849 = vmatpush1.msra.mxu0 0.0
      %5850 = vmatprep.subr.mxu0 0.0
      %5851 = vmatpush1.msra.mxu0 0.0
      %5852 = vmatprep.subr.mxu0 0.0
      %5853 = vmatpush1.msra.mxu0 0.0
      %5854 = vmatprep.subr.mxu0 0.0
      %5855 = vmatpush1.msra.mxu0 0.0
      %5856 = vmatprep.subr.mxu0 0.0
      %5857 = vmatpush1.msra.mxu0 0.0
      %5858 = vmatprep.subr.mxu0 0.0
      %5859 = vmatpush1.msra.mxu0 0.0
      %5860 = vmatprep.subr.mxu0 0.0
      %5861 = vmatpush1.msra.mxu0 0.0
      %5862 = vmatprep.subr.mxu0 0.0
      %5863 = vmatpush1.msra.mxu0 0.0
      %5864 = vmatprep.subr.mxu0 0.0
      %5865 = vmatpush1.msra.mxu0 0.0
      %5866 = vmatprep.subr.mxu0 0.0
      %5867 = vmatpush1.msra.mxu0 0.0
      %5868 = vmatprep.subr.mxu0 0.0
      %5869 = vmatpush1.msra.mxu0 0.0
      %5870 = vmatprep.subr.mxu0 0.0
      %5871 = vmatpush1.msra.mxu0 0.0
      %5872 = vmatprep.subr.mxu0 0.0
      %5873 = vmatpush1.msra.mxu0 0.0
      %5874 = vmatprep.subr.mxu0 0.0
      %5875 = vmatpush1.msra.mxu0 0.0
      %5876 = vmatprep.subr.mxu0 0.0
      %5877 = vmatpush1.msra.mxu0 0.0
      %5878 = vmatprep.subr.mxu0 0.0
      %5879 = vmatpush1.msra.mxu0 0.0
      %5880 = vmatprep.subr.mxu0 0.0
      %5881 = vmatpush1.msra.mxu0 0.0
      %5882 = vmatprep.subr.mxu0 0.0
      %5883 = vmatpush1.msra.mxu0 0.0
      %5884 = vmatprep.subr.mxu0 0.0
      %5885 = vmatpush1.msra.mxu0 0.0
      %5886 = vmatprep.subr.mxu0 0.0
      %5887 = vmatpush1.msra.mxu0 0.0
      %5888 = vmatprep.subr.mxu0 0.0
      %5889 = vmatpush1.msra.mxu0 0.0
      %5890 = vmatprep.subr.mxu0 0.0
      %5891 = vmatpush1.msra.mxu0 0.0
      %5892 = vmatprep.mubr.f32.mxu0 0.0
      %5893 = vmatmul.mubr.f32.gmra.mrb[0].mxu0 %v5733
      %v5894 = vpop.f32.mrb[0].mxu0
      %v5895 = vadd.f32 %v5574, %v5894
      %v5896 = vpop.f32.mrb[0].mxu0
      %5897 = vmatprep.mubr.f32.mxu0 0.0
      %5898 = vmatmul.mubr.f32.gmra.mrb[0].mxu0 %v5736
      %v5899 = vpop.f32.mrb[0].mxu0
      %v5900 = vadd.f32 %v5579, %v5899
      %v5901 = vpop.f32.mrb[0].mxu0
      %5902 = vmatprep.mubr.f32.mxu0 0.0
      %5903 = vmatmul.mubr.f32.gmra.mrb[0].mxu0 %v5739
      %v5904 = vpop.f32.mrb[0].mxu0
      %v5905 = vadd.f32 %v5584, %v5904
      %v5906 = vpop.f32.mrb[0].mxu0
      %5907 = vmatprep.mubr.f32.mxu0 0.0
      %5908 = vmatmul.mubr.f32.gmra.mrb[0].mxu0 %v5742
      %v5909 = vpop.f32.mrb[0].mxu0
      %v5910 = vadd.f32 %v5589, %v5909
      %v5911 = vpop.f32.mrb[0].mxu0
      %5912 = vmatprep.mubr.f32.mxu0 0.0
      %5913 = vmatmul.mubr.f32.gmra.mrb[0].mxu0 %v5745
      %v5914 = vpop.f32.mrb[0].mxu0
      %v5915 = vadd.f32 %v5594, %v5914
      %v5916 = vpop.f32.mrb[0].mxu0
      %5917 = vmatprep.mubr.f32.mxu0 0.0
      %5918 = vmatmul.mubr.f32.gmra.mrb[0].mxu0 %v5748
      %v5919 = vpop.f32.mrb[0].mxu0
      %v5920 = vadd.f32 %v5599, %v5919
      %v5921 = vpop.f32.mrb[0].mxu0
      %5922 = vmatprep.mubr.f32.mxu0 0.0
      %5923 = vmatmul.mubr.f32.gmra.mrb[0].mxu0 %v5751
      %v5924 = vpop.f32.mrb[0].mxu0
      %v5925 = vadd.f32 %v5604, %v5924
      %v5926 = vpop.f32.mrb[0].mxu0
      %5927 = vmatprep.mubr.f32.mxu0 0.0
      %5928 = vmatmul.mubr.f32.gmra.mrb[0].mxu0 %v5754
      %v5929 = vpop.f32.mrb[0].mxu0
      %v5930 = vadd.f32 %v5609, %v5929
      %v5931 = vpop.f32.mrb[0].mxu0
      %5932 = vmatprep.mubr.f32.mxu0 0.0
      %5933 = vmatmul.mubr.f32.gmra.mrb[0].mxu0 %v5757
      %v5934 = vpop.f32.mrb[0].mxu0
      %v5935 = vadd.f32 %v5614, %v5934
      %v5936 = vpop.f32.mrb[0].mxu0
      %5937 = vmatprep.mubr.f32.mxu0 0.0
      %5938 = vmatmul.mubr.f32.gmra.mrb[0].mxu0 %v5760
      %v5939 = vpop.f32.mrb[0].mxu0
      %v5940 = vadd.f32 %v5619, %v5939
      %v5941 = vpop.f32.mrb[0].mxu0
      %5942 = vmatprep.mubr.f32.mxu0 0.0
      %5943 = vmatmul.mubr.f32.gmra.mrb[0].mxu0 %v5763
      %v5944 = vpop.f32.mrb[0].mxu0
      %v5945 = vadd.f32 %v5624, %v5944
      %v5946 = vpop.f32.mrb[0].mxu0
      %5947 = vmatprep.mubr.f32.mxu0 0.0
      %5948 = vmatmul.mubr.f32.gmra.mrb[0].mxu0 %v5766
      %v5949 = vpop.f32.mrb[0].mxu0
      %v5950 = vadd.f32 %v5629, %v5949
      %v5951 = vpop.f32.mrb[0].mxu0
      %5952 = vmatprep.mubr.f32.mxu0 0.0
      %5953 = vmatmul.mubr.f32.gmra.mrb[0].mxu0 %v5769
      %v5954 = vpop.f32.mrb[0].mxu0
      %v5955 = vadd.f32 %v5634, %v5954
      %v5956 = vpop.f32.mrb[0].mxu0
      %5957 = vmatprep.mubr.f32.mxu0 0.0
      %5958 = vmatmul.mubr.f32.gmra.mrb[0].mxu0 %v5772
      %v5959 = vpop.f32.mrb[0].mxu0
      %v5960 = vadd.f32 %v5639, %v5959
      %v5961 = vpop.f32.mrb[0].mxu0
      %5962 = vmatprep.mubr.f32.mxu0 0.0
      %5963 = vmatmul.mubr.f32.gmra.mrb[0].mxu0 %v5775
      %v5964 = vpop.f32.mrb[0].mxu0
      %v5965 = vadd.f32 %v5644, %v5964
      %v5966 = vpop.f32.mrb[0].mxu0
      %5967 = vmatprep.mubr.f32.mxu0 0.0
      %5968 = vmatmul.mubr.f32.gmra.mrb[0].mxu0 %v5778
      %v5969 = vpop.f32.mrb[0].mxu0
      %v5970 = vadd.f32 %v5649, %v5969
      %v5971 = vpop.f32.mrb[0].mxu0
      %5972 = vmatprep.mubr.f32.mxu0 0.0
      %5973 = vmatmul.mubr.f32.gmra.mrb[0].mxu0 %v5781
      %v5974 = vpop.f32.mrb[0].mxu0
      %v5975 = vadd.f32 %v5654, %v5974
      %v5976 = vpop.f32.mrb[0].mxu0
      %5977 = vmatprep.mubr.f32.mxu0 0.0
      %5978 = vmatmul.mubr.f32.gmra.mrb[0].mxu0 %v5784
      %v5979 = vpop.f32.mrb[0].mxu0
      %v5980 = vadd.f32 %v5659, %v5979
      %v5981 = vpop.f32.mrb[0].mxu0
      %5982 = vmatprep.mubr.f32.mxu0 0.0
      %5983 = vmatmul.mubr.f32.gmra.mrb[0].mxu0 %v5787
      %v5984 = vpop.f32.mrb[0].mxu0
      %v5985 = vadd.f32 %v5664, %v5984
      %v5986 = vpop.f32.mrb[0].mxu0
      %5987 = vmatprep.mubr.f32.mxu0 0.0
      %5988 = vmatmul.mubr.f32.gmra.mrb[0].mxu0 %v5790
      %v5989 = vpop.f32.mrb[0].mxu0
      %v5990 = vadd.f32 %v5669, %v5989
      %v5991 = vpop.f32.mrb[0].mxu0
      %5992 = vmatprep.mubr.f32.mxu0 0.0
      %5993 = vmatmul.mubr.f32.gmra.mrb[0].mxu0 %v5793
      %v5994 = vpop.f32.mrb[0].mxu0
      %v5995 = vadd.f32 %v5674, %v5994
      %v5996 = vpop.f32.mrb[0].mxu0
      %5997 = vmatprep.mubr.f32.mxu0 0.0
      %5998 = vmatmul.mubr.f32.gmra.mrb[0].mxu0 %v5796
      %v5999 = vpop.f32.mrb[0].mxu0
      %v6000 = vadd.f32 %v5679, %v5999
      %v6001 = vpop.f32.mrb[0].mxu0
      %6002 = vmatprep.mubr.f32.mxu0 0.0
      %6003 = vmatmul.mubr.f32.gmra.mrb[0].mxu0 %v5799
      %v6004 = vpop.f32.mrb[0].mxu0
      %v6005 = vadd.f32 %v5684, %v6004
      %v6006 = vpop.f32.mrb[0].mxu0
      %6007 = vmatprep.mubr.f32.mxu0 0.0
      %6008 = vmatmul.mubr.f32.gmra.mrb[0].mxu0 %v5802
      %v6009 = vpop.f32.mrb[0].mxu0
      %v6010 = vadd.f32 %v5689, %v6009
      %v6011 = vpop.f32.mrb[0].mxu0
      %6012 = vmatprep.mubr.f32.mxu0 0.0
      %6013 = vmatmul.mubr.f32.gmra.mrb[0].mxu0 %v5805
      %v6014 = vpop.f32.mrb[0].mxu0
      %v6015 = vadd.f32 %v5694, %v6014
      %v6016 = vpop.f32.mrb[0].mxu0
      %6017 = vmatprep.mubr.f32.mxu0 0.0
      %6018 = vmatmul.mubr.f32.gmra.mrb[0].mxu0 %v5808
      %v6019 = vpop.f32.mrb[0].mxu0
      %v6020 = vadd.f32 %v5699, %v6019
      %v6021 = vpop.f32.mrb[0].mxu0
      %6022 = vmatprep.mubr.f32.mxu0 0.0
      %6023 = vmatmul.mubr.f32.gmra.mrb[0].mxu0 %v5811
      %v6024 = vpop.f32.mrb[0].mxu0
      %v6025 = vadd.f32 %v5704, %v6024
      %v6026 = vpop.f32.mrb[0].mxu0
      %6027 = vmatprep.mubr.f32.mxu0 0.0
      %6028 = vmatmul.mubr.f32.gmra.mrb[0].mxu0 %v5814
      %v6029 = vpop.f32.mrb[0].mxu0
      %v6030 = vadd.f32 %v5709, %v6029
      %v6031 = vpop.f32.mrb[0].mxu0
      %6032 = vmatprep.mubr.f32.mxu0 0.0
      %6033 = vmatmul.mubr.f32.gmra.mrb[0].mxu0 %v5817
      %v6034 = vpop.f32.mrb[0].mxu0
      %v6035 = vadd.f32 %v5714, %v6034
      %v6036 = vpop.f32.mrb[0].mxu0
      %6037 = vmatprep.mubr.f32.mxu0 0.0
      %6038 = vmatmul.mubr.f32.gmra.mrb[0].mxu0 %v5820
      %v6039 = vpop.f32.mrb[0].mxu0
      %v6040 = vadd.f32 %v5719, %v6039
      %v6041 = vpop.f32.mrb[0].mxu0
      %6042 = vmatprep.mubr.f32.mxu0 0.0
      %6043 = vmatmul.mubr.f32.gmra.mrb[0].mxu0 %v5823
      %v6044 = vpop.f32.mrb[0].mxu0
      %v6045 = vadd.f32 %v5724, %v6044
      %v6046 = vpop.f32.mrb[0].mxu0
      %6047 = vmatprep.mubr.f32.mxu0 0.0
      %6048 = vmatmul.mubr.f32.gmra.mrb[0].mxu0 %v5826
      %v6049 = vpop.f32.mrb[0].mxu0
      %v6050 = vadd.f32 %v5729, %v6049
      %v6051 = vpop.f32.mrb[0].mxu0
      %6052 = vdwg.mxu0
      %v6053 = vld [vmem:[%s10] sm:$0x1]
      %v6055 = vlaneseq
      %v6056 = vshrl.u32 %v6055, 7
      %v6057 = vsub.s32 0, %v6056
      %v6058 = vrot.slane %v6053, %v6057
      %v6060 = vadd.f32 %v5895, %v6058
      %v6061 = vadd.f32 %v5900, %v6058
      %v6062 = vadd.f32 %v5905, %v6058
      %v6063 = vadd.f32 %v5910, %v6058
      %v6064 = vadd.f32 %v5915, %v6058
      %v6065 = vadd.f32 %v5920, %v6058
      %v6066 = vadd.f32 %v5925, %v6058
      %v6067 = vadd.f32 %v5930, %v6058
      %v6068 = vadd.f32 %v5935, %v6058
      %v6069 = vadd.f32 %v5940, %v6058
      %v6070 = vadd.f32 %v5945, %v6058
      %v6071 = vadd.f32 %v5950, %v6058
      %v6072 = vadd.f32 %v5955, %v6058
      %v6073 = vadd.f32 %v5960, %v6058
      %v6074 = vadd.f32 %v5965, %v6058
      %v6075 = vadd.f32 %v5970, %v6058
      %v6076 = vadd.f32 %v5975, %v6058
      %v6077 = vadd.f32 %v5980, %v6058
      %v6078 = vadd.f32 %v5985, %v6058
      %v6079 = vadd.f32 %v5990, %v6058
      %v6080 = vadd.f32 %v5995, %v6058
      %v6081 = vadd.f32 %v6000, %v6058
      %v6082 = vadd.f32 %v6005, %v6058
      %v6083 = vadd.f32 %v6010, %v6058
      %v6084 = vadd.f32 %v6015, %v6058
      %v6085 = vadd.f32 %v6020, %v6058
      %v6086 = vadd.f32 %v6025, %v6058
      %v6087 = vadd.f32 %v6030, %v6058
      %v6088 = vadd.f32 %v6035, %v6058
      %v6089 = vadd.f32 %v6040, %v6058
      %v6090 = vadd.f32 %v6045, %v6058
      %v6091 = vadd.f32 %v6050, %v6058
      %6092 = vst.msk [vmem:[%s443] sm:$0xff] %vm552, %v6060
      %6093 = vst.msk [vmem:[%s443 + $0x8] sm:$0xff] %vm552, %v6061
      %6094 = vst.msk [vmem:[%s443 + $0x10] sm:$0xff] %vm552, %v6062
      %6095 = vst.msk [vmem:[%s443 + $0x18] sm:$0xff] %vm552, %v6063
      %6096 = vst.msk [vmem:[%s443 + $0x20] sm:$0xff] %vm552, %v6064
      %6097 = vst.msk [vmem:[%s443 + $0x28] sm:$0xff] %vm552, %v6065
      %6098 = vst.msk [vmem:[%s443 + $0x30] sm:$0xff] %vm552, %v6066
      %6099 = vst.msk [vmem:[%s443 + $0x38] sm:$0xff] %vm552, %v6067
      %6100 = vst.msk [vmem:[%s443 + $0x40] sm:$0xff] %vm552, %v6068
      %6101 = vst.msk [vmem:[%s443 + $0x48] sm:$0xff] %vm552, %v6069
      %6102 = vst.msk [vmem:[%s443 + $0x50] sm:$0xff] %vm552, %v6070
      %6103 = vst.msk [vmem:[%s443 + $0x58] sm:$0xff] %vm552, %v6071
      %6104 = vst.msk [vmem:[%s443 + $0x60] sm:$0xff] %vm552, %v6072
      %6105 = vst.msk [vmem:[%s443 + $0x68] sm:$0xff] %vm552, %v6073
      %6106 = vst.msk [vmem:[%s443 + $0x70] sm:$0xff] %vm552, %v6074
      %6107 = vst.msk [vmem:[%s443 + $0x78] sm:$0xff] %vm552, %v6075
      %6108 = vst.msk [vmem:[%s443 + $0x80] sm:$0xff] %vm552, %v6076
      %6109 = vst.msk [vmem:[%s443 + $0x88] sm:$0xff] %vm552, %v6077
      %6110 = vst.msk [vmem:[%s443 + $0x90] sm:$0xff] %vm552, %v6078
      %6111 = vst.msk [vmem:[%s443 + $0x98] sm:$0xff] %vm552, %v6079
      %6112 = vst.msk [vmem:[%s443 + $0xa0] sm:$0xff] %vm552, %v6080
      %6113 = vst.msk [vmem:[%s443 + $0xa8] sm:$0xff] %vm552, %v6081
      %6114 = vst.msk [vmem:[%s443 + $0xb0] sm:$0xff] %vm552, %v6082
      %6115 = vst.msk [vmem:[%s443 + $0xb8] sm:$0xff] %vm552, %v6083
      %6116 = vst.msk [vmem:[%s443 + $0xc0] sm:$0xff] %vm552, %v6084
      %6117 = vst.msk [vmem:[%s443 + $0xc8] sm:$0xff] %vm552, %v6085
      %6118 = vst.msk [vmem:[%s443 + $0xd0] sm:$0xff] %vm552, %v6086
      %6119 = vst.msk [vmem:[%s443 + $0xd8] sm:$0xff] %vm552, %v6087
      %6120 = vst.msk [vmem:[%s443 + $0xe0] sm:$0xff] %vm552, %v6088
      %6121 = vst.msk [vmem:[%s443 + $0xe8] sm:$0xff] %vm552, %v6089
      %6122 = vst.msk [vmem:[%s443 + $0xf0] sm:$0xff] %vm552, %v6090
      %6123 = vst.msk [vmem:[%s443 + $0xf8] sm:$0xff] %vm552, %v6091
      %s6124 = smul.u32 4, %s22
      %p6125 = scmp.lt.s32.totalorder %s6124, 7
      %s6126 = scalar_select %p6125, %s6124, 7
      %s6127 = smul.addr %s6126, 8
      %s6128 = smul.addr %s6127, 8
      %s6129 = scalar_lea.vmem %s11, %s6128
      // Predicated region
      $region65: #{tpu_custom_call.1} parent=63 // pred_check
        %p6130 = pneg %p286
      $region66: #{tpu_custom_call.1} parent=63 // pred_check_branch
        %6132 = sbr.rel (%p6130) target = $region68
      $region67: #{tpu_custom_call.1} parent=63 // pred_region
        %s6133 = smul.u32 4, %s22
      $region68: #{tpu_custom_call.1} parent=63 // pred_fallthru
        _
    $region64: #{tpu_custom_call.1} parent=5 // pred_fallthru
      _
    %p6134 = scmp.le.s32.totalorder 2, %s17
    // Predicated region
    $region69: #{tpu_custom_call.1} parent=5 // pred_check
      %p6135 = pneg %p6134
    $region70: #{tpu_custom_call.1} parent=5 // pred_check_branch
      %6137 = sbr.rel (%p6135) target = $region72
    $region71: #{tpu_custom_call.1} parent=5 // pred_region
      %s6138 = ssub.s32 %s17, 2
      // Predicated region
      $region73: #{tpu_custom_call.1} parent=71 // pred_check
        %p6139 = pneg %p292
      $region74: #{tpu_custom_call.1} parent=71 // pred_check_branch
        %6141 = sbr.rel (%p6139) target = $region76
      $region75: #{tpu_custom_call.1} parent=71 // pred_region
        %s6142 = smul.u32 4, %s23
        %p6143 = scmp.lt.s32.totalorder %s6142, 7
        %s6144 = scalar_select %p6143, %s6142, 7
        %s6145 = smul.addr %s6144, 8
        %s6146 = smul.addr %s6145, 8
        %s6147 = scalar_lea.vmem %s11, %s6146
      $region76: #{tpu_custom_call.1} parent=71 // pred_fallthru
        _
    $region72: #{tpu_custom_call.1} parent=5 // pred_fallthru
      _
  $region6: #{tpu_custom_call.1} parent=0 // loop_footer
    %s21 = sadd.s32 1, %s17
  $region7: #{tpu_custom_call.1} parent=0 // loop_footer_branch
    %16 = sbr.rel target = $region3
  $region8: #{tpu_custom_call.1} parent=0 // loop_exit
    _

</llo_original>
